<compile_context>
chip_gen: v5e
topology: v5e:2x2
jax: 0.10.0
libtpu: 0.0.40
codegen_flags: <defaults>
</compile_context>

<pallas_src>
import math
from functools import partial

import jax
import jax.numpy as jnp
import numpy as np
from jax import lax
from jax.experimental import pallas as pl
from jax.experimental.pallas import tpu as pltpu

# ---------------------------------------------------------------------------
# Small, module-consistent configuration
# ---------------------------------------------------------------------------
CHANNELS = 32            # d_model ("channels" in the module)
HEADS = 4                # transformer_heads
LAYERS = 2               # transformer_layers (small for the demo)
DFF = CHANNELS           # TransformerEncoderLayer(dim_feedforward=channels)
PATCH = 8                # image_block_size
IMG = 32                 # input spatial size -> 4x4 = 16 patches
BATCH = 2
LN_EPS = 1e-5
NEG_INF = -1e30          # additive mask value (finite; avoids -inf - -inf NaNs)


# ---------------------------------------------------------------------------
# Fused forward kernel: patch embed + LAYERS x (MHA + FFN + 2 LayerNorms)
# ---------------------------------------------------------------------------
def _layernorm(x, gamma, beta):
    mu = jnp.mean(x, axis=-1, keepdims=True)
    var = jnp.mean((x - mu) ** 2, axis=-1, keepdims=True)
    return (x - mu) * lax.rsqrt(var + LN_EPS) * gamma + beta


def vit_fused_kernel(patches_ref, mask_ref, wc_ref, bc_ref, pe_ref,
                     wqkv_ref, bqkv_ref, wo_ref, bo_ref,
                     w1_ref, b1_ref, w2_ref, b2_ref,
                     g1_ref, be1_ref, g2_ref, be2_ref,
                     o_ref, *, layers, heads):
    # ---- patch embedding (stride-P conv as matmul) + bias + positional enc ----
    # patches (bf16, (B*S, K)) @ wc (bf16, (K, C)) -> f32 (B*S, C); one MXU op.
    x = jnp.dot(patches_ref[...], wc_ref[...], preferred_element_type=jnp.float32)
    x = x + bc_ref[...] + pe_ref[...]                       # f32 elementwise
    C = x.shape[-1]
    dh = C // heads
    scale = 1.0 / math.sqrt(dh)

    # Block-diagonal additive batch mask (0 within an image, -1e30 across
    # images), precomputed in the wrapper; loaded once, reused every layer.
    mask = mask_ref[...]                                     # (B*S, B*S) f32

    # ---- encoder layers: static unroll; activations stay on-chip throughout --
    for li in range(layers):
        # hoist this layer's parameters (weights already bf16 from the wrapper)
        wqkv = wqkv_ref[li]; bqkv = bqkv_ref[li]             # (C, 3C) bf16, (1, 3C) f32
        wo = wo_ref[li];     bo = bo_ref[li]                 # (C, C) bf16,  (1, C)  f32
        w1 = w1_ref[li];     b1 = b1_ref[li]                 # (C, DFF) bf16,(1, DFF)f32
        w2 = w2_ref[li];     b2 = b2_ref[li]                 # (DFF, C) bf16,(1, C)  f32
        g1 = g1_ref[li];     be1 = be1_ref[li]
        g2 = g2_ref[li];     be2 = be2_ref[li]

        # fused Q/K/V projection for the whole flattened batch: ONE matmul
        qkv = jnp.dot(x.astype(jnp.bfloat16), wqkv,
                      preferred_element_type=jnp.float32) + bqkv   # (B*S, 3C) f32
        qkv_b = qkv.astype(jnp.bfloat16)                     # cast once, slice per head

        # self-attention over the full flattened slab, per head; cross-batch
        # interactions are killed by the additive block-diagonal mask BEFORE
        # the max-subtraction (keeps softmax exact per image).
        attn = None
        for h in range(heads):                               # static, heads is small
            q_h = qkv_b[:, h * dh:(h + 1) * dh]              # (B*S, dh) bf16
            k_h = qkv_b[:, C + h * dh:C + (h + 1) * dh]
            v_h = qkv_b[:, 2 * C + h * dh:2 * C + (h + 1) * dh]
            # scores over the whole slab: (B*S, dh) @ (dh, B*S) -> (B*S, B*S)
            s = lax.dot_general(q_h, k_h, (((1,), (1,)), ((), ())),
                                preferred_element_type=jnp.float32) * scale + mask
            s = s - jnp.max(s, axis=-1, keepdims=True)
            p = jnp.exp(s)
            p = p / jnp.sum(p, axis=-1, keepdims=True)       # exact normalization
            o_h = jnp.dot(p.astype(jnp.bfloat16), v_h,
                          preferred_element_type=jnp.float32)       # (B*S, dh)
            # head output * its slice of the output projection, accumulated
            # (no concatenate / lane re-packing); init with first head's term.
            contrib = jnp.dot(o_h.astype(jnp.bfloat16), wo[h * dh:(h + 1) * dh, :],
                              preferred_element_type=jnp.float32)   # (B*S, C)
            attn = contrib if attn is None else attn + contrib
        attn = attn + bo

        # post-LN residual blocks (dropout layers are identity in eval mode)
        # TODO(synk): train-mode dropout (p=0.5) omitted; eval forward only.
        y = _layernorm(x + attn, g1, be1)
        hmid = jnp.maximum(
            jnp.dot(y.astype(jnp.bfloat16), w1, preferred_element_type=jnp.float32) + b1,
            0.0)
        ff = jnp.dot(hmid.astype(jnp.bfloat16), w2,
                     preferred_element_type=jnp.float32) + b2
        x = _layernorm(y + ff, g2, be2)

    o_ref[...] = x                                           # (B*S, C) f32


def _full_spec(shape):
    zeros = (0,) * len(shape)
    return pl.BlockSpec(shape, lambda i, _z=zeros: _z)


# ---------------------------------------------------------------------------
# Glue: patch extraction, parameters, positional encoding, full forward
# ---------------------------------------------------------------------------
def extract_patches(x):
    # NCHW -> (B, S, 3*P*P); flattening order (cin, ki, kj) matches Conv2d weight.
    B, Cin, H, W = x.shape
    hp, wp = H // PATCH, W // PATCH
    x = x.reshape(B, Cin, hp, PATCH, wp, PATCH)
    x = x.transpose(0, 2, 4, 1, 3, 5)
    return x.reshape(B, hp * wp, Cin * PATCH * PATCH), hp, wp


def sinusoidal_pe(S, C):
    pos = np.arange(S, dtype=np.float32)[:, None]
    div = np.exp(np.arange(0, C, 2, dtype=np.float32) * (-math.log(10000.0) / C))
    pe = np.zeros((S, C), np.float32)
    pe[:, 0::2] = np.sin(pos * div)
    pe[:, 1::2] = np.cos(pos * div)
    return jnp.asarray(pe)


def make_params(key):
    C = CHANNELS
    keys = jax.random.split(key, 2 + LAYERS)
    scale = 0.05
    conv_w = scale * jax.random.normal(keys[0], (C, 3, PATCH, PATCH), jnp.float32)
    conv_b = scale * jax.random.normal(keys[1], (C,), jnp.float32)

    acc = {k: [] for k in ("wqkv", "bqkv", "wo", "bo", "w1", "b1", "w2", "b2",
                           "g1", "be1", "g2", "be2")}
    for li in range(LAYERS):
        ks = jax.random.split(keys[2 + li], 12)
        in_proj_w = scale * jax.random.normal(ks[0], (3 * C, C), jnp.float32)
        in_proj_b = scale * jax.random.normal(ks[1], (3 * C,), jnp.float32)
        out_w = scale * jax.random.normal(ks[2], (C, C), jnp.float32)
        out_b = scale * jax.random.normal(ks[3], (C,), jnp.float32)
        lw1 = scale * jax.random.normal(ks[4], (DFF, C), jnp.float32)
        lb1 = scale * jax.random.normal(ks[5], (DFF,), jnp.float32)
        lw2 = scale * jax.random.normal(ks[6], (C, DFF), jnp.float32)
        lb2 = scale * jax.random.normal(ks[7], (C,), jnp.float32)
        # pre-transposed so the kernel does x @ W (== torch x @ W.T);
        # Q|K|V weights are packed into a single (C, 3C) matrix.
        acc["wqkv"].append(in_proj_w.T)
        acc["bqkv"].append(in_proj_b.reshape(1, 3 * C))
        acc["wo"].append(out_w.T);  acc["bo"].append(out_b.reshape(1, C))
        acc["w1"].append(lw1.T);    acc["b1"].append(lb1.reshape(1, DFF))
        acc["w2"].append(lw2.T);    acc["b2"].append(lb2.reshape(1, C))
        acc["g1"].append(1.0 + 0.1 * jax.random.normal(ks[8], (1, C), jnp.float32))
        acc["be1"].append(0.1 * jax.random.normal(ks[9], (1, C), jnp.float32))
        acc["g2"].append(1.0 + 0.1 * jax.random.normal(ks[10], (1, C), jnp.float32))
        acc["be2"].append(0.1 * jax.random.normal(ks[11], (1, C), jnp.float32))

    params = {k: jnp.stack(v, axis=0) for k, v in acc.items()}   # leading layer dim
    params["conv_w_flat"] = conv_w.reshape(C, 3 * PATCH * PATCH).T   # (K, C)
    params["conv_b"] = conv_b.reshape(1, C)
    return params


def _block_diag_mask(B, S):
    ids = np.arange(B * S) // S
    return jnp.asarray(
        np.where(ids[:, None] == ids[None, :], 0.0, NEG_INF).astype(np.float32))


def vit_forward(x_img, params):
    patches, hp, wp = extract_patches(x_img)               # (B, S, K)
    B, S, K = patches.shape
    C = CHANNELS
    # bf16 at the dot boundary: MXU operands (patches + all weight matrices)
    # are pre-cast once in the wrapper; biases / LN params / PE stay f32.
    patches_flat = patches.reshape(B * S, K).astype(jnp.bfloat16)
    pe_flat = jnp.tile(sinusoidal_pe(S, C), (B, 1))        # (B*S, C), batch-major, f32
    mask = _block_diag_mask(B, S)                          # (B*S, B*S) additive mask

    bf = jnp.bfloat16
    operands = (patches_flat, mask,
                params["conv_w_flat"].astype(bf), params["conv_b"], pe_flat,
                params["wqkv"].astype(bf), params["bqkv"],
                params["wo"].astype(bf), params["bo"],
                params["w1"].astype(bf), params["b1"],
                params["w2"].astype(bf), params["b2"],
                params["g1"], params["be1"], params["g2"], params["be2"])
    in_specs = [_full_spec(op.shape) for op in operands]

    out = pl.pallas_call(
        partial(vit_fused_kernel, layers=LAYERS, heads=HEADS),
        out_shape=jax.ShapeDtypeStruct((B * S, C), jnp.float32),
        grid=(1,),                                          # single fused invocation
        in_specs=in_specs,
        out_specs=pl.BlockSpec((B * S, C), lambda i: (0, 0)),
        compiler_params=pltpu.CompilerParams(dimension_semantics=("arbitrary",)),
    )(*operands)

    e = out.reshape(B, S, C)
    # == x.permute(1, 2, 0).view(b, -1, h, w) on the torch (seq, batch, chan) output
    x_dense = e.transpose(0, 2, 1).reshape(B, C, hp, wp)
    x_single = None                                         # compute_single=False
    return x_dense, x_single


# Pure-JAX f32 reference (same math, no Pallas, no bf16) for a correctness check.
def ref_forward(x_img, params):
    patches, hp, wp = extract_patches(x_img)
    B, S, K = patches.shape
    C = CHANNELS
    pe = sinusoidal_pe(S, C)
    e = patches @ params["conv_w_flat"] + params["conv_b"] + pe
    dh = C // HEADS
    for li in range(LAYERS):
        qkv = e @ params["wqkv"][li] + params["bqkv"][li]
        q, k, v = qkv[..., :C], qkv[..., C:2 * C], qkv[..., 2 * C:]
        qh = q.reshape(B, S, HEADS, dh)
        kh = k.reshape(B, S, HEADS, dh)
        vh = v.reshape(B, S, HEADS, dh)
        s = jnp.einsum("bqhd,bkhd->bhqk", qh, kh) / math.sqrt(dh)
        a = jax.nn.softmax(s, axis=-1)
        o = jnp.einsum("bhqk,bkhd->bqhd", a, vh).reshape(B, S, C)
        o = o @ params["wo"][li] + params["bo"][li]
        y = e + o
        mu = jnp.mean(y, -1, keepdims=True)
        var = jnp.mean((y - mu) ** 2, -1, keepdims=True)
        y = (y - mu) * lax.rsqrt(var + LN_EPS) * params["g1"][li] + params["be1"][li]
        ff = (jnp.maximum(y @ params["w1"][li] + params["b1"][li], 0.0)
              @ params["w2"][li] + params["b2"][li])
        z = y + ff
        mu = jnp.mean(z, -1, keepdims=True)
        var = jnp.mean((z - mu) ** 2, -1, keepdims=True)
        e = (z - mu) * lax.rsqrt(var + LN_EPS) * params["g2"][li] + params["be2"][li]
    return e.transpose(0, 2, 1).reshape(B, C, hp, wp), None


if __name__ == "__main__":
    key = jax.random.PRNGKey(0)
    kx, kp = jax.random.split(key)
    x = jax.random.normal(kx, (BATCH, 3, IMG, IMG), jnp.float32)   # NCHW image
    params = make_params(kp)

    fwd = jax.jit(vit_forward)
    x_dense, x_single = fwd(x, params)
    x_dense = jax.block_until_ready(x_dense)

    ref_dense, _ = ref_forward(x, params)
    assert x_dense.shape == (BATCH, CHANNELS, IMG // PATCH, IMG // PATCH)
    # Softmax is exact; the only deviation from the f32 reference is bf16 at the
    # MXU dot boundary (~0.4% relative per dot). Structural errors are O(0.1+).
    assert np.allclose(np.asarray(x_dense), np.asarray(ref_dense),
                       atol=3e-2, rtol=3e-2)
    assert x_single is None
    print("KERNEL_OK")
</pallas_src>

<mosaic_0001>
module attributes {stable_mosaic.version = 11 : i64} {
  func.func @vit_fused_kernel(%arg0: i32, %arg1: memref<32x192xbf16, #tpu.memory_space<vmem>>, %arg2: memref<32x32xf32, #tpu.memory_space<vmem>>, %arg3: memref<192x32xbf16, #tpu.memory_space<vmem>>, %arg4: memref<1x32xf32, #tpu.memory_space<vmem>>, %arg5: memref<32x32xf32, #tpu.memory_space<vmem>>, %arg6: memref<2x32x96xbf16, #tpu.memory_space<vmem>>, %arg7: memref<2x1x96xf32, #tpu.memory_space<vmem>>, %arg8: memref<2x32x32xbf16, #tpu.memory_space<vmem>>, %arg9: memref<2x1x32xf32, #tpu.memory_space<vmem>>, %arg10: memref<2x32x32xbf16, #tpu.memory_space<vmem>>, %arg11: memref<2x1x32xf32, #tpu.memory_space<vmem>>, %arg12: memref<2x32x32xbf16, #tpu.memory_space<vmem>>, %arg13: memref<2x1x32xf32, #tpu.memory_space<vmem>>, %arg14: memref<2x1x32xf32, #tpu.memory_space<vmem>>, %arg15: memref<2x1x32xf32, #tpu.memory_space<vmem>>, %arg16: memref<2x1x32xf32, #tpu.memory_space<vmem>>, %arg17: memref<2x1x32xf32, #tpu.memory_space<vmem>>, %arg18: memref<32x32xf32, #tpu.memory_space<vmem>>) attributes {dimension_semantics = [#tpu.dimension_semantics<arbitrary>], iteration_bounds = array<i64: 1>, scalar_prefetch = 0 : i64, scratch_operands = 0 : i64, tpu.core_type = #tpu.core_type<tc>, window_params = [{pipeline_mode = #tpu.pipeline_mode<synchronous>, transform_indices = @transform_0, window_bounds = array<i64: 32, 192>}, {pipeline_mode = #tpu.pipeline_mode<synchronous>, transform_indices = @transform_1, window_bounds = array<i64: 32, 32>}, {pipeline_mode = #tpu.pipeline_mode<synchronous>, transform_indices = @transform_2, window_bounds = array<i64: 192, 32>}, {pipeline_mode = #tpu.pipeline_mode<synchronous>, transform_indices = @transform_3, window_bounds = array<i64: 1, 32>}, {pipeline_mode = #tpu.pipeline_mode<synchronous>, transform_indices = @transform_4, window_bounds = array<i64: 32, 32>}, {pipeline_mode = #tpu.pipeline_mode<synchronous>, transform_indices = @transform_5, window_bounds = array<i64: 2, 32, 96>}, {pipeline_mode = #tpu.pipeline_mode<synchronous>, transform_indices = @transform_6, window_bounds = array<i64: 2, 1, 96>}, {pipeline_mode = #tpu.pipeline_mode<synchronous>, transform_indices = @transform_7, window_bounds = array<i64: 2, 32, 32>}, {pipeline_mode = #tpu.pipeline_mode<synchronous>, transform_indices = @transform_8, window_bounds = array<i64: 2, 1, 32>}, {pipeline_mode = #tpu.pipeline_mode<synchronous>, transform_indices = @transform_9, window_bounds = array<i64: 2, 32, 32>}, {pipeline_mode = #tpu.pipeline_mode<synchronous>, transform_indices = @transform_10, window_bounds = array<i64: 2, 1, 32>}, {pipeline_mode = #tpu.pipeline_mode<synchronous>, transform_indices = @transform_11, window_bounds = array<i64: 2, 32, 32>}, {pipeline_mode = #tpu.pipeline_mode<synchronous>, transform_indices = @transform_12, window_bounds = array<i64: 2, 1, 32>}, {pipeline_mode = #tpu.pipeline_mode<synchronous>, transform_indices = @transform_13, window_bounds = array<i64: 2, 1, 32>}, {pipeline_mode = #tpu.pipeline_mode<synchronous>, transform_indices = @transform_14, window_bounds = array<i64: 2, 1, 32>}, {pipeline_mode = #tpu.pipeline_mode<synchronous>, transform_indices = @transform_15, window_bounds = array<i64: 2, 1, 32>}, {pipeline_mode = #tpu.pipeline_mode<synchronous>, transform_indices = @transform_16, window_bounds = array<i64: 2, 1, 32>}, {pipeline_mode = #tpu.pipeline_mode<synchronous>, transform_indices = @transform_17, window_bounds = array<i64: 32, 32>}]} {
    %c0 = arith.constant 0 : index
    %c0_0 = arith.constant 0 : index
    %0 = vector.load %arg1[%c0, %c0_0] : memref<32x192xbf16, #tpu.memory_space<vmem>>, vector<32x192xbf16>
    %c0_1 = arith.constant 0 : index
    %c0_2 = arith.constant 0 : index
    %1 = vector.load %arg3[%c0_1, %c0_2] : memref<192x32xbf16, #tpu.memory_space<vmem>>, vector<192x32xbf16>
    %cst = arith.constant dense<0.000000e+00> : vector<32x32xf32>
    %2 = tpu.matmul %0, %1, %cst {dimension_numbers = #tpu.dot_dimension_numbers<[1], [0], [0], [1], [0, 0, 1, 1], [], []>} : vector<32x192xbf16>, vector<192x32xbf16>, vector<32x32xf32> -> vector<32x32xf32>
    %c0_3 = arith.constant 0 : index
    %c0_4 = arith.constant 0 : index
    %3 = vector.load %arg4[%c0_3, %c0_4] : memref<1x32xf32, #tpu.memory_space<vmem>>, vector<1x32xf32>
    %4 = vector.broadcast %3 : vector<1x32xf32> to vector<32x32xf32>
    %5 = arith.addf %2, %4 : vector<32x32xf32>
    %c0_5 = arith.constant 0 : index
    %c0_6 = arith.constant 0 : index
    %6 = vector.load %arg5[%c0_5, %c0_6] : memref<32x32xf32, #tpu.memory_space<vmem>>, vector<32x32xf32>
    %7 = arith.addf %5, %6 : vector<32x32xf32>
    %c0_7 = arith.constant 0 : index
    %c0_8 = arith.constant 0 : index
    %8 = vector.load %arg2[%c0_7, %c0_8] : memref<32x32xf32, #tpu.memory_space<vmem>>, vector<32x32xf32>
    %c0_9 = arith.constant 0 : index
    %c0_10 = arith.constant 0 : index
    %c0_11 = arith.constant 0 : index
    %9 = vector.load %arg6[%c0_9, %c0_10, %c0_11] : memref<2x32x96xbf16, #tpu.memory_space<vmem>>, vector<1x32x96xbf16>
    %10 = vector.shape_cast %9 : vector<1x32x96xbf16> to vector<32x96xbf16>
    %c0_12 = arith.constant 0 : index
    %c0_13 = arith.constant 0 : index
    %c0_14 = arith.constant 0 : index
    %11 = vector.load %arg7[%c0_12, %c0_13, %c0_14] : memref<2x1x96xf32, #tpu.memory_space<vmem>>, vector<1x1x96xf32>
    %12 = vector.shape_cast %11 : vector<1x1x96xf32> to vector<1x96xf32>
    %c0_15 = arith.constant 0 : index
    %c0_16 = arith.constant 0 : index
    %c0_17 = arith.constant 0 : index
    %13 = vector.load %arg8[%c0_15, %c0_16, %c0_17] : memref<2x32x32xbf16, #tpu.memory_space<vmem>>, vector<1x32x32xbf16>
    %14 = vector.shape_cast %13 : vector<1x32x32xbf16> to vector<32x32xbf16>
    %c0_18 = arith.constant 0 : index
    %c0_19 = arith.constant 0 : index
    %c0_20 = arith.constant 0 : index
    %15 = vector.load %arg9[%c0_18, %c0_19, %c0_20] : memref<2x1x32xf32, #tpu.memory_space<vmem>>, vector<1x1x32xf32>
    %16 = vector.shape_cast %15 : vector<1x1x32xf32> to vector<1x32xf32>
    %c0_21 = arith.constant 0 : index
    %c0_22 = arith.constant 0 : index
    %c0_23 = arith.constant 0 : index
    %17 = vector.load %arg10[%c0_21, %c0_22, %c0_23] : memref<2x32x32xbf16, #tpu.memory_space<vmem>>, vector<1x32x32xbf16>
    %18 = vector.shape_cast %17 : vector<1x32x32xbf16> to vector<32x32xbf16>
    %c0_24 = arith.constant 0 : index
    %c0_25 = arith.constant 0 : index
    %c0_26 = arith.constant 0 : index
    %19 = vector.load %arg11[%c0_24, %c0_25, %c0_26] : memref<2x1x32xf32, #tpu.memory_space<vmem>>, vector<1x1x32xf32>
    %20 = vector.shape_cast %19 : vector<1x1x32xf32> to vector<1x32xf32>
    %c0_27 = arith.constant 0 : index
    %c0_28 = arith.constant 0 : index
    %c0_29 = arith.constant 0 : index
    %21 = vector.load %arg12[%c0_27, %c0_28, %c0_29] : memref<2x32x32xbf16, #tpu.memory_space<vmem>>, vector<1x32x32xbf16>
    %22 = vector.shape_cast %21 : vector<1x32x32xbf16> to vector<32x32xbf16>
    %c0_30 = arith.constant 0 : index
    %c0_31 = arith.constant 0 : index
    %c0_32 = arith.constant 0 : index
    %23 = vector.load %arg13[%c0_30, %c0_31, %c0_32] : memref<2x1x32xf32, #tpu.memory_space<vmem>>, vector<1x1x32xf32>
    %24 = vector.shape_cast %23 : vector<1x1x32xf32> to vector<1x32xf32>
    %c0_33 = arith.constant 0 : index
    %c0_34 = arith.constant 0 : index
    %c0_35 = arith.constant 0 : index
    %25 = vector.load %arg14[%c0_33, %c0_34, %c0_35] : memref<2x1x32xf32, #tpu.memory_space<vmem>>, vector<1x1x32xf32>
    %26 = vector.shape_cast %25 : vector<1x1x32xf32> to vector<1x32xf32>
    %c0_36 = arith.constant 0 : index
    %c0_37 = arith.constant 0 : index
    %c0_38 = arith.constant 0 : index
    %27 = vector.load %arg15[%c0_36, %c0_37, %c0_38] : memref<2x1x32xf32, #tpu.memory_space<vmem>>, vector<1x1x32xf32>
    %28 = vector.shape_cast %27 : vector<1x1x32xf32> to vector<1x32xf32>
    %c0_39 = arith.constant 0 : index
    %c0_40 = arith.constant 0 : index
    %c0_41 = arith.constant 0 : index
    %29 = vector.load %arg16[%c0_39, %c0_40, %c0_41] : memref<2x1x32xf32, #tpu.memory_space<vmem>>, vector<1x1x32xf32>
    %30 = vector.shape_cast %29 : vector<1x1x32xf32> to vector<1x32xf32>
    %c0_42 = arith.constant 0 : index
    %c0_43 = arith.constant 0 : index
    %c0_44 = arith.constant 0 : index
    %31 = vector.load %arg17[%c0_42, %c0_43, %c0_44] : memref<2x1x32xf32, #tpu.memory_space<vmem>>, vector<1x1x32xf32>
    %32 = vector.shape_cast %31 : vector<1x1x32xf32> to vector<1x32xf32>
    %33 = arith.truncf %7 : vector<32x32xf32> to vector<32x32xbf16>
    %cst_45 = arith.constant dense<0.000000e+00> : vector<32x96xf32>
    %34 = tpu.matmul %33, %10, %cst_45 {dimension_numbers = #tpu.dot_dimension_numbers<[1], [0], [0], [1], [0, 0, 1, 1], [], []>} : vector<32x32xbf16>, vector<32x96xbf16>, vector<32x96xf32> -> vector<32x96xf32>
    %35 = vector.broadcast %12 : vector<1x96xf32> to vector<32x96xf32>
    %36 = arith.addf %34, %35 : vector<32x96xf32>
    %37 = arith.truncf %36 : vector<32x96xf32> to vector<32x96xbf16>
    %38 = vector.extract_strided_slice %37 {offsets = [0, 0], sizes = [32, 8], strides = [1, 1]} : vector<32x96xbf16> to vector<32x8xbf16>
    %39 = vector.extract_strided_slice %37 {offsets = [0, 32], sizes = [32, 8], strides = [1, 1]} : vector<32x96xbf16> to vector<32x8xbf16>
    %40 = vector.extract_strided_slice %37 {offsets = [0, 64], sizes = [32, 8], strides = [1, 1]} : vector<32x96xbf16> to vector<32x8xbf16>
    %cst_46 = arith.constant dense<0.000000e+00> : vector<32x32xf32>
    %41 = tpu.matmul %38, %39, %cst_46 {dimension_numbers = #tpu.dot_dimension_numbers<[1], [1], [0], [0], [0, 0, 1, 0], [], []>} : vector<32x8xbf16>, vector<32x8xbf16>, vector<32x32xf32> -> vector<32x32xf32>
    %cst_47 = arith.constant 0.353553385 : f32
    %42 = vector.broadcast %cst_47 : f32 to vector<32x32xf32>
    %43 = arith.mulf %41, %42 : vector<32x32xf32>
    %44 = arith.addf %43, %8 : vector<32x32xf32>
    %cst_48 = arith.constant dense<0xFF800000> : vector<32xf32>
    %45 = vector.multi_reduction <maximumf>, %44, %cst_48 [1] : vector<32x32xf32> to vector<32xf32>
    %46 = vector.shape_cast %45 : vector<32xf32> to vector<32x1xf32>
    %47 = vector.broadcast %46 : vector<32x1xf32> to vector<32x32xf32>
    %48 = arith.subf %44, %47 : vector<32x32xf32>
    %49 = math.exp %48 : vector<32x32xf32>
    %cst_49 = arith.constant dense<0.000000e+00> : vector<32xf32>
    %50 = vector.multi_reduction <add>, %49, %cst_49 [1] : vector<32x32xf32> to vector<32xf32>
    %51 = vector.shape_cast %50 : vector<32xf32> to vector<32x1xf32>
    %52 = vector.broadcast %51 : vector<32x1xf32> to vector<32x32xf32>
    %53 = arith.divf %49, %52 : vector<32x32xf32>
    %54 = arith.truncf %53 : vector<32x32xf32> to vector<32x32xbf16>
    %cst_50 = arith.constant dense<0.000000e+00> : vector<32x8xf32>
    %55 = tpu.matmul %54, %40, %cst_50 {dimension_numbers = #tpu.dot_dimension_numbers<[1], [0], [0], [1], [0, 0, 1, 1], [], []>} : vector<32x32xbf16>, vector<32x8xbf16>, vector<32x8xf32> -> vector<32x8xf32>
    %56 = arith.truncf %55 : vector<32x8xf32> to vector<32x8xbf16>
    %57 = vector.extract_strided_slice %14 {offsets = [0, 0], sizes = [8, 32], strides = [1, 1]} : vector<32x32xbf16> to vector<8x32xbf16>
    %cst_51 = arith.constant dense<0.000000e+00> : vector<32x32xf32>
    %58 = tpu.matmul %56, %57, %cst_51 {dimension_numbers = #tpu.dot_dimension_numbers<[1], [0], [0], [1], [0, 0, 1, 1], [], []>} : vector<32x8xbf16>, vector<8x32xbf16>, vector<32x32xf32> -> vector<32x32xf32>
    %59 = vector.extract_strided_slice %37 {offsets = [0, 8], sizes = [32, 8], strides = [1, 1]} : vector<32x96xbf16> to vector<32x8xbf16>
    %60 = vector.extract_strided_slice %37 {offsets = [0, 40], sizes = [32, 8], strides = [1, 1]} : vector<32x96xbf16> to vector<32x8xbf16>
    %61 = vector.extract_strided_slice %37 {offsets = [0, 72], sizes = [32, 8], strides = [1, 1]} : vector<32x96xbf16> to vector<32x8xbf16>
    %cst_52 = arith.constant dense<0.000000e+00> : vector<32x32xf32>
    %62 = tpu.matmul %59, %60, %cst_52 {dimension_numbers = #tpu.dot_dimension_numbers<[1], [1], [0], [0], [0, 0, 1, 0], [], []>} : vector<32x8xbf16>, vector<32x8xbf16>, vector<32x32xf32> -> vector<32x32xf32>
    %cst_53 = arith.constant 0.353553385 : f32
    %63 = vector.broadcast %cst_53 : f32 to vector<32x32xf32>
    %64 = arith.mulf %62, %63 : vector<32x32xf32>
    %65 = arith.addf %64, %8 : vector<32x32xf32>
    %cst_54 = arith.constant dense<0xFF800000> : vector<32xf32>
    %66 = vector.multi_reduction <maximumf>, %65, %cst_54 [1] : vector<32x32xf32> to vector<32xf32>
    %67 = vector.shape_cast %66 : vector<32xf32> to vector<32x1xf32>
    %68 = vector.broadcast %67 : vector<32x1xf32> to vector<32x32xf32>
    %69 = arith.subf %65, %68 : vector<32x32xf32>
    %70 = math.exp %69 : vector<32x32xf32>
    %cst_55 = arith.constant dense<0.000000e+00> : vector<32xf32>
    %71 = vector.multi_reduction <add>, %70, %cst_55 [1] : vector<32x32xf32> to vector<32xf32>
    %72 = vector.shape_cast %71 : vector<32xf32> to vector<32x1xf32>
    %73 = vector.broadcast %72 : vector<32x1xf32> to vector<32x32xf32>
    %74 = arith.divf %70, %73 : vector<32x32xf32>
    %75 = arith.truncf %74 : vector<32x32xf32> to vector<32x32xbf16>
    %cst_56 = arith.constant dense<0.000000e+00> : vector<32x8xf32>
    %76 = tpu.matmul %75, %61, %cst_56 {dimension_numbers = #tpu.dot_dimension_numbers<[1], [0], [0], [1], [0, 0, 1, 1], [], []>} : vector<32x32xbf16>, vector<32x8xbf16>, vector<32x8xf32> -> vector<32x8xf32>
    %77 = arith.truncf %76 : vector<32x8xf32> to vector<32x8xbf16>
    %78 = vector.extract_strided_slice %14 {offsets = [8, 0], sizes = [8, 32], strides = [1, 1]} : vector<32x32xbf16> to vector<8x32xbf16>
    %cst_57 = arith.constant dense<0.000000e+00> : vector<32x32xf32>
    %79 = tpu.matmul %77, %78, %cst_57 {dimension_numbers = #tpu.dot_dimension_numbers<[1], [0], [0], [1], [0, 0, 1, 1], [], []>} : vector<32x8xbf16>, vector<8x32xbf16>, vector<32x32xf32> -> vector<32x32xf32>
    %80 = arith.addf %58, %79 : vector<32x32xf32>
    %81 = vector.extract_strided_slice %37 {offsets = [0, 16], sizes = [32, 8], strides = [1, 1]} : vector<32x96xbf16> to vector<32x8xbf16>
    %82 = vector.extract_strided_slice %37 {offsets = [0, 48], sizes = [32, 8], strides = [1, 1]} : vector<32x96xbf16> to vector<32x8xbf16>
    %83 = vector.extract_strided_slice %37 {offsets = [0, 80], sizes = [32, 8], strides = [1, 1]} : vector<32x96xbf16> to vector<32x8xbf16>
    %cst_58 = arith.constant dense<0.000000e+00> : vector<32x32xf32>
    %84 = tpu.matmul %81, %82, %cst_58 {dimension_numbers = #tpu.dot_dimension_numbers<[1], [1], [0], [0], [0, 0, 1, 0], [], []>} : vector<32x8xbf16>, vector<32x8xbf16>, vector<32x32xf32> -> vector<32x32xf32>
    %cst_59 = arith.constant 0.353553385 : f32
    %85 = vector.broadcast %cst_59 : f32 to vector<32x32xf32>
    %86 = arith.mulf %84, %85 : vector<32x32xf32>
    %87 = arith.addf %86, %8 : vector<32x32xf32>
    %cst_60 = arith.constant dense<0xFF800000> : vector<32xf32>
    %88 = vector.multi_reduction <maximumf>, %87, %cst_60 [1] : vector<32x32xf32> to vector<32xf32>
    %89 = vector.shape_cast %88 : vector<32xf32> to vector<32x1xf32>
    %90 = vector.broadcast %89 : vector<32x1xf32> to vector<32x32xf32>
    %91 = arith.subf %87, %90 : vector<32x32xf32>
    %92 = math.exp %91 : vector<32x32xf32>
    %cst_61 = arith.constant dense<0.000000e+00> : vector<32xf32>
    %93 = vector.multi_reduction <add>, %92, %cst_61 [1] : vector<32x32xf32> to vector<32xf32>
    %94 = vector.shape_cast %93 : vector<32xf32> to vector<32x1xf32>
    %95 = vector.broadcast %94 : vector<32x1xf32> to vector<32x32xf32>
    %96 = arith.divf %92, %95 : vector<32x32xf32>
    %97 = arith.truncf %96 : vector<32x32xf32> to vector<32x32xbf16>
    %cst_62 = arith.constant dense<0.000000e+00> : vector<32x8xf32>
    %98 = tpu.matmul %97, %83, %cst_62 {dimension_numbers = #tpu.dot_dimension_numbers<[1], [0], [0], [1], [0, 0, 1, 1], [], []>} : vector<32x32xbf16>, vector<32x8xbf16>, vector<32x8xf32> -> vector<32x8xf32>
    %99 = arith.truncf %98 : vector<32x8xf32> to vector<32x8xbf16>
    %100 = vector.extract_strided_slice %14 {offsets = [16, 0], sizes = [8, 32], strides = [1, 1]} : vector<32x32xbf16> to vector<8x32xbf16>
    %cst_63 = arith.constant dense<0.000000e+00> : vector<32x32xf32>
    %101 = tpu.matmul %99, %100, %cst_63 {dimension_numbers = #tpu.dot_dimension_numbers<[1], [0], [0], [1], [0, 0, 1, 1], [], []>} : vector<32x8xbf16>, vector<8x32xbf16>, vector<32x32xf32> -> vector<32x32xf32>
    %102 = arith.addf %80, %101 : vector<32x32xf32>
    %103 = vector.extract_strided_slice %37 {offsets = [0, 24], sizes = [32, 8], strides = [1, 1]} : vector<32x96xbf16> to vector<32x8xbf16>
    %104 = vector.extract_strided_slice %37 {offsets = [0, 56], sizes = [32, 8], strides = [1, 1]} : vector<32x96xbf16> to vector<32x8xbf16>
    %105 = vector.extract_strided_slice %37 {offsets = [0, 88], sizes = [32, 8], strides = [1, 1]} : vector<32x96xbf16> to vector<32x8xbf16>
    %cst_64 = arith.constant dense<0.000000e+00> : vector<32x32xf32>
    %106 = tpu.matmul %103, %104, %cst_64 {dimension_numbers = #tpu.dot_dimension_numbers<[1], [1], [0], [0], [0, 0, 1, 0], [], []>} : vector<32x8xbf16>, vector<32x8xbf16>, vector<32x32xf32> -> vector<32x32xf32>
    %cst_65 = arith.constant 0.353553385 : f32
    %107 = vector.broadcast %cst_65 : f32 to vector<32x32xf32>
    %108 = arith.mulf %106, %107 : vector<32x32xf32>
    %109 = arith.addf %108, %8 : vector<32x32xf32>
    %cst_66 = arith.constant dense<0xFF800000> : vector<32xf32>
    %110 = vector.multi_reduction <maximumf>, %109, %cst_66 [1] : vector<32x32xf32> to vector<32xf32>
    %111 = vector.shape_cast %110 : vector<32xf32> to vector<32x1xf32>
    %112 = vector.broadcast %111 : vector<32x1xf32> to vector<32x32xf32>
    %113 = arith.subf %109, %112 : vector<32x32xf32>
    %114 = math.exp %113 : vector<32x32xf32>
    %cst_67 = arith.constant dense<0.000000e+00> : vector<32xf32>
    %115 = vector.multi_reduction <add>, %114, %cst_67 [1] : vector<32x32xf32> to vector<32xf32>
    %116 = vector.shape_cast %115 : vector<32xf32> to vector<32x1xf32>
    %117 = vector.broadcast %116 : vector<32x1xf32> to vector<32x32xf32>
    %118 = arith.divf %114, %117 : vector<32x32xf32>
    %119 = arith.truncf %118 : vector<32x32xf32> to vector<32x32xbf16>
    %cst_68 = arith.constant dense<0.000000e+00> : vector<32x8xf32>
    %120 = tpu.matmul %119, %105, %cst_68 {dimension_numbers = #tpu.dot_dimension_numbers<[1], [0], [0], [1], [0, 0, 1, 1], [], []>} : vector<32x32xbf16>, vector<32x8xbf16>, vector<32x8xf32> -> vector<32x8xf32>
    %121 = arith.truncf %120 : vector<32x8xf32> to vector<32x8xbf16>
    %122 = vector.extract_strided_slice %14 {offsets = [24, 0], sizes = [8, 32], strides = [1, 1]} : vector<32x32xbf16> to vector<8x32xbf16>
    %cst_69 = arith.constant dense<0.000000e+00> : vector<32x32xf32>
    %123 = tpu.matmul %121, %122, %cst_69 {dimension_numbers = #tpu.dot_dimension_numbers<[1], [0], [0], [1], [0, 0, 1, 1], [], []>} : vector<32x8xbf16>, vector<8x32xbf16>, vector<32x32xf32> -> vector<32x32xf32>
    %124 = arith.addf %102, %123 : vector<32x32xf32>
    %125 = vector.broadcast %16 : vector<1x32xf32> to vector<32x32xf32>
    %126 = arith.addf %124, %125 : vector<32x32xf32>
    %127 = arith.addf %7, %126 : vector<32x32xf32>
    %cst_70 = arith.constant dense<0.000000e+00> : vector<32xf32>
    %128 = vector.multi_reduction <add>, %127, %cst_70 [1] : vector<32x32xf32> to vector<32xf32>
    %129 = vector.shape_cast %128 : vector<32xf32> to vector<32x1xf32>
    %cst_71 = arith.constant 3.200000e+01 : f32
    %130 = vector.broadcast %cst_71 : f32 to vector<32x1xf32>
    %131 = arith.divf %129, %130 : vector<32x1xf32>
    %132 = vector.broadcast %131 : vector<32x1xf32> to vector<32x32xf32>
    %133 = arith.subf %127, %132 : vector<32x32xf32>
    %134 = arith.mulf %133, %133 : vector<32x32xf32>
    %cst_72 = arith.constant dense<0.000000e+00> : vector<32xf32>
    %135 = vector.multi_reduction <add>, %134, %cst_72 [1] : vector<32x32xf32> to vector<32xf32>
    %136 = vector.shape_cast %135 : vector<32xf32> to vector<32x1xf32>
    %cst_73 = arith.constant 3.200000e+01 : f32
    %137 = vector.broadcast %cst_73 : f32 to vector<32x1xf32>
    %138 = arith.divf %136, %137 : vector<32x1xf32>
    %139 = vector.broadcast %131 : vector<32x1xf32> to vector<32x32xf32>
    %140 = arith.subf %127, %139 : vector<32x32xf32>
    %cst_74 = arith.constant 9.99999974E-6 : f32
    %141 = vector.broadcast %cst_74 : f32 to vector<32x1xf32>
    %142 = arith.addf %138, %141 : vector<32x1xf32>
    %143 = math.rsqrt %142 : vector<32x1xf32>
    %144 = vector.broadcast %143 : vector<32x1xf32> to vector<32x32xf32>
    %145 = arith.mulf %140, %144 : vector<32x32xf32>
    %146 = vector.broadcast %26 : vector<1x32xf32> to vector<32x32xf32>
    %147 = arith.mulf %145, %146 : vector<32x32xf32>
    %148 = vector.broadcast %28 : vector<1x32xf32> to vector<32x32xf32>
    %149 = arith.addf %147, %148 : vector<32x32xf32>
    %150 = arith.truncf %149 : vector<32x32xf32> to vector<32x32xbf16>
    %cst_75 = arith.constant dense<0.000000e+00> : vector<32x32xf32>
    %151 = tpu.matmul %150, %18, %cst_75 {dimension_numbers = #tpu.dot_dimension_numbers<[1], [0], [0], [1], [0, 0, 1, 1], [], []>} : vector<32x32xbf16>, vector<32x32xbf16>, vector<32x32xf32> -> vector<32x32xf32>
    %152 = vector.broadcast %20 : vector<1x32xf32> to vector<32x32xf32>
    %153 = arith.addf %151, %152 : vector<32x32xf32>
    %cst_76 = arith.constant 0.000000e+00 : f32
    %154 = vector.broadcast %cst_76 : f32 to vector<32x32xf32>
    %155 = arith.maximumf %153, %154 : vector<32x32xf32>
    %156 = arith.truncf %155 : vector<32x32xf32> to vector<32x32xbf16>
    %cst_77 = arith.constant dense<0.000000e+00> : vector<32x32xf32>
    %157 = tpu.matmul %156, %22, %cst_77 {dimension_numbers = #tpu.dot_dimension_numbers<[1], [0], [0], [1], [0, 0, 1, 1], [], []>} : vector<32x32xbf16>, vector<32x32xbf16>, vector<32x32xf32> -> vector<32x32xf32>
    %158 = vector.broadcast %24 : vector<1x32xf32> to vector<32x32xf32>
    %159 = arith.addf %157, %158 : vector<32x32xf32>
    %160 = arith.addf %149, %159 : vector<32x32xf32>
    %cst_78 = arith.constant dense<0.000000e+00> : vector<32xf32>
    %161 = vector.multi_reduction <add>, %160, %cst_78 [1] : vector<32x32xf32> to vector<32xf32>
    %162 = vector.shape_cast %161 : vector<32xf32> to vector<32x1xf32>
    %cst_79 = arith.constant 3.200000e+01 : f32
    %163 = vector.broadcast %cst_79 : f32 to vector<32x1xf32>
    %164 = arith.divf %162, %163 : vector<32x1xf32>
    %165 = vector.broadcast %164 : vector<32x1xf32> to vector<32x32xf32>
    %166 = arith.subf %160, %165 : vector<32x32xf32>
    %167 = arith.mulf %166, %166 : vector<32x32xf32>
    %cst_80 = arith.constant dense<0.000000e+00> : vector<32xf32>
    %168 = vector.multi_reduction <add>, %167, %cst_80 [1] : vector<32x32xf32> to vector<32xf32>
    %169 = vector.shape_cast %168 : vector<32xf32> to vector<32x1xf32>
    %cst_81 = arith.constant 3.200000e+01 : f32
    %170 = vector.broadcast %cst_81 : f32 to vector<32x1xf32>
    %171 = arith.divf %169, %170 : vector<32x1xf32>
    %172 = vector.broadcast %164 : vector<32x1xf32> to vector<32x32xf32>
    %173 = arith.subf %160, %172 : vector<32x32xf32>
    %cst_82 = arith.constant 9.99999974E-6 : f32
    %174 = vector.broadcast %cst_82 : f32 to vector<32x1xf32>
    %175 = arith.addf %171, %174 : vector<32x1xf32>
    %176 = math.rsqrt %175 : vector<32x1xf32>
    %177 = vector.broadcast %176 : vector<32x1xf32> to vector<32x32xf32>
    %178 = arith.mulf %173, %177 : vector<32x32xf32>
    %179 = vector.broadcast %30 : vector<1x32xf32> to vector<32x32xf32>
    %180 = arith.mulf %178, %179 : vector<32x32xf32>
    %181 = vector.broadcast %32 : vector<1x32xf32> to vector<32x32xf32>
    %182 = arith.addf %180, %181 : vector<32x32xf32>
    %c1 = arith.constant 1 : index
    %c0_83 = arith.constant 0 : index
    %c0_84 = arith.constant 0 : index
    %183 = vector.load %arg6[%c1, %c0_83, %c0_84] : memref<2x32x96xbf16, #tpu.memory_space<vmem>>, vector<1x32x96xbf16>
    %184 = vector.shape_cast %183 : vector<1x32x96xbf16> to vector<32x96xbf16>
    %c1_85 = arith.constant 1 : index
    %c0_86 = arith.constant 0 : index
    %c0_87 = arith.constant 0 : index
    %185 = vector.load %arg7[%c1_85, %c0_86, %c0_87] : memref<2x1x96xf32, #tpu.memory_space<vmem>>, vector<1x1x96xf32>
    %186 = vector.shape_cast %185 : vector<1x1x96xf32> to vector<1x96xf32>
    %c1_88 = arith.constant 1 : index
    %c0_89 = arith.constant 0 : index
    %c0_90 = arith.constant 0 : index
    %187 = vector.load %arg8[%c1_88, %c0_89, %c0_90] : memref<2x32x32xbf16, #tpu.memory_space<vmem>>, vector<1x32x32xbf16>
    %188 = vector.shape_cast %187 : vector<1x32x32xbf16> to vector<32x32xbf16>
    %c1_91 = arith.constant 1 : index
    %c0_92 = arith.constant 0 : index
    %c0_93 = arith.constant 0 : index
    %189 = vector.load %arg9[%c1_91, %c0_92, %c0_93] : memref<2x1x32xf32, #tpu.memory_space<vmem>>, vector<1x1x32xf32>
    %190 = vector.shape_cast %189 : vector<1x1x32xf32> to vector<1x32xf32>
    %c1_94 = arith.constant 1 : index
    %c0_95 = arith.constant 0 : index
    %c0_96 = arith.constant 0 : index
    %191 = vector.load %arg10[%c1_94, %c0_95, %c0_96] : memref<2x32x32xbf16, #tpu.memory_space<vmem>>, vector<1x32x32xbf16>
    %192 = vector.shape_cast %191 : vector<1x32x32xbf16> to vector<32x32xbf16>
    %c1_97 = arith.constant 1 : index
    %c0_98 = arith.constant 0 : index
    %c0_99 = arith.constant 0 : index
    %193 = vector.load %arg11[%c1_97, %c0_98, %c0_99] : memref<2x1x32xf32, #tpu.memory_space<vmem>>, vector<1x1x32xf32>
    %194 = vector.shape_cast %193 : vector<1x1x32xf32> to vector<1x32xf32>
    %c1_100 = arith.constant 1 : index
    %c0_101 = arith.constant 0 : index
    %c0_102 = arith.constant 0 : index
    %195 = vector.load %arg12[%c1_100, %c0_101, %c0_102] : memref<2x32x32xbf16, #tpu.memory_space<vmem>>, vector<1x32x32xbf16>
    %196 = vector.shape_cast %195 : vector<1x32x32xbf16> to vector<32x32xbf16>
    %c1_103 = arith.constant 1 : index
    %c0_104 = arith.constant 0 : index
    %c0_105 = arith.constant 0 : index
    %197 = vector.load %arg13[%c1_103, %c0_104, %c0_105] : memref<2x1x32xf32, #tpu.memory_space<vmem>>, vector<1x1x32xf32>
    %198 = vector.shape_cast %197 : vector<1x1x32xf32> to vector<1x32xf32>
    %c1_106 = arith.constant 1 : index
    %c0_107 = arith.constant 0 : index
    %c0_108 = arith.constant 0 : index
    %199 = vector.load %arg14[%c1_106, %c0_107, %c0_108] : memref<2x1x32xf32, #tpu.memory_space<vmem>>, vector<1x1x32xf32>
    %200 = vector.shape_cast %199 : vector<1x1x32xf32> to vector<1x32xf32>
    %c1_109 = arith.constant 1 : index
    %c0_110 = arith.constant 0 : index
    %c0_111 = arith.constant 0 : index
    %201 = vector.load %arg15[%c1_109, %c0_110, %c0_111] : memref<2x1x32xf32, #tpu.memory_space<vmem>>, vector<1x1x32xf32>
    %202 = vector.shape_cast %201 : vector<1x1x32xf32> to vector<1x32xf32>
    %c1_112 = arith.constant 1 : index
    %c0_113 = arith.constant 0 : index
    %c0_114 = arith.constant 0 : index
    %203 = vector.load %arg16[%c1_112, %c0_113, %c0_114] : memref<2x1x32xf32, #tpu.memory_space<vmem>>, vector<1x1x32xf32>
    %204 = vector.shape_cast %203 : vector<1x1x32xf32> to vector<1x32xf32>
    %c1_115 = arith.constant 1 : index
    %c0_116 = arith.constant 0 : index
    %c0_117 = arith.constant 0 : index
    %205 = vector.load %arg17[%c1_115, %c0_116, %c0_117] : memref<2x1x32xf32, #tpu.memory_space<vmem>>, vector<1x1x32xf32>
    %206 = vector.shape_cast %205 : vector<1x1x32xf32> to vector<1x32xf32>
    %207 = arith.truncf %182 : vector<32x32xf32> to vector<32x32xbf16>
    %cst_118 = arith.constant dense<0.000000e+00> : vector<32x96xf32>
    %208 = tpu.matmul %207, %184, %cst_118 {dimension_numbers = #tpu.dot_dimension_numbers<[1], [0], [0], [1], [0, 0, 1, 1], [], []>} : vector<32x32xbf16>, vector<32x96xbf16>, vector<32x96xf32> -> vector<32x96xf32>
    %209 = vector.broadcast %186 : vector<1x96xf32> to vector<32x96xf32>
    %210 = arith.addf %208, %209 : vector<32x96xf32>
    %211 = arith.truncf %210 : vector<32x96xf32> to vector<32x96xbf16>
    %212 = vector.extract_strided_slice %211 {offsets = [0, 0], sizes = [32, 8], strides = [1, 1]} : vector<32x96xbf16> to vector<32x8xbf16>
    %213 = vector.extract_strided_slice %211 {offsets = [0, 32], sizes = [32, 8], strides = [1, 1]} : vector<32x96xbf16> to vector<32x8xbf16>
    %214 = vector.extract_strided_slice %211 {offsets = [0, 64], sizes = [32, 8], strides = [1, 1]} : vector<32x96xbf16> to vector<32x8xbf16>
    %cst_119 = arith.constant dense<0.000000e+00> : vector<32x32xf32>
    %215 = tpu.matmul %212, %213, %cst_119 {dimension_numbers = #tpu.dot_dimension_numbers<[1], [1], [0], [0], [0, 0, 1, 0], [], []>} : vector<32x8xbf16>, vector<32x8xbf16>, vector<32x32xf32> -> vector<32x32xf32>
    %cst_120 = arith.constant 0.353553385 : f32
    %216 = vector.broadcast %cst_120 : f32 to vector<32x32xf32>
    %217 = arith.mulf %215, %216 : vector<32x32xf32>
    %218 = arith.addf %217, %8 : vector<32x32xf32>
    %cst_121 = arith.constant dense<0xFF800000> : vector<32xf32>
    %219 = vector.multi_reduction <maximumf>, %218, %cst_121 [1] : vector<32x32xf32> to vector<32xf32>
    %220 = vector.shape_cast %219 : vector<32xf32> to vector<32x1xf32>
    %221 = vector.broadcast %220 : vector<32x1xf32> to vector<32x32xf32>
    %222 = arith.subf %218, %221 : vector<32x32xf32>
    %223 = math.exp %222 : vector<32x32xf32>
    %cst_122 = arith.constant dense<0.000000e+00> : vector<32xf32>
    %224 = vector.multi_reduction <add>, %223, %cst_122 [1] : vector<32x32xf32> to vector<32xf32>
    %225 = vector.shape_cast %224 : vector<32xf32> to vector<32x1xf32>
    %226 = vector.broadcast %225 : vector<32x1xf32> to vector<32x32xf32>
    %227 = arith.divf %223, %226 : vector<32x32xf32>
    %228 = arith.truncf %227 : vector<32x32xf32> to vector<32x32xbf16>
    %cst_123 = arith.constant dense<0.000000e+00> : vector<32x8xf32>
    %229 = tpu.matmul %228, %214, %cst_123 {dimension_numbers = #tpu.dot_dimension_numbers<[1], [0], [0], [1], [0, 0, 1, 1], [], []>} : vector<32x32xbf16>, vector<32x8xbf16>, vector<32x8xf32> -> vector<32x8xf32>
    %230 = arith.truncf %229 : vector<32x8xf32> to vector<32x8xbf16>
    %231 = vector.extract_strided_slice %188 {offsets = [0, 0], sizes = [8, 32], strides = [1, 1]} : vector<32x32xbf16> to vector<8x32xbf16>
    %cst_124 = arith.constant dense<0.000000e+00> : vector<32x32xf32>
    %232 = tpu.matmul %230, %231, %cst_124 {dimension_numbers = #tpu.dot_dimension_numbers<[1], [0], [0], [1], [0, 0, 1, 1], [], []>} : vector<32x8xbf16>, vector<8x32xbf16>, vector<32x32xf32> -> vector<32x32xf32>
    %233 = vector.extract_strided_slice %211 {offsets = [0, 8], sizes = [32, 8], strides = [1, 1]} : vector<32x96xbf16> to vector<32x8xbf16>
    %234 = vector.extract_strided_slice %211 {offsets = [0, 40], sizes = [32, 8], strides = [1, 1]} : vector<32x96xbf16> to vector<32x8xbf16>
    %235 = vector.extract_strided_slice %211 {offsets = [0, 72], sizes = [32, 8], strides = [1, 1]} : vector<32x96xbf16> to vector<32x8xbf16>
    %cst_125 = arith.constant dense<0.000000e+00> : vector<32x32xf32>
    %236 = tpu.matmul %233, %234, %cst_125 {dimension_numbers = #tpu.dot_dimension_numbers<[1], [1], [0], [0], [0, 0, 1, 0], [], []>} : vector<32x8xbf16>, vector<32x8xbf16>, vector<32x32xf32> -> vector<32x32xf32>
    %cst_126 = arith.constant 0.353553385 : f32
    %237 = vector.broadcast %cst_126 : f32 to vector<32x32xf32>
    %238 = arith.mulf %236, %237 : vector<32x32xf32>
    %239 = arith.addf %238, %8 : vector<32x32xf32>
    %cst_127 = arith.constant dense<0xFF800000> : vector<32xf32>
    %240 = vector.multi_reduction <maximumf>, %239, %cst_127 [1] : vector<32x32xf32> to vector<32xf32>
    %241 = vector.shape_cast %240 : vector<32xf32> to vector<32x1xf32>
    %242 = vector.broadcast %241 : vector<32x1xf32> to vector<32x32xf32>
    %243 = arith.subf %239, %242 : vector<32x32xf32>
    %244 = math.exp %243 : vector<32x32xf32>
    %cst_128 = arith.constant dense<0.000000e+00> : vector<32xf32>
    %245 = vector.multi_reduction <add>, %244, %cst_128 [1] : vector<32x32xf32> to vector<32xf32>
    %246 = vector.shape_cast %245 : vector<32xf32> to vector<32x1xf32>
    %247 = vector.broadcast %246 : vector<32x1xf32> to vector<32x32xf32>
    %248 = arith.divf %244, %247 : vector<32x32xf32>
    %249 = arith.truncf %248 : vector<32x32xf32> to vector<32x32xbf16>
    %cst_129 = arith.constant dense<0.000000e+00> : vector<32x8xf32>
    %250 = tpu.matmul %249, %235, %cst_129 {dimension_numbers = #tpu.dot_dimension_numbers<[1], [0], [0], [1], [0, 0, 1, 1], [], []>} : vector<32x32xbf16>, vector<32x8xbf16>, vector<32x8xf32> -> vector<32x8xf32>
    %251 = arith.truncf %250 : vector<32x8xf32> to vector<32x8xbf16>
    %252 = vector.extract_strided_slice %188 {offsets = [8, 0], sizes = [8, 32], strides = [1, 1]} : vector<32x32xbf16> to vector<8x32xbf16>
    %cst_130 = arith.constant dense<0.000000e+00> : vector<32x32xf32>
    %253 = tpu.matmul %251, %252, %cst_130 {dimension_numbers = #tpu.dot_dimension_numbers<[1], [0], [0], [1], [0, 0, 1, 1], [], []>} : vector<32x8xbf16>, vector<8x32xbf16>, vector<32x32xf32> -> vector<32x32xf32>
    %254 = arith.addf %232, %253 : vector<32x32xf32>
    %255 = vector.extract_strided_slice %211 {offsets = [0, 16], sizes = [32, 8], strides = [1, 1]} : vector<32x96xbf16> to vector<32x8xbf16>
    %256 = vector.extract_strided_slice %211 {offsets = [0, 48], sizes = [32, 8], strides = [1, 1]} : vector<32x96xbf16> to vector<32x8xbf16>
    %257 = vector.extract_strided_slice %211 {offsets = [0, 80], sizes = [32, 8], strides = [1, 1]} : vector<32x96xbf16> to vector<32x8xbf16>
    %cst_131 = arith.constant dense<0.000000e+00> : vector<32x32xf32>
    %258 = tpu.matmul %255, %256, %cst_131 {dimension_numbers = #tpu.dot_dimension_numbers<[1], [1], [0], [0], [0, 0, 1, 0], [], []>} : vector<32x8xbf16>, vector<32x8xbf16>, vector<32x32xf32> -> vector<32x32xf32>
    %cst_132 = arith.constant 0.353553385 : f32
    %259 = vector.broadcast %cst_132 : f32 to vector<32x32xf32>
    %260 = arith.mulf %258, %259 : vector<32x32xf32>
    %261 = arith.addf %260, %8 : vector<32x32xf32>
    %cst_133 = arith.constant dense<0xFF800000> : vector<32xf32>
    %262 = vector.multi_reduction <maximumf>, %261, %cst_133 [1] : vector<32x32xf32> to vector<32xf32>
    %263 = vector.shape_cast %262 : vector<32xf32> to vector<32x1xf32>
    %264 = vector.broadcast %263 : vector<32x1xf32> to vector<32x32xf32>
    %265 = arith.subf %261, %264 : vector<32x32xf32>
    %266 = math.exp %265 : vector<32x32xf32>
    %cst_134 = arith.constant dense<0.000000e+00> : vector<32xf32>
    %267 = vector.multi_reduction <add>, %266, %cst_134 [1] : vector<32x32xf32> to vector<32xf32>
    %268 = vector.shape_cast %267 : vector<32xf32> to vector<32x1xf32>
    %269 = vector.broadcast %268 : vector<32x1xf32> to vector<32x32xf32>
    %270 = arith.divf %266, %269 : vector<32x32xf32>
    %271 = arith.truncf %270 : vector<32x32xf32> to vector<32x32xbf16>
    %cst_135 = arith.constant dense<0.000000e+00> : vector<32x8xf32>
    %272 = tpu.matmul %271, %257, %cst_135 {dimension_numbers = #tpu.dot_dimension_numbers<[1], [0], [0], [1], [0, 0, 1, 1], [], []>} : vector<32x32xbf16>, vector<32x8xbf16>, vector<32x8xf32> -> vector<32x8xf32>
    %273 = arith.truncf %272 : vector<32x8xf32> to vector<32x8xbf16>
    %274 = vector.extract_strided_slice %188 {offsets = [16, 0], sizes = [8, 32], strides = [1, 1]} : vector<32x32xbf16> to vector<8x32xbf16>
    %cst_136 = arith.constant dense<0.000000e+00> : vector<32x32xf32>
    %275 = tpu.matmul %273, %274, %cst_136 {dimension_numbers = #tpu.dot_dimension_numbers<[1], [0], [0], [1], [0, 0, 1, 1], [], []>} : vector<32x8xbf16>, vector<8x32xbf16>, vector<32x32xf32> -> vector<32x32xf32>
    %276 = arith.addf %254, %275 : vector<32x32xf32>
    %277 = vector.extract_strided_slice %211 {offsets = [0, 24], sizes = [32, 8], strides = [1, 1]} : vector<32x96xbf16> to vector<32x8xbf16>
    %278 = vector.extract_strided_slice %211 {offsets = [0, 56], sizes = [32, 8], strides = [1, 1]} : vector<32x96xbf16> to vector<32x8xbf16>
    %279 = vector.extract_strided_slice %211 {offsets = [0, 88], sizes = [32, 8], strides = [1, 1]} : vector<32x96xbf16> to vector<32x8xbf16>
    %cst_137 = arith.constant dense<0.000000e+00> : vector<32x32xf32>
    %280 = tpu.matmul %277, %278, %cst_137 {dimension_numbers = #tpu.dot_dimension_numbers<[1], [1], [0], [0], [0, 0, 1, 0], [], []>} : vector<32x8xbf16>, vector<32x8xbf16>, vector<32x32xf32> -> vector<32x32xf32>
    %cst_138 = arith.constant 0.353553385 : f32
    %281 = vector.broadcast %cst_138 : f32 to vector<32x32xf32>
    %282 = arith.mulf %280, %281 : vector<32x32xf32>
    %283 = arith.addf %282, %8 : vector<32x32xf32>
    %cst_139 = arith.constant dense<0xFF800000> : vector<32xf32>
    %284 = vector.multi_reduction <maximumf>, %283, %cst_139 [1] : vector<32x32xf32> to vector<32xf32>
    %285 = vector.shape_cast %284 : vector<32xf32> to vector<32x1xf32>
    %286 = vector.broadcast %285 : vector<32x1xf32> to vector<32x32xf32>
    %287 = arith.subf %283, %286 : vector<32x32xf32>
    %288 = math.exp %287 : vector<32x32xf32>
    %cst_140 = arith.constant dense<0.000000e+00> : vector<32xf32>
    %289 = vector.multi_reduction <add>, %288, %cst_140 [1] : vector<32x32xf32> to vector<32xf32>
    %290 = vector.shape_cast %289 : vector<32xf32> to vector<32x1xf32>
    %291 = vector.broadcast %290 : vector<32x1xf32> to vector<32x32xf32>
    %292 = arith.divf %288, %291 : vector<32x32xf32>
    %293 = arith.truncf %292 : vector<32x32xf32> to vector<32x32xbf16>
    %cst_141 = arith.constant dense<0.000000e+00> : vector<32x8xf32>
    %294 = tpu.matmul %293, %279, %cst_141 {dimension_numbers = #tpu.dot_dimension_numbers<[1], [0], [0], [1], [0, 0, 1, 1], [], []>} : vector<32x32xbf16>, vector<32x8xbf16>, vector<32x8xf32> -> vector<32x8xf32>
    %295 = arith.truncf %294 : vector<32x8xf32> to vector<32x8xbf16>
    %296 = vector.extract_strided_slice %188 {offsets = [24, 0], sizes = [8, 32], strides = [1, 1]} : vector<32x32xbf16> to vector<8x32xbf16>
    %cst_142 = arith.constant dense<0.000000e+00> : vector<32x32xf32>
    %297 = tpu.matmul %295, %296, %cst_142 {dimension_numbers = #tpu.dot_dimension_numbers<[1], [0], [0], [1], [0, 0, 1, 1], [], []>} : vector<32x8xbf16>, vector<8x32xbf16>, vector<32x32xf32> -> vector<32x32xf32>
    %298 = arith.addf %276, %297 : vector<32x32xf32>
    %299 = vector.broadcast %190 : vector<1x32xf32> to vector<32x32xf32>
    %300 = arith.addf %298, %299 : vector<32x32xf32>
    %301 = arith.addf %182, %300 : vector<32x32xf32>
    %cst_143 = arith.constant dense<0.000000e+00> : vector<32xf32>
    %302 = vector.multi_reduction <add>, %301, %cst_143 [1] : vector<32x32xf32> to vector<32xf32>
    %303 = vector.shape_cast %302 : vector<32xf32> to vector<32x1xf32>
    %cst_144 = arith.constant 3.200000e+01 : f32
    %304 = vector.broadcast %cst_144 : f32 to vector<32x1xf32>
    %305 = arith.divf %303, %304 : vector<32x1xf32>
    %306 = vector.broadcast %305 : vector<32x1xf32> to vector<32x32xf32>
    %307 = arith.subf %301, %306 : vector<32x32xf32>
    %308 = arith.mulf %307, %307 : vector<32x32xf32>
    %cst_145 = arith.constant dense<0.000000e+00> : vector<32xf32>
    %309 = vector.multi_reduction <add>, %308, %cst_145 [1] : vector<32x32xf32> to vector<32xf32>
    %310 = vector.shape_cast %309 : vector<32xf32> to vector<32x1xf32>
    %cst_146 = arith.constant 3.200000e+01 : f32
    %311 = vector.broadcast %cst_146 : f32 to vector<32x1xf32>
    %312 = arith.divf %310, %311 : vector<32x1xf32>
    %313 = vector.broadcast %305 : vector<32x1xf32> to vector<32x32xf32>
    %314 = arith.subf %301, %313 : vector<32x32xf32>
    %cst_147 = arith.constant 9.99999974E-6 : f32
    %315 = vector.broadcast %cst_147 : f32 to vector<32x1xf32>
    %316 = arith.addf %312, %315 : vector<32x1xf32>
    %317 = math.rsqrt %316 : vector<32x1xf32>
    %318 = vector.broadcast %317 : vector<32x1xf32> to vector<32x32xf32>
    %319 = arith.mulf %314, %318 : vector<32x32xf32>
    %320 = vector.broadcast %200 : vector<1x32xf32> to vector<32x32xf32>
    %321 = arith.mulf %319, %320 : vector<32x32xf32>
    %322 = vector.broadcast %202 : vector<1x32xf32> to vector<32x32xf32>
    %323 = arith.addf %321, %322 : vector<32x32xf32>
    %324 = arith.truncf %323 : vector<32x32xf32> to vector<32x32xbf16>
    %cst_148 = arith.constant dense<0.000000e+00> : vector<32x32xf32>
    %325 = tpu.matmul %324, %192, %cst_148 {dimension_numbers = #tpu.dot_dimension_numbers<[1], [0], [0], [1], [0, 0, 1, 1], [], []>} : vector<32x32xbf16>, vector<32x32xbf16>, vector<32x32xf32> -> vector<32x32xf32>
    %326 = vector.broadcast %194 : vector<1x32xf32> to vector<32x32xf32>
    %327 = arith.addf %325, %326 : vector<32x32xf32>
    %cst_149 = arith.constant 0.000000e+00 : f32
    %328 = vector.broadcast %cst_149 : f32 to vector<32x32xf32>
    %329 = arith.maximumf %327, %328 : vector<32x32xf32>
    %330 = arith.truncf %329 : vector<32x32xf32> to vector<32x32xbf16>
    %cst_150 = arith.constant dense<0.000000e+00> : vector<32x32xf32>
    %331 = tpu.matmul %330, %196, %cst_150 {dimension_numbers = #tpu.dot_dimension_numbers<[1], [0], [0], [1], [0, 0, 1, 1], [], []>} : vector<32x32xbf16>, vector<32x32xbf16>, vector<32x32xf32> -> vector<32x32xf32>
    %332 = vector.broadcast %198 : vector<1x32xf32> to vector<32x32xf32>
    %333 = arith.addf %331, %332 : vector<32x32xf32>
    %334 = arith.addf %323, %333 : vector<32x32xf32>
    %cst_151 = arith.constant dense<0.000000e+00> : vector<32xf32>
    %335 = vector.multi_reduction <add>, %334, %cst_151 [1] : vector<32x32xf32> to vector<32xf32>
    %336 = vector.shape_cast %335 : vector<32xf32> to vector<32x1xf32>
    %cst_152 = arith.constant 3.200000e+01 : f32
    %337 = vector.broadcast %cst_152 : f32 to vector<32x1xf32>
    %338 = arith.divf %336, %337 : vector<32x1xf32>
    %339 = vector.broadcast %338 : vector<32x1xf32> to vector<32x32xf32>
    %340 = arith.subf %334, %339 : vector<32x32xf32>
    %341 = arith.mulf %340, %340 : vector<32x32xf32>
    %cst_153 = arith.constant dense<0.000000e+00> : vector<32xf32>
    %342 = vector.multi_reduction <add>, %341, %cst_153 [1] : vector<32x32xf32> to vector<32xf32>
    %343 = vector.shape_cast %342 : vector<32xf32> to vector<32x1xf32>
    %cst_154 = arith.constant 3.200000e+01 : f32
    %344 = vector.broadcast %cst_154 : f32 to vector<32x1xf32>
    %345 = arith.divf %343, %344 : vector<32x1xf32>
    %346 = vector.broadcast %338 : vector<32x1xf32> to vector<32x32xf32>
    %347 = arith.subf %334, %346 : vector<32x32xf32>
    %cst_155 = arith.constant 9.99999974E-6 : f32
    %348 = vector.broadcast %cst_155 : f32 to vector<32x1xf32>
    %349 = arith.addf %345, %348 : vector<32x1xf32>
    %350 = math.rsqrt %349 : vector<32x1xf32>
    %351 = vector.broadcast %350 : vector<32x1xf32> to vector<32x32xf32>
    %352 = arith.mulf %347, %351 : vector<32x32xf32>
    %353 = vector.broadcast %204 : vector<1x32xf32> to vector<32x32xf32>
    %354 = arith.mulf %352, %353 : vector<32x32xf32>
    %355 = vector.broadcast %206 : vector<1x32xf32> to vector<32x32xf32>
    %356 = arith.addf %354, %355 : vector<32x32xf32>
    %c0_156 = arith.constant 0 : index
    %c0_157 = arith.constant 0 : index
    %357 = vector.load %arg18[%c0_156, %c0_157] : memref<32x32xf32, #tpu.memory_space<vmem>>, vector<32x32xf32>
    tpu.vector_store %arg18[%c0_156, %c0_157], %356 {strides = array<i32>} : memref<32x32xf32, #tpu.memory_space<vmem>>, vector<32x32xf32>,
    return
  }
  func.func @transform_0(%arg0: i32) -> (i32, i32) {
    %c0_i32 = arith.constant 0 : i32
    %c0_i32_0 = arith.constant 0 : i32
    %c0_i32_1 = arith.constant 0 : i32
    return %c0_i32, %c0_i32_0 : i32, i32
  }
  func.func @transform_1(%arg0: i32) -> (i32, i32) {
    %c0_i32 = arith.constant 0 : i32
    %c0_i32_0 = arith.constant 0 : i32
    %c0_i32_1 = arith.constant 0 : i32
    return %c0_i32, %c0_i32_0 : i32, i32
  }
  func.func @transform_2(%arg0: i32) -> (i32, i32) {
    %c0_i32 = arith.constant 0 : i32
    %c0_i32_0 = arith.constant 0 : i32
    %c0_i32_1 = arith.constant 0 : i32
    return %c0_i32, %c0_i32_0 : i32, i32
  }
  func.func @transform_3(%arg0: i32) -> (i32, i32) {
    %c0_i32 = arith.constant 0 : i32
    %c0_i32_0 = arith.constant 0 : i32
    %c0_i32_1 = arith.constant 0 : i32
    return %c0_i32, %c0_i32_0 : i32, i32
  }
  func.func @transform_4(%arg0: i32) -> (i32, i32) {
    %c0_i32 = arith.constant 0 : i32
    %c0_i32_0 = arith.constant 0 : i32
    %c0_i32_1 = arith.constant 0 : i32
    return %c0_i32, %c0_i32_0 : i32, i32
  }
  func.func @transform_5(%arg0: i32) -> (i32, i32, i32) {
    %c0_i32 = arith.constant 0 : i32
    %c0_i32_0 = arith.constant 0 : i32
    %c0_i32_1 = arith.constant 0 : i32
    %c0_i32_2 = arith.constant 0 : i32
    return %c0_i32, %c0_i32_0, %c0_i32_1 : i32, i32, i32
  }
  func.func @transform_6(%arg0: i32) -> (i32, i32, i32) {
    %c0_i32 = arith.constant 0 : i32
    %c0_i32_0 = arith.constant 0 : i32
    %c0_i32_1 = arith.constant 0 : i32
    %c0_i32_2 = arith.constant 0 : i32
    return %c0_i32, %c0_i32_0, %c0_i32_1 : i32, i32, i32
  }
  func.func @transform_7(%arg0: i32) -> (i32, i32, i32) {
    %c0_i32 = arith.constant 0 : i32
    %c0_i32_0 = arith.constant 0 : i32
    %c0_i32_1 = arith.constant 0 : i32
    %c0_i32_2 = arith.constant 0 : i32
    return %c0_i32, %c0_i32_0, %c0_i32_1 : i32, i32, i32
  }
  func.func @transform_8(%arg0: i32) -> (i32, i32, i32) {
    %c0_i32 = arith.constant 0 : i32
    %c0_i32_0 = arith.constant 0 : i32
    %c0_i32_1 = arith.constant 0 : i32
    %c0_i32_2 = arith.constant 0 : i32
    return %c0_i32, %c0_i32_0, %c0_i32_1 : i32, i32, i32
  }
  func.func @transform_9(%arg0: i32) -> (i32, i32, i32) {
    %c0_i32 = arith.constant 0 : i32
    %c0_i32_0 = arith.constant 0 : i32
    %c0_i32_1 = arith.constant 0 : i32
    %c0_i32_2 = arith.constant 0 : i32
    return %c0_i32, %c0_i32_0, %c0_i32_1 : i32, i32, i32
  }
  func.func @transform_10(%arg0: i32) -> (i32, i32, i32) {
    %c0_i32 = arith.constant 0 : i32
    %c0_i32_0 = arith.constant 0 : i32
    %c0_i32_1 = arith.constant 0 : i32
    %c0_i32_2 = arith.constant 0 : i32
    return %c0_i32, %c0_i32_0, %c0_i32_1 : i32, i32, i32
  }
  func.func @transform_11(%arg0: i32) -> (i32, i32, i32) {
    %c0_i32 = arith.constant 0 : i32
    %c0_i32_0 = arith.constant 0 : i32
    %c0_i32_1 = arith.constant 0 : i32
    %c0_i32_2 = arith.constant 0 : i32
    return %c0_i32, %c0_i32_0, %c0_i32_1 : i32, i32, i32
  }
  func.func @transform_12(%arg0: i32) -> (i32, i32, i32) {
    %c0_i32 = arith.constant 0 : i32
    %c0_i32_0 = arith.constant 0 : i32
    %c0_i32_1 = arith.constant 0 : i32
    %c0_i32_2 = arith.constant 0 : i32
    return %c0_i32, %c0_i32_0, %c0_i32_1 : i32, i32, i32
  }
  func.func @transform_13(%arg0: i32) -> (i32, i32, i32) {
    %c0_i32 = arith.constant 0 : i32
    %c0_i32_0 = arith.constant 0 : i32
    %c0_i32_1 = arith.constant 0 : i32
    %c0_i32_2 = arith.constant 0 : i32
    return %c0_i32, %c0_i32_0, %c0_i32_1 : i32, i32, i32
  }
  func.func @transform_14(%arg0: i32) -> (i32, i32, i32) {
    %c0_i32 = arith.constant 0 : i32
    %c0_i32_0 = arith.constant 0 : i32
    %c0_i32_1 = arith.constant 0 : i32
    %c0_i32_2 = arith.constant 0 : i32
    return %c0_i32, %c0_i32_0, %c0_i32_1 : i32, i32, i32
  }
  func.func @transform_15(%arg0: i32) -> (i32, i32, i32) {
    %c0_i32 = arith.constant 0 : i32
    %c0_i32_0 = arith.constant 0 : i32
    %c0_i32_1 = arith.constant 0 : i32
    %c0_i32_2 = arith.constant 0 : i32
    return %c0_i32, %c0_i32_0, %c0_i32_1 : i32, i32, i32
  }
  func.func @transform_16(%arg0: i32) -> (i32, i32, i32) {
    %c0_i32 = arith.constant 0 : i32
    %c0_i32_0 = arith.constant 0 : i32
    %c0_i32_1 = arith.constant 0 : i32
    %c0_i32_2 = arith.constant 0 : i32
    return %c0_i32, %c0_i32_0, %c0_i32_1 : i32, i32, i32
  }
  func.func @transform_17(%arg0: i32) -> (i32, i32) {
    %c0_i32 = arith.constant 0 : i32
    %c0_i32_0 = arith.constant 0 : i32
    %c0_i32_1 = arith.constant 0 : i32
    return %c0_i32, %c0_i32_0 : i32, i32
  }
}

</mosaic_0001>

<llo_original>
// kernel: vit_forward.1
$region0: #{vit_forward.1}
  #allocation0 [shape = 'u32[]', space=smem, size = 0x4, offset = 0x4, fixed_abs, tag = 'smem constant byte address 0x4 - core index']
  #allocation1 [shape = 'u32[72,128]{1,0:T(1,128)}', space=vmem, size = 0x9000, scoped, tag = 'internal scratch']
  %s0 = inlined_call_operand.vmem [shape: bf16[32,192], index: 0, kind: input, shape index: {}]
  %s1 = inlined_call_operand.vmem [shape: f32[32,32], index: 1, kind: input, shape index: {}]
  %s2 = inlined_call_operand.vmem [shape: bf16[192,32], index: 2, kind: input, shape index: {}]
  %s3 = inlined_call_operand.vmem [shape: f32[1,32], index: 3, kind: input, shape index: {}]
  %s4 = inlined_call_operand.vmem [shape: f32[32,32], index: 4, kind: input, shape index: {}]
  %s5 = inlined_call_operand.vmem [shape: bf16[2,32,96], index: 5, kind: input, shape index: {}]
  %s6 = inlined_call_operand.vmem [shape: f32[2,1,96], index: 6, kind: input, shape index: {}]
  %s7 = inlined_call_operand.vmem [shape: bf16[2,32,32], index: 7, kind: input, shape index: {}]
  %s8 = inlined_call_operand.vmem [shape: f32[2,1,32], index: 8, kind: input, shape index: {}]
  %s9 = inlined_call_operand.vmem [shape: bf16[2,32,32], index: 9, kind: input, shape index: {}]
  %s10 = inlined_call_operand.vmem [shape: f32[2,1,32], index: 10, kind: input, shape index: {}]
  %s11 = inlined_call_operand.vmem [shape: bf16[2,32,32], index: 11, kind: input, shape index: {}]
  %s12 = inlined_call_operand.vmem [shape: f32[2,1,32], index: 12, kind: input, shape index: {}]
  %s13 = inlined_call_operand.vmem [shape: f32[2,1,32], index: 13, kind: input, shape index: {}]
  %s14 = inlined_call_operand.vmem [shape: f32[2,1,32], index: 14, kind: input, shape index: {}]
  %s15 = inlined_call_operand.vmem [shape: f32[2,1,32], index: 15, kind: input, shape index: {}]
  %s16 = inlined_call_operand.vmem [shape: f32[2,1,32], index: 16, kind: input, shape index: {}]
  %s17 = inlined_call_operand.hbm [shape: f32[32,32], index: 17, kind: output, shape index: {}]
  %s18 = sld [smem:[#allocation0]]
  $region78: #{vit_forward.1} parent=0
    _
  %s20 = ssub.s32 1, %s18
  %s21 = scalar_select 0, %s20, %s18
  $region1: #{vit_forward.1} parent=0
    #allocation2 [shape = 'u8[16384]{0}', space=vmem, size = 0x4000, scoped, tag = 'output window, operand 0, single buffered']
    #allocation3 [shape = 's32[1]{0}', space=sflag, size = 0x4, scoped, tag = 'scoped memory for vit_forward.1']
    %22 = vsyncpa [#allocation3], 0
    // Predicated region
    $region2: #{vit_forward.1} parent=1 // pred_check
      _
    $region3: #{vit_forward.1} parent=1 // pred_check_branch
      %24 = sbr.rel (0) target = $region5
    $region4: #{vit_forward.1} parent=1 // pred_region
      _
    $region5: #{vit_forward.1} parent=1 // pred_fallthru
      _
    // Predicated region
    $region6: #{vit_forward.1} parent=1 // pred_check
      _
    $region7: #{vit_forward.1} parent=1 // pred_check_branch
      %26 = sbr.rel (0) target = $region9
    $region8: #{vit_forward.1} parent=1 // pred_region
      _
    $region9: #{vit_forward.1} parent=1 // pred_fallthru
      _
    // Predicated region
    $region10: #{vit_forward.1} parent=1 // pred_check
      _
    $region11: #{vit_forward.1} parent=1 // pred_check_branch
      %28 = sbr.rel (0) target = $region13
    $region12: #{vit_forward.1} parent=1 // pred_region
      _
    $region13: #{vit_forward.1} parent=1 // pred_fallthru
      _
    // Predicated region
    $region14: #{vit_forward.1} parent=1 // pred_check
      _
    $region15: #{vit_forward.1} parent=1 // pred_check_branch
      %30 = sbr.rel (0) target = $region17
    $region16: #{vit_forward.1} parent=1 // pred_region
      _
    $region17: #{vit_forward.1} parent=1 // pred_fallthru
      _
    // Predicated region
    $region18: #{vit_forward.1} parent=1 // pred_check
      _
    $region19: #{vit_forward.1} parent=1 // pred_check_branch
      %32 = sbr.rel (0) target = $region21
    $region20: #{vit_forward.1} parent=1 // pred_region
      _
    $region21: #{vit_forward.1} parent=1 // pred_fallthru
      _
    // Predicated region
    $region22: #{vit_forward.1} parent=1 // pred_check
      _
    $region23: #{vit_forward.1} parent=1 // pred_check_branch
      %34 = sbr.rel (0) target = $region25
    $region24: #{vit_forward.1} parent=1 // pred_region
      _
    $region25: #{vit_forward.1} parent=1 // pred_fallthru
      _
    // Predicated region
    $region26: #{vit_forward.1} parent=1 // pred_check
      _
    $region27: #{vit_forward.1} parent=1 // pred_check_branch
      %36 = sbr.rel (0) target = $region29
    $region28: #{vit_forward.1} parent=1 // pred_region
      _
    $region29: #{vit_forward.1} parent=1 // pred_fallthru
      _
    // Predicated region
    $region30: #{vit_forward.1} parent=1 // pred_check
      _
    $region31: #{vit_forward.1} parent=1 // pred_check_branch
      %38 = sbr.rel (0) target = $region33
    $region32: #{vit_forward.1} parent=1 // pred_region
      _
    $region33: #{vit_forward.1} parent=1 // pred_fallthru
      _
    // Predicated region
    $region34: #{vit_forward.1} parent=1 // pred_check
      _
    $region35: #{vit_forward.1} parent=1 // pred_check_branch
      %40 = sbr.rel (0) target = $region37
    $region36: #{vit_forward.1} parent=1 // pred_region
      _
    $region37: #{vit_forward.1} parent=1 // pred_fallthru
      _
    // Predicated region
    $region38: #{vit_forward.1} parent=1 // pred_check
      _
    $region39: #{vit_forward.1} parent=1 // pred_check_branch
      %42 = sbr.rel (0) target = $region41
    $region40: #{vit_forward.1} parent=1 // pred_region
      _
    $region41: #{vit_forward.1} parent=1 // pred_fallthru
      _
    // Predicated region
    $region42: #{vit_forward.1} parent=1 // pred_check
      _
    $region43: #{vit_forward.1} parent=1 // pred_check_branch
      %44 = sbr.rel (0) target = $region45
    $region44: #{vit_forward.1} parent=1 // pred_region
      _
    $region45: #{vit_forward.1} parent=1 // pred_fallthru
      _
    // Predicated region
    $region46: #{vit_forward.1} parent=1 // pred_check
      _
    $region47: #{vit_forward.1} parent=1 // pred_check_branch
      %46 = sbr.rel (0) target = $region49
    $region48: #{vit_forward.1} parent=1 // pred_region
      _
    $region49: #{vit_forward.1} parent=1 // pred_fallthru
      _
    // Predicated region
    $region50: #{vit_forward.1} parent=1 // pred_check
      _
    $region51: #{vit_forward.1} parent=1 // pred_check_branch
      %48 = sbr.rel (0) target = $region53
    $region52: #{vit_forward.1} parent=1 // pred_region
      _
    $region53: #{vit_forward.1} parent=1 // pred_fallthru
      _
    // Predicated region
    $region54: #{vit_forward.1} parent=1 // pred_check
      _
    $region55: #{vit_forward.1} parent=1 // pred_check_branch
      %50 = sbr.rel (0) target = $region57
    $region56: #{vit_forward.1} parent=1 // pred_region
      _
    $region57: #{vit_forward.1} parent=1 // pred_fallthru
      _
    // Predicated region
    $region58: #{vit_forward.1} parent=1 // pred_check
      _
    $region59: #{vit_forward.1} parent=1 // pred_check_branch
      %52 = sbr.rel (0) target = $region61
    $region60: #{vit_forward.1} parent=1 // pred_region
      _
    $region61: #{vit_forward.1} parent=1 // pred_fallthru
      _
    // Predicated region
    $region62: #{vit_forward.1} parent=1 // pred_check
      _
    $region63: #{vit_forward.1} parent=1 // pred_check_branch
      %54 = sbr.rel (0) target = $region65
    $region64: #{vit_forward.1} parent=1 // pred_region
      _
    $region65: #{vit_forward.1} parent=1 // pred_fallthru
      _
    // Predicated region
    $region66: #{vit_forward.1} parent=1 // pred_check
      _
    $region67: #{vit_forward.1} parent=1 // pred_check_branch
      %56 = sbr.rel (0) target = $region69
    $region68: #{vit_forward.1} parent=1 // pred_region
      _
    $region69: #{vit_forward.1} parent=1 // pred_fallthru
      _
    %v58 = vld [vmem:[%s0] sm:$0xff]
    %v59 = vld [vmem:[%s0 + $0x8] sm:$0xff]
    %v60 = vld [vmem:[%s0 + $0x10] sm:$0xff]
    %v61 = vld [vmem:[%s0 + $0x18] sm:$0xff]
    %v62 = vld [vmem:[%s2] sm:$0xf]
    %v63 = vld [vmem:[%s2 + $0x4] sm:$0xf]
    %v64 = vld [vmem:[%s2 + $0x8] sm:$0xf]
    %v65 = vld [vmem:[%s2 + $0xc] sm:$0xf]
    %v66 = vld [vmem:[%s2 + $0x10] sm:$0xf]
    %v67 = vld [vmem:[%s2 + $0x14] sm:$0xf]
    %v68 = vld [vmem:[%s2 + $0x18] sm:$0xf]
    %v69 = vld [vmem:[%s2 + $0x1c] sm:$0xf]
    %v70 = vld [vmem:[%s2 + $0x20] sm:$0xf]
    %v71 = vld [vmem:[%s2 + $0x24] sm:$0xf]
    %v72 = vld [vmem:[%s2 + $0x28] sm:$0xf]
    %v73 = vld [vmem:[%s2 + $0x2c] sm:$0xf]
    %v74 = vld [vmem:[%s2 + $0x30] sm:$0xf]
    %v75 = vld [vmem:[%s2 + $0x34] sm:$0xf]
    %v76 = vld [vmem:[%s2 + $0x38] sm:$0xf]
    %v77 = vld [vmem:[%s2 + $0x3c] sm:$0xf]
    %v78 = vld [vmem:[%s2 + $0x40] sm:$0xf]
    %v79 = vld [vmem:[%s2 + $0x44] sm:$0xf]
    %v80 = vld [vmem:[%s2 + $0x48] sm:$0xf]
    %v81 = vld [vmem:[%s2 + $0x4c] sm:$0xf]
    %v82 = vld [vmem:[%s2 + $0x50] sm:$0xf]
    %v83 = vld [vmem:[%s2 + $0x54] sm:$0xf]
    %v84 = vld [vmem:[%s2 + $0x58] sm:$0xf]
    %v85 = vld [vmem:[%s2 + $0x5c] sm:$0xf]
    %v86 = vld [vmem:[%s3] sm:$0x1]
    %v88 = vperm.slane %v86, 0
    %v94 = vunpack.c.l.b16 %v58
    %v95 = vunpack.c.h.b16 %v58
    %v96 = vunpack.c.l.b16 %v59
    %v97 = vunpack.c.h.b16 %v59
    %v98 = vunpack.c.l.b16 %v60
    %v99 = vunpack.c.h.b16 %v60
    %v100 = vunpack.c.l.b16 %v61
    %v101 = vunpack.c.h.b16 %v61
    %v102 = vpack.c.b16 %v96, %v94
    %v103 = vpack.c.b16 %v97, %v95
    %v104 = vpack.c.b16 %v100, %v98
    %v105 = vpack.c.b16 %v101, %v99
    %v132 = vunpack.c.l.b16 %v62
    %v133 = vunpack.c.l.b16 %v63
    %v134 = vunpack.c.l.b16 %v64
    %v135 = vunpack.c.l.b16 %v65
    %v136 = vunpack.c.l.b16 %v66
    %v137 = vunpack.c.l.b16 %v67
    %v138 = vunpack.c.l.b16 %v68
    %v139 = vunpack.c.l.b16 %v69
    %v140 = vunpack.c.l.b16 %v70
    %v141 = vunpack.c.l.b16 %v71
    %v142 = vunpack.c.l.b16 %v72
    %v143 = vunpack.c.l.b16 %v73
    %v144 = vunpack.c.l.b16 %v74
    %v145 = vunpack.c.l.b16 %v75
    %v146 = vunpack.c.l.b16 %v76
    %v147 = vunpack.c.l.b16 %v77
    %v148 = vunpack.c.l.b16 %v78
    %v149 = vunpack.c.l.b16 %v79
    %v150 = vunpack.c.l.b16 %v80
    %v151 = vunpack.c.l.b16 %v81
    %v152 = vunpack.c.l.b16 %v82
    %v153 = vunpack.c.l.b16 %v83
    %v154 = vunpack.c.l.b16 %v84
    %v155 = vunpack.c.l.b16 %v85
    %v156 = vpack.c.b16 %v133, %v132
    %v157 = vpack.c.b16 %v135, %v134
    %v158 = vpack.c.b16 %v137, %v136
    %v159 = vpack.c.b16 %v139, %v138
    %v160 = vpack.c.b16 %v141, %v140
    %v161 = vpack.c.b16 %v143, %v142
    %v162 = vpack.c.b16 %v145, %v144
    %v163 = vpack.c.b16 %v147, %v146
    %v164 = vpack.c.b16 %v149, %v148
    %v165 = vpack.c.b16 %v151, %v150
    %v166 = vpack.c.b16 %v153, %v152
    %v167 = vpack.c.b16 %v155, %v154
    %vm180 = vcmask 523264
    %v182 = vsel %vm180, %v103, 0
    %v185 = vsel %vm180, %v105, 0
    %187 = vmatpush.bf16.msra.mxu0 %v163
    %188 = vmatpush.bf16.msra.mxu0 %v162
    %189 = vmatpush.bf16.msra.mxu0 %v161
    %190 = vmatpush.bf16.msra.mxu0 %v160
    %191 = vmatpush.bf16.msra.mxu0 %v159
    %192 = vmatpush.bf16.msra.mxu0 %v158
    %193 = vmatpush.bf16.msra.mxu0 %v157
    %194 = vmatpush.bf16.msra.mxu0 %v156
    %195 = vmatmul.bf16.gmra.mxu0 %v102
    %v196 = vpop.f32.mrf.mxu0
    %v197 = vadd.f32 %v88, %v196
    %v198 = vpop.f32.mrf.mxu0
    %v199 = vadd.f32 %v88, %v198
    %200 = vmatmul.bf16.gmra.mxu0 %v104
    %v201 = vpop.f32.mrf.mxu0
    %v202 = vadd.f32 %v88, %v201
    %v203 = vpop.f32.mrf.mxu0
    %v204 = vadd.f32 %v88, %v203
    %205 = vdwg.mxu0
    %206 = vmatpush.bf16.msra.mxu0 0
    %207 = vmatpush.bf16.msra.mxu0 0
    %208 = vmatpush.bf16.msra.mxu0 0
    %209 = vmatpush.bf16.msra.mxu0 0
    %210 = vmatpush.bf16.msra.mxu0 %v167
    %211 = vmatpush.bf16.msra.mxu0 %v166
    %212 = vmatpush.bf16.msra.mxu0 %v165
    %213 = vmatpush.bf16.msra.mxu0 %v164
    %214 = vmatmul.bf16.gmra.mxu0 %v182
    %v215 = vpop.f32.mrf.mxu0
    %v216 = vadd.f32 %v197, %v215
    %v217 = vpop.f32.mrf.mxu0
    %v218 = vadd.f32 %v199, %v217
    %219 = vmatmul.bf16.gmra.mxu0 %v185
    %v220 = vpop.f32.mrf.mxu0
    %v221 = vadd.f32 %v202, %v220
    %v222 = vpop.f32.mrf.mxu0
    %v223 = vadd.f32 %v204, %v222
    %224 = vdwg.mxu0
    %v225 = vld [vmem:[%s4] sm:$0xff]
    %v226 = vld [vmem:[%s4 + $0x8] sm:$0xff]
    %v227 = vld [vmem:[%s4 + $0x10] sm:$0xff]
    %v228 = vld [vmem:[%s4 + $0x18] sm:$0xff]
    %v229 = vadd.f32 %v216, %v225
    %v230 = vadd.f32 %v218, %v226
    %v231 = vadd.f32 %v221, %v227
    %v232 = vadd.f32 %v223, %v228
    %v233 = vld [vmem:[%s1] sm:$0xff]
    %v234 = vld [vmem:[%s1 + $0x8] sm:$0xff]
    %v235 = vld [vmem:[%s1 + $0x10] sm:$0xff]
    %v236 = vld [vmem:[%s1 + $0x18] sm:$0xff]
    %v237 = vld [vmem:[%s5] sm:$0xf]
    %v238 = vld [vmem:[%s5 + $0x4] sm:$0xf]
    %v239 = vld [vmem:[%s5 + $0x8] sm:$0xf]
    %v240 = vld [vmem:[%s5 + $0xc] sm:$0xf]
    %v241 = vld [vmem:[%s6] sm:$0x1]
    %v242 = vld [vmem:[%s7] sm:$0xf]
    %v243 = vld [vmem:[%s7 + $0x4] sm:$0xf]
    %v244 = vld [vmem:[%s7 + $0x8] sm:$0xf]
    %v245 = vld [vmem:[%s7 + $0xc] sm:$0xf]
    %v246 = vld [vmem:[%s8] sm:$0x1]
    %v247 = vld [vmem:[%s9] sm:$0xf]
    %v248 = vld [vmem:[%s9 + $0x4] sm:$0xf]
    %v249 = vld [vmem:[%s9 + $0x8] sm:$0xf]
    %v250 = vld [vmem:[%s9 + $0xc] sm:$0xf]
    %v251 = vld [vmem:[%s10] sm:$0x1]
    %v252 = vld [vmem:[%s11] sm:$0xf]
    %v253 = vld [vmem:[%s11 + $0x4] sm:$0xf]
    %v254 = vld [vmem:[%s11 + $0x8] sm:$0xf]
    %v255 = vld [vmem:[%s11 + $0xc] sm:$0xf]
    %v256 = vld [vmem:[%s12] sm:$0x1]
    %v257 = vld [vmem:[%s13] sm:$0x1]
    %v258 = vld [vmem:[%s14] sm:$0x1]
    %v259 = vld [vmem:[%s15] sm:$0x1]
    %v260 = vld [vmem:[%s16] sm:$0x1]
    %v261 = vpack.c.bf16 %v230, %v229
    %v262 = vpack.c.bf16 %v232, %v231
    %v264 = vperm.slane %v241, 0
    %v270 = vunpack.c.l.b16 %v237
    %v271 = vunpack.c.l.b16 %v238
    %v272 = vunpack.c.l.b16 %v239
    %v273 = vunpack.c.l.b16 %v240
    %v274 = vpack.c.b16 %v271, %v270
    %v275 = vpack.c.b16 %v273, %v272
    %vm278 = vcmask 261120
    %v280 = vsel %vm278, %v261, 0
    %v283 = vsel %vm278, %v262, 0
    %285 = vmatpush.bf16.msra.mxu0 0
    %286 = vmatpush.bf16.msra.mxu0 0
    %287 = vmatpush.bf16.msra.mxu0 0
    %288 = vmatpush.bf16.msra.mxu0 0
    %289 = vmatpush.bf16.msra.mxu0 0
    %290 = vmatpush.bf16.msra.mxu0 0
    %291 = vmatpush.bf16.msra.mxu0 %v275
    %292 = vmatpush.bf16.msra.mxu0 %v274
    %293 = vmatmul.bf16.gmra.mxu0 %v280
    %v294 = vpop.f32.mrf.mxu0
    %v295 = vadd.f32 %v264, %v294
    %v296 = vpop.f32.mrf.mxu0
    %v297 = vadd.f32 %v264, %v296
    %298 = vmatmul.bf16.gmra.mxu0 %v283
    %v299 = vpop.f32.mrf.mxu0
    %v300 = vadd.f32 %v264, %v299
    %v301 = vpop.f32.mrf.mxu0
    %v302 = vadd.f32 %v264, %v301
    %303 = vdwg.mxu0
    %v304 = vpack.c.bf16 %v295, %v295
    %v305 = vpack.c.bf16 %v297, %v297
    %v306 = vpack.c.bf16 %v300, %v300
    %v307 = vpack.c.bf16 %v302, %v302
    %v312 = vunpack.c.l.b16 %v304
    %v313 = vunpack.c.l.b16 %v305
    %v314 = vunpack.c.l.b16 %v306
    %v315 = vunpack.c.l.b16 %v307
    %v316 = vpack.c.b16 %v313, %v312
    %v317 = vpack.c.b16 %v315, %v314
    %318 = vrot.lane.b32.xlu0 %v316, 96
    %v319 = vpop.permute.xlu0 %318
    %320 = vrot.lane.b32.xlu0 %v317, 96
    %v321 = vpop.permute.xlu0 %320
    %vm322 = vcmask 64512
    %v324 = vsel %vm322, %v316, 0
    %v327 = vsel %vm322, %v317, 0
    %v330 = vsel %vm322, %v319, 0
    %v333 = vsel %vm322, %v321, 0
    %335 = vmatpush.bf16.xpose.msra.mxu0 0
    %336 = vmatpush.bf16.xpose.msra.mxu0 0
    %337 = vmatpush.bf16.xpose.msra.mxu0 0
    %338 = vmatpush.bf16.xpose.msra.mxu0 0
    %339 = vmatpush.bf16.xpose.msra.mxu0 0
    %340 = vmatpush.bf16.xpose.msra.mxu0 0
    %341 = vmatpush.bf16.xpose.msra.mxu0 %v333
    %342 = vmatpush.bf16.xpose.msra.mxu0 %v330
    %343 = vmatmul.bf16.gmra.mxu0 %v324
    %v344 = vpop.f32.mrf.mxu0
    %v345 = vadd.f32 0.0, %v344
    %v346 = vpop.f32.mrf.mxu0
    %v347 = vadd.f32 0.0, %v346
    %348 = vmatmul.bf16.gmra.mxu0 %v327
    %v349 = vpop.f32.mrf.mxu0
    %v350 = vadd.f32 0.0, %v349
    %v351 = vpop.f32.mrf.mxu0
    %v352 = vadd.f32 0.0, %v351
    %353 = vdwg.mxu0
    %v354 = vmul.f32 %v345, 0.35355338
    %v355 = vmul.f32 %v347, 0.35355338
    %v356 = vmul.f32 %v350, 0.35355338
    %v357 = vmul.f32 %v352, 0.35355338
    %v358 = vadd.f32 %v354, %v233
    %v359 = vadd.f32 %v355, %v234
    %v360 = vadd.f32 %v356, %v235
    %v361 = vadd.f32 %v357, %v236
    %v362 = vsel %vm278, %v358, -inf
    %363 = vmax.xlane.f32.xlu0 %v362
    %v364 = vpop.xlane.xlu0 %363
    %v365 = vsel %vm278, %v359, -inf
    %366 = vmax.xlane.f32.xlu0 %v365
    %v367 = vpop.xlane.xlu0 %366
    %v368 = vsel %vm278, %v360, -inf
    %369 = vmax.xlane.f32.xlu0 %v368
    %v370 = vpop.xlane.xlu0 %369
    %v371 = vsel %vm278, %v361, -inf
    %372 = vmax.xlane.f32.xlu0 %v371
    %v373 = vpop.xlane.xlu0 %372
    %v374 = vsub.f32 %v358, %v364
    %v375 = vsub.f32 %v359, %v367
    %v376 = vsub.f32 %v360, %v370
    %v377 = vsub.f32 %v361, %v373
    %v378 = vmul.f32 %v374, 1.442695
    %v379 = vpow.pop %v378
    %v380 = vmul.f32 %v375, 1.442695
    %v381 = vpow.pop %v380
    %v382 = vmul.f32 %v376, 1.442695
    %v383 = vpow.pop %v382
    %v384 = vmul.f32 %v377, 1.442695
    %v385 = vpow.pop %v384
    %v386 = vsel %vm278, %v379, 0.0
    %387 = vadd.xlane.f32.xlu0 %v386
    %v388 = vpop.xlane.xlu0 %387
    %v389 = vsel %vm278, %v381, 0.0
    %390 = vadd.xlane.f32.xlu0 %v389
    %v391 = vpop.xlane.xlu0 %390
    %v392 = vsel %vm278, %v383, 0.0
    %393 = vadd.xlane.f32.xlu0 %v392
    %v394 = vpop.xlane.xlu0 %393
    %v395 = vsel %vm278, %v385, 0.0
    %396 = vadd.xlane.f32.xlu0 %v395
    %v397 = vpop.xlane.xlu0 %396
    %v398 = vrcp.pop %v388
    %v399 = vmul.f32 %v388, %v398
    %v400 = vsub.f32 1.0, %v399
    %v401 = vmul.f32 %v398, %v400
    %v402 = vadd.f32 %v398, %v401
    %vm403 = vweird.f32 %v388
    %vm404 = vweird.f32 %v398
    %vm405 = vmor %vm403, %vm404
    %v406 = vsel %vm405, %v398, %v402
    %v407 = vand.u32 2147483647, %v388
    %vm408 = vcmp.eq.f32.partialorder %v407, 8.507059e+37
    %v409 = vand.u32 %v388, 2147483648
    %v410 = vor.u32 1.1754944e-38, %v409
    %v411 = vsel %vm408, %v410, %v406
    %v412 = vmul.f32 %v379, %v411
    %v413 = vrcp.pop %v391
    %v414 = vmul.f32 %v391, %v413
    %v415 = vsub.f32 1.0, %v414
    %v416 = vmul.f32 %v413, %v415
    %v417 = vadd.f32 %v413, %v416
    %vm418 = vweird.f32 %v391
    %vm419 = vweird.f32 %v413
    %vm420 = vmor %vm418, %vm419
    %v421 = vsel %vm420, %v413, %v417
    %v422 = vand.u32 2147483647, %v391
    %vm423 = vcmp.eq.f32.partialorder %v422, 8.507059e+37
    %v424 = vand.u32 %v391, 2147483648
    %v425 = vor.u32 1.1754944e-38, %v424
    %v426 = vsel %vm423, %v425, %v421
    %v427 = vmul.f32 %v381, %v426
    %v428 = vrcp.pop %v394
    %v429 = vmul.f32 %v394, %v428
    %v430 = vsub.f32 1.0, %v429
    %v431 = vmul.f32 %v428, %v430
    %v432 = vadd.f32 %v428, %v431
    %vm433 = vweird.f32 %v394
    %vm434 = vweird.f32 %v428
    %vm435 = vmor %vm433, %vm434
    %v436 = vsel %vm435, %v428, %v432
    %v437 = vand.u32 2147483647, %v394
    %vm438 = vcmp.eq.f32.partialorder %v437, 8.507059e+37
    %v439 = vand.u32 %v394, 2147483648
    %v440 = vor.u32 1.1754944e-38, %v439
    %v441 = vsel %vm438, %v440, %v436
    %v442 = vmul.f32 %v383, %v441
    %v443 = vrcp.pop %v397
    %v444 = vmul.f32 %v397, %v443
    %v445 = vsub.f32 1.0, %v444
    %v446 = vmul.f32 %v443, %v445
    %v447 = vadd.f32 %v443, %v446
    %vm448 = vweird.f32 %v397
    %vm449 = vweird.f32 %v443
    %vm450 = vmor %vm448, %vm449
    %v451 = vsel %vm450, %v443, %v447
    %v452 = vand.u32 2147483647, %v397
    %vm453 = vcmp.eq.f32.partialorder %v452, 8.507059e+37
    %v454 = vand.u32 %v397, 2147483648
    %v455 = vor.u32 1.1754944e-38, %v454
    %v456 = vsel %vm453, %v455, %v451
    %v457 = vmul.f32 %v385, %v456
    %v458 = vpack.c.bf16 %v427, %v412
    %v459 = vpack.c.bf16 %v457, %v442
    %460 = vrot.lane.b32.xlu0 %v316, 64
    %v461 = vpop.permute.xlu0 %460
    %462 = vrot.lane.b32.xlu0 %v317, 64
    %v463 = vpop.permute.xlu0 %462
    %v467 = vsel %vm278, %v458, 0
    %v470 = vsel %vm278, %v459, 0
    %472 = vmatpush.bf16.msra.mxu0 0
    %473 = vmatpush.bf16.msra.mxu0 0
    %474 = vmatpush.bf16.msra.mxu0 0
    %475 = vmatpush.bf16.msra.mxu0 0
    %476 = vmatpush.bf16.msra.mxu0 0
    %477 = vmatpush.bf16.msra.mxu0 0
    %478 = vmatpush.bf16.msra.mxu0 %v463
    %479 = vmatpush.bf16.msra.mxu0 %v461
    %480 = vmatmul.bf16.gmra.mxu0 %v467
    %v481 = vpop.f32.mrf.mxu0
    %v482 = vadd.f32 0.0, %v481
    %v483 = vpop.f32.mrf.mxu0
    %v484 = vadd.f32 0.0, %v483
    %485 = vmatmul.bf16.gmra.mxu0 %v470
    %v486 = vpop.f32.mrf.mxu0
    %v487 = vadd.f32 0.0, %v486
    %v488 = vpop.f32.mrf.mxu0
    %v489 = vadd.f32 0.0, %v488
    %490 = vdwg.mxu0
    %v491 = vpack.c.bf16 %v484, %v482
    %v492 = vpack.c.bf16 %v489, %v487
    %493 = vrot.lane.b32.xlu0 %v316, 120
    %v494 = vpop.permute.xlu0 %493
    %495 = vrot.lane.b32.xlu0 %v317, 120
    %v496 = vpop.permute.xlu0 %495
    %497 = vrot.lane.b32.xlu0 %v316, 88
    %v498 = vpop.permute.xlu0 %497
    %499 = vrot.lane.b32.xlu0 %v317, 88
    %v500 = vpop.permute.xlu0 %499
    %v502 = vsel %vm322, %v494, 0
    %v505 = vsel %vm322, %v496, 0
    %v508 = vsel %vm322, %v498, 0
    %v511 = vsel %vm322, %v500, 0
    %513 = vmatpush.bf16.xpose.msra.mxu0 0
    %514 = vmatpush.bf16.xpose.msra.mxu0 0
    %515 = vmatpush.bf16.xpose.msra.mxu0 0
    %516 = vmatpush.bf16.xpose.msra.mxu0 0
    %517 = vmatpush.bf16.xpose.msra.mxu0 0
    %518 = vmatpush.bf16.xpose.msra.mxu0 0
    %519 = vmatpush.bf16.xpose.msra.mxu0 %v511
    %520 = vmatpush.bf16.xpose.msra.mxu0 %v508
    %521 = vmatmul.bf16.gmra.mxu0 %v502
    %v522 = vpop.f32.mrf.mxu0
    %v523 = vadd.f32 0.0, %v522
    %v524 = vpop.f32.mrf.mxu0
    %v525 = vadd.f32 0.0, %v524
    %526 = vmatmul.bf16.gmra.mxu0 %v505
    %v527 = vpop.f32.mrf.mxu0
    %v528 = vadd.f32 0.0, %v527
    %v529 = vpop.f32.mrf.mxu0
    %v530 = vadd.f32 0.0, %v529
    %531 = vdwg.mxu0
    %v532 = vmul.f32 %v523, 0.35355338
    %v533 = vmul.f32 %v525, 0.35355338
    %v534 = vmul.f32 %v528, 0.35355338
    %v535 = vmul.f32 %v530, 0.35355338
    %v536 = vadd.f32 %v532, %v233
    %v537 = vadd.f32 %v533, %v234
    %v538 = vadd.f32 %v534, %v235
    %v539 = vadd.f32 %v535, %v236
    %v540 = vsel %vm278, %v536, -inf
    %541 = vmax.xlane.f32.xlu0 %v540
    %v542 = vpop.xlane.xlu0 %541
    %v543 = vsel %vm278, %v537, -inf
    %544 = vmax.xlane.f32.xlu0 %v543
    %v545 = vpop.xlane.xlu0 %544
    %v546 = vsel %vm278, %v538, -inf
    %547 = vmax.xlane.f32.xlu0 %v546
    %v548 = vpop.xlane.xlu0 %547
    %v549 = vsel %vm278, %v539, -inf
    %550 = vmax.xlane.f32.xlu0 %v549
    %v551 = vpop.xlane.xlu0 %550
    %v552 = vsub.f32 %v536, %v542
    %v553 = vsub.f32 %v537, %v545
    %v554 = vsub.f32 %v538, %v548
    %v555 = vsub.f32 %v539, %v551
    %v556 = vmul.f32 %v552, 1.442695
    %v557 = vpow.pop %v556
    %v558 = vmul.f32 %v553, 1.442695
    %v559 = vpow.pop %v558
    %v560 = vmul.f32 %v554, 1.442695
    %v561 = vpow.pop %v560
    %v562 = vmul.f32 %v555, 1.442695
    %v563 = vpow.pop %v562
    %v564 = vsel %vm278, %v557, 0.0
    %565 = vadd.xlane.f32.xlu0 %v564
    %v566 = vpop.xlane.xlu0 %565
    %v567 = vsel %vm278, %v559, 0.0
    %568 = vadd.xlane.f32.xlu0 %v567
    %v569 = vpop.xlane.xlu0 %568
    %v570 = vsel %vm278, %v561, 0.0
    %571 = vadd.xlane.f32.xlu0 %v570
    %v572 = vpop.xlane.xlu0 %571
    %v573 = vsel %vm278, %v563, 0.0
    %574 = vadd.xlane.f32.xlu0 %v573
    %v575 = vpop.xlane.xlu0 %574
    %v576 = vrcp.pop %v566
    %v577 = vmul.f32 %v566, %v576
    %v578 = vsub.f32 1.0, %v577
    %v579 = vmul.f32 %v576, %v578
    %v580 = vadd.f32 %v576, %v579
    %vm581 = vweird.f32 %v566
    %vm582 = vweird.f32 %v576
    %vm583 = vmor %vm581, %vm582
    %v584 = vsel %vm583, %v576, %v580
    %v585 = vand.u32 2147483647, %v566
    %vm586 = vcmp.eq.f32.partialorder %v585, 8.507059e+37
    %v587 = vand.u32 %v566, 2147483648
    %v588 = vor.u32 1.1754944e-38, %v587
    %v589 = vsel %vm586, %v588, %v584
    %v590 = vmul.f32 %v557, %v589
    %v591 = vrcp.pop %v569
    %v592 = vmul.f32 %v569, %v591
    %v593 = vsub.f32 1.0, %v592
    %v594 = vmul.f32 %v591, %v593
    %v595 = vadd.f32 %v591, %v594
    %vm596 = vweird.f32 %v569
    %vm597 = vweird.f32 %v591
    %vm598 = vmor %vm596, %vm597
    %v599 = vsel %vm598, %v591, %v595
    %v600 = vand.u32 2147483647, %v569
    %vm601 = vcmp.eq.f32.partialorder %v600, 8.507059e+37
    %v602 = vand.u32 %v569, 2147483648
    %v603 = vor.u32 1.1754944e-38, %v602
    %v604 = vsel %vm601, %v603, %v599
    %v605 = vmul.f32 %v559, %v604
    %v606 = vrcp.pop %v572
    %v607 = vmul.f32 %v572, %v606
    %v608 = vsub.f32 1.0, %v607
    %v609 = vmul.f32 %v606, %v608
    %v610 = vadd.f32 %v606, %v609
    %vm611 = vweird.f32 %v572
    %vm612 = vweird.f32 %v606
    %vm613 = vmor %vm611, %vm612
    %v614 = vsel %vm613, %v606, %v610
    %v615 = vand.u32 2147483647, %v572
    %vm616 = vcmp.eq.f32.partialorder %v615, 8.507059e+37
    %v617 = vand.u32 %v572, 2147483648
    %v618 = vor.u32 1.1754944e-38, %v617
    %v619 = vsel %vm616, %v618, %v614
    %v620 = vmul.f32 %v561, %v619
    %v621 = vrcp.pop %v575
    %v622 = vmul.f32 %v575, %v621
    %v623 = vsub.f32 1.0, %v622
    %v624 = vmul.f32 %v621, %v623
    %v625 = vadd.f32 %v621, %v624
    %vm626 = vweird.f32 %v575
    %vm627 = vweird.f32 %v621
    %vm628 = vmor %vm626, %vm627
    %v629 = vsel %vm628, %v621, %v625
    %v630 = vand.u32 2147483647, %v575
    %vm631 = vcmp.eq.f32.partialorder %v630, 8.507059e+37
    %v632 = vand.u32 %v575, 2147483648
    %v633 = vor.u32 1.1754944e-38, %v632
    %v634 = vsel %vm631, %v633, %v629
    %v635 = vmul.f32 %v563, %v634
    %v636 = vpack.c.bf16 %v605, %v590
    %v637 = vpack.c.bf16 %v635, %v620
    %638 = vrot.lane.b32.xlu0 %v316, 56
    %v639 = vpop.permute.xlu0 %638
    %640 = vrot.lane.b32.xlu0 %v317, 56
    %v641 = vpop.permute.xlu0 %640
    %v645 = vsel %vm278, %v636, 0
    %v648 = vsel %vm278, %v637, 0
    %650 = vmatpush.bf16.msra.mxu0 0
    %651 = vmatpush.bf16.msra.mxu0 0
    %652 = vmatpush.bf16.msra.mxu0 0
    %653 = vmatpush.bf16.msra.mxu0 0
    %654 = vmatpush.bf16.msra.mxu0 0
    %655 = vmatpush.bf16.msra.mxu0 0
    %656 = vmatpush.bf16.msra.mxu0 %v641
    %657 = vmatpush.bf16.msra.mxu0 %v639
    %658 = vmatmul.bf16.gmra.mxu0 %v645
    %v659 = vpop.f32.mrf.mxu0
    %v660 = vadd.f32 0.0, %v659
    %v661 = vpop.f32.mrf.mxu0
    %v662 = vadd.f32 0.0, %v661
    %663 = vmatmul.bf16.gmra.mxu0 %v648
    %v664 = vpop.f32.mrf.mxu0
    %v665 = vadd.f32 0.0, %v664
    %v666 = vpop.f32.mrf.mxu0
    %v667 = vadd.f32 0.0, %v666
    %668 = vdwg.mxu0
    %v669 = vpack.c.bf16 %v662, %v660
    %v670 = vpack.c.bf16 %v667, %v665
    %v672 = vsel %vm322, %v669, 0
    %v675 = vsel %vm322, %v670, 0
    %vm677 = vcmask 1043456
    %v679 = vsel %vm677, %v243, 0
    %681 = vmatpush.bf16.msra.mxu0 0
    %682 = vmatpush.bf16.msra.mxu0 0
    %683 = vmatpush.bf16.msra.mxu0 0
    %684 = vmatpush.bf16.msra.mxu0 0
    %685 = vmatpush.bf16.msra.mxu0 0
    %686 = vmatpush.bf16.msra.mxu0 0
    %687 = vmatpush.bf16.msra.mxu0 0
    %688 = vmatpush.bf16.msra.mxu0 %v679
    %689 = vmatmul.bf16.gmra.mxu0 %v672
    %v690 = vpop.f32.mrf.mxu0
    %v691 = vadd.f32 0.0, %v690
    %v692 = vpop.f32.mrf.mxu0
    %v693 = vadd.f32 0.0, %v692
    %694 = vmatmul.bf16.gmra.mxu0 %v675
    %v695 = vpop.f32.mrf.mxu0
    %v696 = vadd.f32 0.0, %v695
    %v697 = vpop.f32.mrf.mxu0
    %v698 = vadd.f32 0.0, %v697
    %699 = vdwg.mxu0
    %v701 = vsel %vm322, %v491, 0
    %v704 = vsel %vm322, %v492, 0
    %v707 = vsel %vm677, %v242, 0
    %709 = vmatpush.bf16.msra.mxu0 0
    %710 = vmatpush.bf16.msra.mxu0 0
    %711 = vmatpush.bf16.msra.mxu0 0
    %712 = vmatpush.bf16.msra.mxu0 0
    %713 = vmatpush.bf16.msra.mxu0 0
    %714 = vmatpush.bf16.msra.mxu0 0
    %715 = vmatpush.bf16.msra.mxu0 0
    %716 = vmatpush.bf16.msra.mxu0 %v707
    %717 = vmatmul.bf16.gmra.mxu0 %v701
    %v718 = vpop.f32.mrf.mxu0
    %v719 = vadd.f32 %v691, %v718
    %v720 = vpop.f32.mrf.mxu0
    %v721 = vadd.f32 %v693, %v720
    %722 = vmatmul.bf16.gmra.mxu0 %v704
    %v723 = vpop.f32.mrf.mxu0
    %v724 = vadd.f32 %v696, %v723
    %v725 = vpop.f32.mrf.mxu0
    %v726 = vadd.f32 %v698, %v725
    %727 = vdwg.mxu0
    %728 = vrot.lane.b32.xlu0 %v316, 112
    %v729 = vpop.permute.xlu0 %728
    %730 = vrot.lane.b32.xlu0 %v317, 112
    %v731 = vpop.permute.xlu0 %730
    %732 = vrot.lane.b32.xlu0 %v316, 80
    %v733 = vpop.permute.xlu0 %732
    %734 = vrot.lane.b32.xlu0 %v317, 80
    %v735 = vpop.permute.xlu0 %734
    %v737 = vsel %vm322, %v729, 0
    %v740 = vsel %vm322, %v731, 0
    %v743 = vsel %vm322, %v733, 0
    %v746 = vsel %vm322, %v735, 0
    %748 = vmatpush.bf16.xpose.msra.mxu0 0
    %749 = vmatpush.bf16.xpose.msra.mxu0 0
    %750 = vmatpush.bf16.xpose.msra.mxu0 0
    %751 = vmatpush.bf16.xpose.msra.mxu0 0
    %752 = vmatpush.bf16.xpose.msra.mxu0 0
    %753 = vmatpush.bf16.xpose.msra.mxu0 0
    %754 = vmatpush.bf16.xpose.msra.mxu0 %v746
    %755 = vmatpush.bf16.xpose.msra.mxu0 %v743
    %756 = vmatmul.bf16.gmra.mxu0 %v737
    %v757 = vpop.f32.mrf.mxu0
    %v758 = vadd.f32 0.0, %v757
    %v759 = vpop.f32.mrf.mxu0
    %v760 = vadd.f32 0.0, %v759
    %761 = vmatmul.bf16.gmra.mxu0 %v740
    %v762 = vpop.f32.mrf.mxu0
    %v763 = vadd.f32 0.0, %v762
    %v764 = vpop.f32.mrf.mxu0
    %v765 = vadd.f32 0.0, %v764
    %766 = vdwg.mxu0
    %v767 = vmul.f32 %v758, 0.35355338
    %v768 = vmul.f32 %v760, 0.35355338
    %v769 = vmul.f32 %v763, 0.35355338
    %v770 = vmul.f32 %v765, 0.35355338
    %v771 = vadd.f32 %v767, %v233
    %v772 = vadd.f32 %v768, %v234
    %v773 = vadd.f32 %v769, %v235
    %v774 = vadd.f32 %v770, %v236
    %v775 = vsel %vm278, %v771, -inf
    %776 = vmax.xlane.f32.xlu0 %v775
    %v777 = vpop.xlane.xlu0 %776
    %v778 = vsel %vm278, %v772, -inf
    %779 = vmax.xlane.f32.xlu0 %v778
    %v780 = vpop.xlane.xlu0 %779
    %v781 = vsel %vm278, %v773, -inf
    %782 = vmax.xlane.f32.xlu0 %v781
    %v783 = vpop.xlane.xlu0 %782
    %v784 = vsel %vm278, %v774, -inf
    %785 = vmax.xlane.f32.xlu0 %v784
    %v786 = vpop.xlane.xlu0 %785
    %v787 = vsub.f32 %v771, %v777
    %v788 = vsub.f32 %v772, %v780
    %v789 = vsub.f32 %v773, %v783
    %v790 = vsub.f32 %v774, %v786
    %v791 = vmul.f32 %v787, 1.442695
    %v792 = vpow.pop %v791
    %v793 = vmul.f32 %v788, 1.442695
    %v794 = vpow.pop %v793
    %v795 = vmul.f32 %v789, 1.442695
    %v796 = vpow.pop %v795
    %v797 = vmul.f32 %v790, 1.442695
    %v798 = vpow.pop %v797
    %v799 = vsel %vm278, %v792, 0.0
    %800 = vadd.xlane.f32.xlu0 %v799
    %v801 = vpop.xlane.xlu0 %800
    %v802 = vsel %vm278, %v794, 0.0
    %803 = vadd.xlane.f32.xlu0 %v802
    %v804 = vpop.xlane.xlu0 %803
    %v805 = vsel %vm278, %v796, 0.0
    %806 = vadd.xlane.f32.xlu0 %v805
    %v807 = vpop.xlane.xlu0 %806
    %v808 = vsel %vm278, %v798, 0.0
    %809 = vadd.xlane.f32.xlu0 %v808
    %v810 = vpop.xlane.xlu0 %809
    %v811 = vrcp.pop %v801
    %v812 = vmul.f32 %v801, %v811
    %v813 = vsub.f32 1.0, %v812
    %v814 = vmul.f32 %v811, %v813
    %v815 = vadd.f32 %v811, %v814
    %vm816 = vweird.f32 %v801
    %vm817 = vweird.f32 %v811
    %vm818 = vmor %vm816, %vm817
    %v819 = vsel %vm818, %v811, %v815
    %v820 = vand.u32 2147483647, %v801
    %vm821 = vcmp.eq.f32.partialorder %v820, 8.507059e+37
    %v822 = vand.u32 %v801, 2147483648
    %v823 = vor.u32 1.1754944e-38, %v822
    %v824 = vsel %vm821, %v823, %v819
    %v825 = vmul.f32 %v792, %v824
    %v826 = vrcp.pop %v804
    %v827 = vmul.f32 %v804, %v826
    %v828 = vsub.f32 1.0, %v827
    %v829 = vmul.f32 %v826, %v828
    %v830 = vadd.f32 %v826, %v829
    %vm831 = vweird.f32 %v804
    %vm832 = vweird.f32 %v826
    %vm833 = vmor %vm831, %vm832
    %v834 = vsel %vm833, %v826, %v830
    %v835 = vand.u32 2147483647, %v804
    %vm836 = vcmp.eq.f32.partialorder %v835, 8.507059e+37
    %v837 = vand.u32 %v804, 2147483648
    %v838 = vor.u32 1.1754944e-38, %v837
    %v839 = vsel %vm836, %v838, %v834
    %v840 = vmul.f32 %v794, %v839
    %v841 = vrcp.pop %v807
    %v842 = vmul.f32 %v807, %v841
    %v843 = vsub.f32 1.0, %v842
    %v844 = vmul.f32 %v841, %v843
    %v845 = vadd.f32 %v841, %v844
    %vm846 = vweird.f32 %v807
    %vm847 = vweird.f32 %v841
    %vm848 = vmor %vm846, %vm847
    %v849 = vsel %vm848, %v841, %v845
    %v850 = vand.u32 2147483647, %v807
    %vm851 = vcmp.eq.f32.partialorder %v850, 8.507059e+37
    %v852 = vand.u32 %v807, 2147483648
    %v853 = vor.u32 1.1754944e-38, %v852
    %v854 = vsel %vm851, %v853, %v849
    %v855 = vmul.f32 %v796, %v854
    %v856 = vrcp.pop %v810
    %v857 = vmul.f32 %v810, %v856
    %v858 = vsub.f32 1.0, %v857
    %v859 = vmul.f32 %v856, %v858
    %v860 = vadd.f32 %v856, %v859
    %vm861 = vweird.f32 %v810
    %vm862 = vweird.f32 %v856
    %vm863 = vmor %vm861, %vm862
    %v864 = vsel %vm863, %v856, %v860
    %v865 = vand.u32 2147483647, %v810
    %vm866 = vcmp.eq.f32.partialorder %v865, 8.507059e+37
    %v867 = vand.u32 %v810, 2147483648
    %v868 = vor.u32 1.1754944e-38, %v867
    %v869 = vsel %vm866, %v868, %v864
    %v870 = vmul.f32 %v798, %v869
    %v871 = vpack.c.bf16 %v840, %v825
    %v872 = vpack.c.bf16 %v870, %v855
    %873 = vrot.lane.b32.xlu0 %v316, 48
    %v874 = vpop.permute.xlu0 %873
    %875 = vrot.lane.b32.xlu0 %v317, 48
    %v876 = vpop.permute.xlu0 %875
    %v880 = vsel %vm278, %v871, 0
    %v883 = vsel %vm278, %v872, 0
    %885 = vmatpush.bf16.msra.mxu0 0
    %886 = vmatpush.bf16.msra.mxu0 0
    %887 = vmatpush.bf16.msra.mxu0 0
    %888 = vmatpush.bf16.msra.mxu0 0
    %889 = vmatpush.bf16.msra.mxu0 0
    %890 = vmatpush.bf16.msra.mxu0 0
    %891 = vmatpush.bf16.msra.mxu0 %v876
    %892 = vmatpush.bf16.msra.mxu0 %v874
    %893 = vmatmul.bf16.gmra.mxu0 %v880
    %v894 = vpop.f32.mrf.mxu0
    %v895 = vadd.f32 0.0, %v894
    %v896 = vpop.f32.mrf.mxu0
    %v897 = vadd.f32 0.0, %v896
    %898 = vmatmul.bf16.gmra.mxu0 %v883
    %v899 = vpop.f32.mrf.mxu0
    %v900 = vadd.f32 0.0, %v899
    %v901 = vpop.f32.mrf.mxu0
    %v902 = vadd.f32 0.0, %v901
    %903 = vdwg.mxu0
    %v904 = vpack.c.bf16 %v897, %v895
    %v905 = vpack.c.bf16 %v902, %v900
    %v907 = vsel %vm322, %v904, 0
    %v910 = vsel %vm322, %v905, 0
    %v913 = vsel %vm677, %v244, 0
    %915 = vmatpush.bf16.msra.mxu0 0
    %916 = vmatpush.bf16.msra.mxu0 0
    %917 = vmatpush.bf16.msra.mxu0 0
    %918 = vmatpush.bf16.msra.mxu0 0
    %919 = vmatpush.bf16.msra.mxu0 0
    %920 = vmatpush.bf16.msra.mxu0 0
    %921 = vmatpush.bf16.msra.mxu0 0
    %922 = vmatpush.bf16.msra.mxu0 %v913
    %923 = vmatmul.bf16.gmra.mxu0 %v907
    %v924 = vpop.f32.mrf.mxu0
    %v925 = vadd.f32 0.0, %v924
    %v926 = vpop.f32.mrf.mxu0
    %v927 = vadd.f32 0.0, %v926
    %928 = vmatmul.bf16.gmra.mxu0 %v910
    %v929 = vpop.f32.mrf.mxu0
    %v930 = vadd.f32 0.0, %v929
    %v931 = vpop.f32.mrf.mxu0
    %v932 = vadd.f32 0.0, %v931
    %933 = vdwg.mxu0
    %v934 = vadd.f32 %v719, %v925
    %v935 = vadd.f32 %v721, %v927
    %v936 = vadd.f32 %v724, %v930
    %v937 = vadd.f32 %v726, %v932
    %938 = vrot.lane.b32.xlu0 %v316, 104
    %v939 = vpop.permute.xlu0 %938
    %940 = vrot.lane.b32.xlu0 %v317, 104
    %v941 = vpop.permute.xlu0 %940
    %942 = vrot.lane.b32.xlu0 %v316, 72
    %v943 = vpop.permute.xlu0 %942
    %944 = vrot.lane.b32.xlu0 %v317, 72
    %v945 = vpop.permute.xlu0 %944
    %v947 = vsel %vm322, %v939, 0
    %v950 = vsel %vm322, %v941, 0
    %v953 = vsel %vm322, %v943, 0
    %v956 = vsel %vm322, %v945, 0
    %958 = vmatpush.bf16.xpose.msra.mxu0 0
    %959 = vmatpush.bf16.xpose.msra.mxu0 0
    %960 = vmatpush.bf16.xpose.msra.mxu0 0
    %961 = vmatpush.bf16.xpose.msra.mxu0 0
    %962 = vmatpush.bf16.xpose.msra.mxu0 0
    %963 = vmatpush.bf16.xpose.msra.mxu0 0
    %964 = vmatpush.bf16.xpose.msra.mxu0 %v956
    %965 = vmatpush.bf16.xpose.msra.mxu0 %v953
    %966 = vmatmul.bf16.gmra.mxu0 %v947
    %v967 = vpop.f32.mrf.mxu0
    %v968 = vadd.f32 0.0, %v967
    %v969 = vpop.f32.mrf.mxu0
    %v970 = vadd.f32 0.0, %v969
    %971 = vmatmul.bf16.gmra.mxu0 %v950
    %v972 = vpop.f32.mrf.mxu0
    %v973 = vadd.f32 0.0, %v972
    %v974 = vpop.f32.mrf.mxu0
    %v975 = vadd.f32 0.0, %v974
    %976 = vdwg.mxu0
    %v977 = vmul.f32 %v968, 0.35355338
    %v978 = vmul.f32 %v970, 0.35355338
    %v979 = vmul.f32 %v973, 0.35355338
    %v980 = vmul.f32 %v975, 0.35355338
    %v981 = vadd.f32 %v977, %v233
    %v982 = vadd.f32 %v978, %v234
    %v983 = vadd.f32 %v979, %v235
    %v984 = vadd.f32 %v980, %v236
    %v985 = vsel %vm278, %v981, -inf
    %986 = vmax.xlane.f32.xlu0 %v985
    %v987 = vpop.xlane.xlu0 %986
    %v988 = vsel %vm278, %v982, -inf
    %989 = vmax.xlane.f32.xlu0 %v988
    %v990 = vpop.xlane.xlu0 %989
    %v991 = vsel %vm278, %v983, -inf
    %992 = vmax.xlane.f32.xlu0 %v991
    %v993 = vpop.xlane.xlu0 %992
    %v994 = vsel %vm278, %v984, -inf
    %995 = vmax.xlane.f32.xlu0 %v994
    %v996 = vpop.xlane.xlu0 %995
    %v997 = vsub.f32 %v981, %v987
    %v998 = vsub.f32 %v982, %v990
    %v999 = vsub.f32 %v983, %v993
    %v1000 = vsub.f32 %v984, %v996
    %v1001 = vmul.f32 %v997, 1.442695
    %v1002 = vpow.pop %v1001
    %v1003 = vmul.f32 %v998, 1.442695
    %v1004 = vpow.pop %v1003
    %v1005 = vmul.f32 %v999, 1.442695
    %v1006 = vpow.pop %v1005
    %v1007 = vmul.f32 %v1000, 1.442695
    %v1008 = vpow.pop %v1007
    %v1009 = vsel %vm278, %v1002, 0.0
    %1010 = vadd.xlane.f32.xlu0 %v1009
    %v1011 = vpop.xlane.xlu0 %1010
    %v1012 = vsel %vm278, %v1004, 0.0
    %1013 = vadd.xlane.f32.xlu0 %v1012
    %v1014 = vpop.xlane.xlu0 %1013
    %v1015 = vsel %vm278, %v1006, 0.0
    %1016 = vadd.xlane.f32.xlu0 %v1015
    %v1017 = vpop.xlane.xlu0 %1016
    %v1018 = vsel %vm278, %v1008, 0.0
    %1019 = vadd.xlane.f32.xlu0 %v1018
    %v1020 = vpop.xlane.xlu0 %1019
    %v1021 = vrcp.pop %v1011
    %v1022 = vmul.f32 %v1011, %v1021
    %v1023 = vsub.f32 1.0, %v1022
    %v1024 = vmul.f32 %v1021, %v1023
    %v1025 = vadd.f32 %v1021, %v1024
    %vm1026 = vweird.f32 %v1011
    %vm1027 = vweird.f32 %v1021
    %vm1028 = vmor %vm1026, %vm1027
    %v1029 = vsel %vm1028, %v1021, %v1025
    %v1030 = vand.u32 2147483647, %v1011
    %vm1031 = vcmp.eq.f32.partialorder %v1030, 8.507059e+37
    %v1032 = vand.u32 %v1011, 2147483648
    %v1033 = vor.u32 1.1754944e-38, %v1032
    %v1034 = vsel %vm1031, %v1033, %v1029
    %v1035 = vmul.f32 %v1002, %v1034
    %v1036 = vrcp.pop %v1014
    %v1037 = vmul.f32 %v1014, %v1036
    %v1038 = vsub.f32 1.0, %v1037
    %v1039 = vmul.f32 %v1036, %v1038
    %v1040 = vadd.f32 %v1036, %v1039
    %vm1041 = vweird.f32 %v1014
    %vm1042 = vweird.f32 %v1036
    %vm1043 = vmor %vm1041, %vm1042
    %v1044 = vsel %vm1043, %v1036, %v1040
    %v1045 = vand.u32 2147483647, %v1014
    %vm1046 = vcmp.eq.f32.partialorder %v1045, 8.507059e+37
    %v1047 = vand.u32 %v1014, 2147483648
    %v1048 = vor.u32 1.1754944e-38, %v1047
    %v1049 = vsel %vm1046, %v1048, %v1044
    %v1050 = vmul.f32 %v1004, %v1049
    %v1051 = vrcp.pop %v1017
    %v1052 = vmul.f32 %v1017, %v1051
    %v1053 = vsub.f32 1.0, %v1052
    %v1054 = vmul.f32 %v1051, %v1053
    %v1055 = vadd.f32 %v1051, %v1054
    %vm1056 = vweird.f32 %v1017
    %vm1057 = vweird.f32 %v1051
    %vm1058 = vmor %vm1056, %vm1057
    %v1059 = vsel %vm1058, %v1051, %v1055
    %v1060 = vand.u32 2147483647, %v1017
    %vm1061 = vcmp.eq.f32.partialorder %v1060, 8.507059e+37
    %v1062 = vand.u32 %v1017, 2147483648
    %v1063 = vor.u32 1.1754944e-38, %v1062
    %v1064 = vsel %vm1061, %v1063, %v1059
    %v1065 = vmul.f32 %v1006, %v1064
    %v1066 = vrcp.pop %v1020
    %v1067 = vmul.f32 %v1020, %v1066
    %v1068 = vsub.f32 1.0, %v1067
    %v1069 = vmul.f32 %v1066, %v1068
    %v1070 = vadd.f32 %v1066, %v1069
    %vm1071 = vweird.f32 %v1020
    %vm1072 = vweird.f32 %v1066
    %vm1073 = vmor %vm1071, %vm1072
    %v1074 = vsel %vm1073, %v1066, %v1070
    %v1075 = vand.u32 2147483647, %v1020
    %vm1076 = vcmp.eq.f32.partialorder %v1075, 8.507059e+37
    %v1077 = vand.u32 %v1020, 2147483648
    %v1078 = vor.u32 1.1754944e-38, %v1077
    %v1079 = vsel %vm1076, %v1078, %v1074
    %v1080 = vmul.f32 %v1008, %v1079
    %v1081 = vpack.c.bf16 %v1050, %v1035
    %v1082 = vpack.c.bf16 %v1080, %v1065
    %1083 = vrot.lane.b32.xlu0 %v316, 40
    %v1084 = vpop.permute.xlu0 %1083
    %1085 = vrot.lane.b32.xlu0 %v317, 40
    %v1086 = vpop.permute.xlu0 %1085
    %v1090 = vsel %vm278, %v1081, 0
    %v1093 = vsel %vm278, %v1082, 0
    %1095 = vmatpush.bf16.msra.mxu0 0
    %1096 = vmatpush.bf16.msra.mxu0 0
    %1097 = vmatpush.bf16.msra.mxu0 0
    %1098 = vmatpush.bf16.msra.mxu0 0
    %1099 = vmatpush.bf16.msra.mxu0 0
    %1100 = vmatpush.bf16.msra.mxu0 0
    %1101 = vmatpush.bf16.msra.mxu0 %v1086
    %1102 = vmatpush.bf16.msra.mxu0 %v1084
    %1103 = vmatmul.bf16.gmra.mxu0 %v1090
    %v1104 = vpop.f32.mrf.mxu0
    %v1105 = vadd.f32 0.0, %v1104
    %v1106 = vpop.f32.mrf.mxu0
    %v1107 = vadd.f32 0.0, %v1106
    %1108 = vmatmul.bf16.gmra.mxu0 %v1093
    %v1109 = vpop.f32.mrf.mxu0
    %v1110 = vadd.f32 0.0, %v1109
    %v1111 = vpop.f32.mrf.mxu0
    %v1112 = vadd.f32 0.0, %v1111
    %1113 = vdwg.mxu0
    %v1114 = vpack.c.bf16 %v1107, %v1105
    %v1115 = vpack.c.bf16 %v1112, %v1110
    %v1117 = vsel %vm322, %v1114, 0
    %v1120 = vsel %vm322, %v1115, 0
    %v1123 = vsel %vm677, %v245, 0
    %1125 = vmatpush.bf16.msra.mxu0 0
    %1126 = vmatpush.bf16.msra.mxu0 0
    %1127 = vmatpush.bf16.msra.mxu0 0
    %1128 = vmatpush.bf16.msra.mxu0 0
    %1129 = vmatpush.bf16.msra.mxu0 0
    %1130 = vmatpush.bf16.msra.mxu0 0
    %1131 = vmatpush.bf16.msra.mxu0 0
    %1132 = vmatpush.bf16.msra.mxu0 %v1123
    %1133 = vmatmul.bf16.gmra.mxu0 %v1117
    %v1134 = vpop.f32.mrf.mxu0
    %v1135 = vadd.f32 0.0, %v1134
    %v1136 = vpop.f32.mrf.mxu0
    %v1137 = vadd.f32 0.0, %v1136
    %1138 = vmatmul.bf16.gmra.mxu0 %v1120
    %v1139 = vpop.f32.mrf.mxu0
    %v1140 = vadd.f32 0.0, %v1139
    %v1141 = vpop.f32.mrf.mxu0
    %v1142 = vadd.f32 0.0, %v1141
    %1143 = vdwg.mxu0
    %v1144 = vadd.f32 %v934, %v1135
    %v1145 = vadd.f32 %v935, %v1137
    %v1146 = vadd.f32 %v936, %v1140
    %v1147 = vadd.f32 %v937, %v1142
    %v1149 = vperm.slane %v246, 0
    %v1151 = vadd.f32 %v1144, %v1149
    %v1152 = vadd.f32 %v1145, %v1149
    %v1153 = vadd.f32 %v1146, %v1149
    %v1154 = vadd.f32 %v1147, %v1149
    %v1155 = vadd.f32 %v229, %v1151
    %v1156 = vadd.f32 %v230, %v1152
    %v1157 = vadd.f32 %v231, %v1153
    %v1158 = vadd.f32 %v232, %v1154
    %v1159 = vsel %vm278, %v1155, 0.0
    %1160 = vadd.xlane.f32.xlu0 %v1159
    %v1161 = vpop.xlane.xlu0 %1160
    %v1162 = vsel %vm278, %v1156, 0.0
    %1163 = vadd.xlane.f32.xlu0 %v1162
    %v1164 = vpop.xlane.xlu0 %1163
    %v1165 = vsel %vm278, %v1157, 0.0
    %1166 = vadd.xlane.f32.xlu0 %v1165
    %v1167 = vpop.xlane.xlu0 %1166
    %v1168 = vsel %vm278, %v1158, 0.0
    %1169 = vadd.xlane.f32.xlu0 %v1168
    %v1170 = vpop.xlane.xlu0 %1169
    %v1171 = vrcp.pop 32.0
    %v1172 = vmul.f32 32.0, %v1171
    %v1173 = vsub.f32 1.0, %v1172
    %v1174 = vmul.f32 %v1171, %v1173
    %v1175 = vadd.f32 %v1171, %v1174
    %vm1176 = vweird.f32 %v1171
    %v1177 = vsel %vm1176, %v1171, %v1175
    %v1178 = vmul.f32 %v1161, %v1177
    %v1179 = vmul.f32 %v1164, %v1177
    %v1180 = vmul.f32 %v1167, %v1177
    %v1181 = vmul.f32 %v1170, %v1177
    %v1182 = vsub.f32 %v1155, %v1178
    %v1183 = vsub.f32 %v1156, %v1179
    %v1184 = vsub.f32 %v1157, %v1180
    %v1185 = vsub.f32 %v1158, %v1181
    %v1186 = vmul.f32 %v1182, %v1182
    %v1187 = vmul.f32 %v1183, %v1183
    %v1188 = vmul.f32 %v1184, %v1184
    %v1189 = vmul.f32 %v1185, %v1185
    %v1190 = vsel %vm278, %v1186, 0.0
    %1191 = vadd.xlane.f32.xlu0 %v1190
    %v1192 = vpop.xlane.xlu0 %1191
    %v1193 = vsel %vm278, %v1187, 0.0
    %1194 = vadd.xlane.f32.xlu0 %v1193
    %v1195 = vpop.xlane.xlu0 %1194
    %v1196 = vsel %vm278, %v1188, 0.0
    %1197 = vadd.xlane.f32.xlu0 %v1196
    %v1198 = vpop.xlane.xlu0 %1197
    %v1199 = vsel %vm278, %v1189, 0.0
    %1200 = vadd.xlane.f32.xlu0 %v1199
    %v1201 = vpop.xlane.xlu0 %1200
    %v1202 = vmul.f32 %v1192, %v1177
    %v1203 = vmul.f32 %v1195, %v1177
    %v1204 = vmul.f32 %v1198, %v1177
    %v1205 = vmul.f32 %v1201, %v1177
    %v1206 = vadd.f32 %v1202, 1e-05
    %v1207 = vadd.f32 %v1203, 1e-05
    %v1208 = vadd.f32 %v1204, 1e-05
    %v1209 = vadd.f32 %v1205, 1e-05
    %v1210 = vrsqrt.pop %v1206
    %v1211 = vmul.f32 %v1210, %v1206
    %v1212 = vmul.f32 %v1211, %v1210
    %v1213 = vmul.f32 0.5, %v1212
    %v1214 = vsub.f32 1.5, %v1213
    %v1215 = vmul.f32 %v1210, %v1214
    %vm1216 = vweird.f32 %v1206
    %vm1217 = vweird.f32 %v1210
    %vm1218 = vmor %vm1216, %vm1217
    %v1219 = vsel %vm1218, %v1210, %v1215
    %v1220 = vrsqrt.pop %v1207
    %v1221 = vmul.f32 %v1220, %v1207
    %v1222 = vmul.f32 %v1221, %v1220
    %v1223 = vmul.f32 0.5, %v1222
    %v1224 = vsub.f32 1.5, %v1223
    %v1225 = vmul.f32 %v1220, %v1224
    %vm1226 = vweird.f32 %v1207
    %vm1227 = vweird.f32 %v1220
    %vm1228 = vmor %vm1226, %vm1227
    %v1229 = vsel %vm1228, %v1220, %v1225
    %v1230 = vrsqrt.pop %v1208
    %v1231 = vmul.f32 %v1230, %v1208
    %v1232 = vmul.f32 %v1231, %v1230
    %v1233 = vmul.f32 0.5, %v1232
    %v1234 = vsub.f32 1.5, %v1233
    %v1235 = vmul.f32 %v1230, %v1234
    %vm1236 = vweird.f32 %v1208
    %vm1237 = vweird.f32 %v1230
    %vm1238 = vmor %vm1236, %vm1237
    %v1239 = vsel %vm1238, %v1230, %v1235
    %v1240 = vrsqrt.pop %v1209
    %v1241 = vmul.f32 %v1240, %v1209
    %v1242 = vmul.f32 %v1241, %v1240
    %v1243 = vmul.f32 0.5, %v1242
    %v1244 = vsub.f32 1.5, %v1243
    %v1245 = vmul.f32 %v1240, %v1244
    %vm1246 = vweird.f32 %v1209
    %vm1247 = vweird.f32 %v1240
    %vm1248 = vmor %vm1246, %vm1247
    %v1249 = vsel %vm1248, %v1240, %v1245
    %v1250 = vmul.f32 %v1182, %v1219
    %v1251 = vmul.f32 %v1183, %v1229
    %v1252 = vmul.f32 %v1184, %v1239
    %v1253 = vmul.f32 %v1185, %v1249
    %v1255 = vperm.slane %v257, 0
    %v1257 = vmul.f32 %v1250, %v1255
    %v1258 = vmul.f32 %v1251, %v1255
    %v1259 = vmul.f32 %v1252, %v1255
    %v1260 = vmul.f32 %v1253, %v1255
    %v1262 = vperm.slane %v258, 0
    %v1264 = vadd.f32 %v1257, %v1262
    %v1265 = vadd.f32 %v1258, %v1262
    %v1266 = vadd.f32 %v1259, %v1262
    %v1267 = vadd.f32 %v1260, %v1262
    %v1268 = vpack.c.bf16 %v1265, %v1264
    %v1269 = vpack.c.bf16 %v1267, %v1266
    %v1271 = vperm.slane %v251, 0
    %v1277 = vunpack.c.l.b16 %v247
    %v1278 = vunpack.c.l.b16 %v248
    %v1279 = vunpack.c.l.b16 %v249
    %v1280 = vunpack.c.l.b16 %v250
    %v1281 = vpack.c.b16 %v1278, %v1277
    %v1282 = vpack.c.b16 %v1280, %v1279
    %v1286 = vsel %vm278, %v1268, 0
    %v1289 = vsel %vm278, %v1269, 0
    %1291 = vmatpush.bf16.msra.mxu0 0
    %1292 = vmatpush.bf16.msra.mxu0 0
    %1293 = vmatpush.bf16.msra.mxu0 0
    %1294 = vmatpush.bf16.msra.mxu0 0
    %1295 = vmatpush.bf16.msra.mxu0 0
    %1296 = vmatpush.bf16.msra.mxu0 0
    %1297 = vmatpush.bf16.msra.mxu0 %v1282
    %1298 = vmatpush.bf16.msra.mxu0 %v1281
    %1299 = vmatmul.bf16.gmra.mxu0 %v1286
    %v1300 = vpop.f32.mrf.mxu0
    %v1301 = vadd.f32 %v1271, %v1300
    %v1302 = vpop.f32.mrf.mxu0
    %v1303 = vadd.f32 %v1271, %v1302
    %1304 = vmatmul.bf16.gmra.mxu0 %v1289
    %v1305 = vpop.f32.mrf.mxu0
    %v1306 = vadd.f32 %v1271, %v1305
    %v1307 = vpop.f32.mrf.mxu0
    %v1308 = vadd.f32 %v1271, %v1307
    %1309 = vdwg.mxu0
    %v1310 = vmax.f32 %v1301, 0.0
    %v1311 = vmax.f32 %v1303, 0.0
    %v1312 = vmax.f32 %v1306, 0.0
    %v1313 = vmax.f32 %v1308, 0.0
    %v1314 = vpack.c.bf16 %v1311, %v1310
    %v1315 = vpack.c.bf16 %v1313, %v1312
    %v1317 = vperm.slane %v256, 0
    %v1323 = vunpack.c.l.b16 %v252
    %v1324 = vunpack.c.l.b16 %v253
    %v1325 = vunpack.c.l.b16 %v254
    %v1326 = vunpack.c.l.b16 %v255
    %v1327 = vpack.c.b16 %v1324, %v1323
    %v1328 = vpack.c.b16 %v1326, %v1325
    %v1332 = vsel %vm278, %v1314, 0
    %v1335 = vsel %vm278, %v1315, 0
    %1337 = vmatpush.bf16.msra.mxu0 0
    %1338 = vmatpush.bf16.msra.mxu0 0
    %1339 = vmatpush.bf16.msra.mxu0 0
    %1340 = vmatpush.bf16.msra.mxu0 0
    %1341 = vmatpush.bf16.msra.mxu0 0
    %1342 = vmatpush.bf16.msra.mxu0 0
    %1343 = vmatpush.bf16.msra.mxu0 %v1328
    %1344 = vmatpush.bf16.msra.mxu0 %v1327
    %1345 = vmatmul.bf16.gmra.mxu0 %v1332
    %v1346 = vpop.f32.mrf.mxu0
    %v1347 = vadd.f32 %v1317, %v1346
    %v1348 = vpop.f32.mrf.mxu0
    %v1349 = vadd.f32 %v1317, %v1348
    %1350 = vmatmul.bf16.gmra.mxu0 %v1335
    %v1351 = vpop.f32.mrf.mxu0
    %v1352 = vadd.f32 %v1317, %v1351
    %v1353 = vpop.f32.mrf.mxu0
    %v1354 = vadd.f32 %v1317, %v1353
    %1355 = vdwg.mxu0
    %v1356 = vadd.f32 %v1264, %v1347
    %v1357 = vadd.f32 %v1265, %v1349
    %v1358 = vadd.f32 %v1266, %v1352
    %v1359 = vadd.f32 %v1267, %v1354
    %v1360 = vsel %vm278, %v1356, 0.0
    %1361 = vadd.xlane.f32.xlu0 %v1360
    %v1362 = vpop.xlane.xlu0 %1361
    %v1363 = vsel %vm278, %v1357, 0.0
    %1364 = vadd.xlane.f32.xlu0 %v1363
    %v1365 = vpop.xlane.xlu0 %1364
    %v1366 = vsel %vm278, %v1358, 0.0
    %1367 = vadd.xlane.f32.xlu0 %v1366
    %v1368 = vpop.xlane.xlu0 %1367
    %v1369 = vsel %vm278, %v1359, 0.0
    %1370 = vadd.xlane.f32.xlu0 %v1369
    %v1371 = vpop.xlane.xlu0 %1370
    %v1372 = vmul.f32 %v1362, %v1177
    %v1373 = vmul.f32 %v1365, %v1177
    %v1374 = vmul.f32 %v1368, %v1177
    %v1375 = vmul.f32 %v1371, %v1177
    %v1376 = vsub.f32 %v1356, %v1372
    %v1377 = vsub.f32 %v1357, %v1373
    %v1378 = vsub.f32 %v1358, %v1374
    %v1379 = vsub.f32 %v1359, %v1375
    %v1380 = vmul.f32 %v1376, %v1376
    %v1381 = vmul.f32 %v1377, %v1377
    %v1382 = vmul.f32 %v1378, %v1378
    %v1383 = vmul.f32 %v1379, %v1379
    %v1384 = vsel %vm278, %v1380, 0.0
    %1385 = vadd.xlane.f32.xlu0 %v1384
    %v1386 = vpop.xlane.xlu0 %1385
    %v1387 = vsel %vm278, %v1381, 0.0
    %1388 = vadd.xlane.f32.xlu0 %v1387
    %v1389 = vpop.xlane.xlu0 %1388
    %v1390 = vsel %vm278, %v1382, 0.0
    %1391 = vadd.xlane.f32.xlu0 %v1390
    %v1392 = vpop.xlane.xlu0 %1391
    %v1393 = vsel %vm278, %v1383, 0.0
    %1394 = vadd.xlane.f32.xlu0 %v1393
    %v1395 = vpop.xlane.xlu0 %1394
    %v1396 = vmul.f32 %v1386, %v1177
    %v1397 = vmul.f32 %v1389, %v1177
    %v1398 = vmul.f32 %v1392, %v1177
    %v1399 = vmul.f32 %v1395, %v1177
    %v1400 = vadd.f32 %v1396, 1e-05
    %v1401 = vadd.f32 %v1397, 1e-05
    %v1402 = vadd.f32 %v1398, 1e-05
    %v1403 = vadd.f32 %v1399, 1e-05
    %v1404 = vrsqrt.pop %v1400
    %v1405 = vmul.f32 %v1404, %v1400
    %v1406 = vmul.f32 %v1405, %v1404
    %v1407 = vmul.f32 0.5, %v1406
    %v1408 = vsub.f32 1.5, %v1407
    %v1409 = vmul.f32 %v1404, %v1408
    %vm1410 = vweird.f32 %v1400
    %vm1411 = vweird.f32 %v1404
    %vm1412 = vmor %vm1410, %vm1411
    %v1413 = vsel %vm1412, %v1404, %v1409
    %v1414 = vrsqrt.pop %v1401
    %v1415 = vmul.f32 %v1414, %v1401
    %v1416 = vmul.f32 %v1415, %v1414
    %v1417 = vmul.f32 0.5, %v1416
    %v1418 = vsub.f32 1.5, %v1417
    %v1419 = vmul.f32 %v1414, %v1418
    %vm1420 = vweird.f32 %v1401
    %vm1421 = vweird.f32 %v1414
    %vm1422 = vmor %vm1420, %vm1421
    %v1423 = vsel %vm1422, %v1414, %v1419
    %v1424 = vrsqrt.pop %v1402
    %v1425 = vmul.f32 %v1424, %v1402
    %v1426 = vmul.f32 %v1425, %v1424
    %v1427 = vmul.f32 0.5, %v1426
    %v1428 = vsub.f32 1.5, %v1427
    %v1429 = vmul.f32 %v1424, %v1428
    %vm1430 = vweird.f32 %v1402
    %vm1431 = vweird.f32 %v1424
    %vm1432 = vmor %vm1430, %vm1431
    %v1433 = vsel %vm1432, %v1424, %v1429
    %v1434 = vrsqrt.pop %v1403
    %v1435 = vmul.f32 %v1434, %v1403
    %v1436 = vmul.f32 %v1435, %v1434
    %v1437 = vmul.f32 0.5, %v1436
    %v1438 = vsub.f32 1.5, %v1437
    %v1439 = vmul.f32 %v1434, %v1438
    %vm1440 = vweird.f32 %v1403
    %vm1441 = vweird.f32 %v1434
    %vm1442 = vmor %vm1440, %vm1441
    %v1443 = vsel %vm1442, %v1434, %v1439
    %v1444 = vmul.f32 %v1376, %v1413
    %v1445 = vmul.f32 %v1377, %v1423
    %v1446 = vmul.f32 %v1378, %v1433
    %v1447 = vmul.f32 %v1379, %v1443
    %v1449 = vperm.slane %v259, 0
    %v1451 = vmul.f32 %v1444, %v1449
    %v1452 = vmul.f32 %v1445, %v1449
    %v1453 = vmul.f32 %v1446, %v1449
    %v1454 = vmul.f32 %v1447, %v1449
    %v1456 = vperm.slane %v260, 0
    %v1458 = vadd.f32 %v1451, %v1456
    %v1459 = vadd.f32 %v1452, %v1456
    %v1460 = vadd.f32 %v1453, %v1456
    %v1461 = vadd.f32 %v1454, %v1456
    %s1462 = scalar_lea.vmem %s5, 16
    %v1463 = vld [vmem:[%s1462] sm:$0xf]
    %v1464 = vld [vmem:[%s1462 + $0x4] sm:$0xf]
    %v1465 = vld [vmem:[%s1462 + $0x8] sm:$0xf]
    %v1466 = vld [vmem:[%s1462 + $0xc] sm:$0xf]
    %s1467 = scalar_lea.vmem %s6, 1
    %v1468 = vld [vmem:[%s1467] sm:$0x1]
    %s1469 = scalar_lea.vmem %s7, 16
    %v1470 = vld [vmem:[%s1469] sm:$0xf]
    %v1471 = vld [vmem:[%s1469 + $0x4] sm:$0xf]
    %v1472 = vld [vmem:[%s1469 + $0x8] sm:$0xf]
    %v1473 = vld [vmem:[%s1469 + $0xc] sm:$0xf]
    %s1474 = scalar_lea.vmem %s8, 1
    %v1475 = vld [vmem:[%s1474] sm:$0x1]
    %s1476 = scalar_lea.vmem %s9, 16
    %v1477 = vld [vmem:[%s1476] sm:$0xf]
    %v1478 = vld [vmem:[%s1476 + $0x4] sm:$0xf]
    %v1479 = vld [vmem:[%s1476 + $0x8] sm:$0xf]
    %v1480 = vld [vmem:[%s1476 + $0xc] sm:$0xf]
    %s1481 = scalar_lea.vmem %s10, 1
    %v1482 = vld [vmem:[%s1481] sm:$0x1]
    %s1483 = scalar_lea.vmem %s11, 16
    %v1484 = vld [vmem:[%s1483] sm:$0xf]
    %v1485 = vld [vmem:[%s1483 + $0x4] sm:$0xf]
    %v1486 = vld [vmem:[%s1483 + $0x8] sm:$0xf]
    %v1487 = vld [vmem:[%s1483 + $0xc] sm:$0xf]
    %s1488 = scalar_lea.vmem %s12, 1
    %v1489 = vld [vmem:[%s1488] sm:$0x1]
    %s1490 = scalar_lea.vmem %s13, 1
    %v1491 = vld [vmem:[%s1490] sm:$0x1]
    %s1492 = scalar_lea.vmem %s14, 1
    %v1493 = vld [vmem:[%s1492] sm:$0x1]
    %s1494 = scalar_lea.vmem %s15, 1
    %v1495 = vld [vmem:[%s1494] sm:$0x1]
    %s1496 = scalar_lea.vmem %s16, 1
    %v1497 = vld [vmem:[%s1496] sm:$0x1]
    %v1498 = vpack.c.bf16 %v1459, %v1458
    %v1499 = vpack.c.bf16 %v1461, %v1460
    %v1501 = vperm.slane %v1468, 0
    %v1507 = vunpack.c.l.b16 %v1463
    %v1508 = vunpack.c.l.b16 %v1464
    %v1509 = vunpack.c.l.b16 %v1465
    %v1510 = vunpack.c.l.b16 %v1466
    %v1511 = vpack.c.b16 %v1508, %v1507
    %v1512 = vpack.c.b16 %v1510, %v1509
    %v1516 = vsel %vm278, %v1498, 0
    %v1519 = vsel %vm278, %v1499, 0
    %1521 = vmatpush.bf16.msra.mxu0 0
    %1522 = vmatpush.bf16.msra.mxu0 0
    %1523 = vmatpush.bf16.msra.mxu0 0
    %1524 = vmatpush.bf16.msra.mxu0 0
    %1525 = vmatpush.bf16.msra.mxu0 0
    %1526 = vmatpush.bf16.msra.mxu0 0
    %1527 = vmatpush.bf16.msra.mxu0 %v1512
    %1528 = vmatpush.bf16.msra.mxu0 %v1511
    %1529 = vmatmul.bf16.gmra.mxu0 %v1516
    %v1530 = vpop.f32.mrf.mxu0
    %v1531 = vadd.f32 %v1501, %v1530
    %v1532 = vpop.f32.mrf.mxu0
    %v1533 = vadd.f32 %v1501, %v1532
    %1534 = vmatmul.bf16.gmra.mxu0 %v1519
    %v1535 = vpop.f32.mrf.mxu0
    %v1536 = vadd.f32 %v1501, %v1535
    %v1537 = vpop.f32.mrf.mxu0
    %v1538 = vadd.f32 %v1501, %v1537
    %1539 = vdwg.mxu0
    %v1540 = vpack.c.bf16 %v1531, %v1531
    %v1541 = vpack.c.bf16 %v1533, %v1533
    %v1542 = vpack.c.bf16 %v1536, %v1536
    %v1543 = vpack.c.bf16 %v1538, %v1538
    %v1548 = vunpack.c.l.b16 %v1540
    %v1549 = vunpack.c.l.b16 %v1541
    %v1550 = vunpack.c.l.b16 %v1542
    %v1551 = vunpack.c.l.b16 %v1543
    %v1552 = vpack.c.b16 %v1549, %v1548
    %v1553 = vpack.c.b16 %v1551, %v1550
    %1554 = vrot.lane.b32.xlu0 %v1552, 96
    %v1555 = vpop.permute.xlu0 %1554
    %1556 = vrot.lane.b32.xlu0 %v1553, 96
    %v1557 = vpop.permute.xlu0 %1556
    %v1559 = vsel %vm322, %v1552, 0
    %v1562 = vsel %vm322, %v1553, 0
    %v1565 = vsel %vm322, %v1555, 0
    %v1568 = vsel %vm322, %v1557, 0
    %1570 = vmatpush.bf16.xpose.msra.mxu0 0
    %1571 = vmatpush.bf16.xpose.msra.mxu0 0
    %1572 = vmatpush.bf16.xpose.msra.mxu0 0
    %1573 = vmatpush.bf16.xpose.msra.mxu0 0
    %1574 = vmatpush.bf16.xpose.msra.mxu0 0
    %1575 = vmatpush.bf16.xpose.msra.mxu0 0
    %1576 = vmatpush.bf16.xpose.msra.mxu0 %v1568
    %1577 = vmatpush.bf16.xpose.msra.mxu0 %v1565
    %1578 = vmatmul.bf16.gmra.mxu0 %v1559
    %v1579 = vpop.f32.mrf.mxu0
    %v1580 = vadd.f32 0.0, %v1579
    %v1581 = vpop.f32.mrf.mxu0
    %v1582 = vadd.f32 0.0, %v1581
    %1583 = vmatmul.bf16.gmra.mxu0 %v1562
    %v1584 = vpop.f32.mrf.mxu0
    %v1585 = vadd.f32 0.0, %v1584
    %v1586 = vpop.f32.mrf.mxu0
    %v1587 = vadd.f32 0.0, %v1586
    %1588 = vdwg.mxu0
    %v1589 = vmul.f32 %v1580, 0.35355338
    %v1590 = vmul.f32 %v1582, 0.35355338
    %v1591 = vmul.f32 %v1585, 0.35355338
    %v1592 = vmul.f32 %v1587, 0.35355338
    %v1593 = vadd.f32 %v1589, %v233
    %v1594 = vadd.f32 %v1590, %v234
    %v1595 = vadd.f32 %v1591, %v235
    %v1596 = vadd.f32 %v1592, %v236
    %v1597 = vsel %vm278, %v1593, -inf
    %1598 = vmax.xlane.f32.xlu0 %v1597
    %v1599 = vpop.xlane.xlu0 %1598
    %v1600 = vsel %vm278, %v1594, -inf
    %1601 = vmax.xlane.f32.xlu0 %v1600
    %v1602 = vpop.xlane.xlu0 %1601
    %v1603 = vsel %vm278, %v1595, -inf
    %1604 = vmax.xlane.f32.xlu0 %v1603
    %v1605 = vpop.xlane.xlu0 %1604
    %v1606 = vsel %vm278, %v1596, -inf
    %1607 = vmax.xlane.f32.xlu0 %v1606
    %v1608 = vpop.xlane.xlu0 %1607
    %v1609 = vsub.f32 %v1593, %v1599
    %v1610 = vsub.f32 %v1594, %v1602
    %v1611 = vsub.f32 %v1595, %v1605
    %v1612 = vsub.f32 %v1596, %v1608
    %v1613 = vmul.f32 %v1609, 1.442695
    %v1614 = vpow.pop %v1613
    %v1615 = vmul.f32 %v1610, 1.442695
    %v1616 = vpow.pop %v1615
    %v1617 = vmul.f32 %v1611, 1.442695
    %v1618 = vpow.pop %v1617
    %v1619 = vmul.f32 %v1612, 1.442695
    %v1620 = vpow.pop %v1619
    %v1621 = vsel %vm278, %v1614, 0.0
    %1622 = vadd.xlane.f32.xlu0 %v1621
    %v1623 = vpop.xlane.xlu0 %1622
    %v1624 = vsel %vm278, %v1616, 0.0
    %1625 = vadd.xlane.f32.xlu0 %v1624
    %v1626 = vpop.xlane.xlu0 %1625
    %v1627 = vsel %vm278, %v1618, 0.0
    %1628 = vadd.xlane.f32.xlu0 %v1627
    %v1629 = vpop.xlane.xlu0 %1628
    %v1630 = vsel %vm278, %v1620, 0.0
    %1631 = vadd.xlane.f32.xlu0 %v1630
    %v1632 = vpop.xlane.xlu0 %1631
    %v1633 = vrcp.pop %v1623
    %v1634 = vmul.f32 %v1623, %v1633
    %v1635 = vsub.f32 1.0, %v1634
    %v1636 = vmul.f32 %v1633, %v1635
    %v1637 = vadd.f32 %v1633, %v1636
    %vm1638 = vweird.f32 %v1623
    %vm1639 = vweird.f32 %v1633
    %vm1640 = vmor %vm1638, %vm1639
    %v1641 = vsel %vm1640, %v1633, %v1637
    %v1642 = vand.u32 2147483647, %v1623
    %vm1643 = vcmp.eq.f32.partialorder %v1642, 8.507059e+37
    %v1644 = vand.u32 %v1623, 2147483648
    %v1645 = vor.u32 1.1754944e-38, %v1644
    %v1646 = vsel %vm1643, %v1645, %v1641
    %v1647 = vmul.f32 %v1614, %v1646
    %v1648 = vrcp.pop %v1626
    %v1649 = vmul.f32 %v1626, %v1648
    %v1650 = vsub.f32 1.0, %v1649
    %v1651 = vmul.f32 %v1648, %v1650
    %v1652 = vadd.f32 %v1648, %v1651
    %vm1653 = vweird.f32 %v1626
    %vm1654 = vweird.f32 %v1648
    %vm1655 = vmor %vm1653, %vm1654
    %v1656 = vsel %vm1655, %v1648, %v1652
    %v1657 = vand.u32 2147483647, %v1626
    %vm1658 = vcmp.eq.f32.partialorder %v1657, 8.507059e+37
    %v1659 = vand.u32 %v1626, 2147483648
    %v1660 = vor.u32 1.1754944e-38, %v1659
    %v1661 = vsel %vm1658, %v1660, %v1656
    %v1662 = vmul.f32 %v1616, %v1661
    %v1663 = vrcp.pop %v1629
    %v1664 = vmul.f32 %v1629, %v1663
    %v1665 = vsub.f32 1.0, %v1664
    %v1666 = vmul.f32 %v1663, %v1665
    %v1667 = vadd.f32 %v1663, %v1666
    %vm1668 = vweird.f32 %v1629
    %vm1669 = vweird.f32 %v1663
    %vm1670 = vmor %vm1668, %vm1669
    %v1671 = vsel %vm1670, %v1663, %v1667
    %v1672 = vand.u32 2147483647, %v1629
    %vm1673 = vcmp.eq.f32.partialorder %v1672, 8.507059e+37
    %v1674 = vand.u32 %v1629, 2147483648
    %v1675 = vor.u32 1.1754944e-38, %v1674
    %v1676 = vsel %vm1673, %v1675, %v1671
    %v1677 = vmul.f32 %v1618, %v1676
    %v1678 = vrcp.pop %v1632
    %v1679 = vmul.f32 %v1632, %v1678
    %v1680 = vsub.f32 1.0, %v1679
    %v1681 = vmul.f32 %v1678, %v1680
    %v1682 = vadd.f32 %v1678, %v1681
    %vm1683 = vweird.f32 %v1632
    %vm1684 = vweird.f32 %v1678
    %vm1685 = vmor %vm1683, %vm1684
    %v1686 = vsel %vm1685, %v1678, %v1682
    %v1687 = vand.u32 2147483647, %v1632
    %vm1688 = vcmp.eq.f32.partialorder %v1687, 8.507059e+37
    %v1689 = vand.u32 %v1632, 2147483648
    %v1690 = vor.u32 1.1754944e-38, %v1689
    %v1691 = vsel %vm1688, %v1690, %v1686
    %v1692 = vmul.f32 %v1620, %v1691
    %v1693 = vpack.c.bf16 %v1662, %v1647
    %v1694 = vpack.c.bf16 %v1692, %v1677
    %1695 = vrot.lane.b32.xlu0 %v1552, 64
    %v1696 = vpop.permute.xlu0 %1695
    %1697 = vrot.lane.b32.xlu0 %v1553, 64
    %v1698 = vpop.permute.xlu0 %1697
    %v1702 = vsel %vm278, %v1693, 0
    %v1705 = vsel %vm278, %v1694, 0
    %1707 = vmatpush.bf16.msra.mxu0 0
    %1708 = vmatpush.bf16.msra.mxu0 0
    %1709 = vmatpush.bf16.msra.mxu0 0
    %1710 = vmatpush.bf16.msra.mxu0 0
    %1711 = vmatpush.bf16.msra.mxu0 0
    %1712 = vmatpush.bf16.msra.mxu0 0
    %1713 = vmatpush.bf16.msra.mxu0 %v1698
    %1714 = vmatpush.bf16.msra.mxu0 %v1696
    %1715 = vmatmul.bf16.gmra.mxu0 %v1702
    %v1716 = vpop.f32.mrf.mxu0
    %v1717 = vadd.f32 0.0, %v1716
    %v1718 = vpop.f32.mrf.mxu0
    %v1719 = vadd.f32 0.0, %v1718
    %1720 = vmatmul.bf16.gmra.mxu0 %v1705
    %v1721 = vpop.f32.mrf.mxu0
    %v1722 = vadd.f32 0.0, %v1721
    %v1723 = vpop.f32.mrf.mxu0
    %v1724 = vadd.f32 0.0, %v1723
    %1725 = vdwg.mxu0
    %v1726 = vpack.c.bf16 %v1719, %v1717
    %v1727 = vpack.c.bf16 %v1724, %v1722
    %1728 = vrot.lane.b32.xlu0 %v1552, 120
    %v1729 = vpop.permute.xlu0 %1728
    %1730 = vrot.lane.b32.xlu0 %v1553, 120
    %v1731 = vpop.permute.xlu0 %1730
    %1732 = vrot.lane.b32.xlu0 %v1552, 88
    %v1733 = vpop.permute.xlu0 %1732
    %1734 = vrot.lane.b32.xlu0 %v1553, 88
    %v1735 = vpop.permute.xlu0 %1734
    %v1737 = vsel %vm322, %v1729, 0
    %v1740 = vsel %vm322, %v1731, 0
    %v1743 = vsel %vm322, %v1733, 0
    %v1746 = vsel %vm322, %v1735, 0
    %1748 = vmatpush.bf16.xpose.msra.mxu0 0
    %1749 = vmatpush.bf16.xpose.msra.mxu0 0
    %1750 = vmatpush.bf16.xpose.msra.mxu0 0
    %1751 = vmatpush.bf16.xpose.msra.mxu0 0
    %1752 = vmatpush.bf16.xpose.msra.mxu0 0
    %1753 = vmatpush.bf16.xpose.msra.mxu0 0
    %1754 = vmatpush.bf16.xpose.msra.mxu0 %v1746
    %1755 = vmatpush.bf16.xpose.msra.mxu0 %v1743
    %1756 = vmatmul.bf16.gmra.mxu0 %v1737
    %v1757 = vpop.f32.mrf.mxu0
    %v1758 = vadd.f32 0.0, %v1757
    %v1759 = vpop.f32.mrf.mxu0
    %v1760 = vadd.f32 0.0, %v1759
    %1761 = vmatmul.bf16.gmra.mxu0 %v1740
    %v1762 = vpop.f32.mrf.mxu0
    %v1763 = vadd.f32 0.0, %v1762
    %v1764 = vpop.f32.mrf.mxu0
    %v1765 = vadd.f32 0.0, %v1764
    %1766 = vdwg.mxu0
    %v1767 = vmul.f32 %v1758, 0.35355338
    %v1768 = vmul.f32 %v1760, 0.35355338
    %v1769 = vmul.f32 %v1763, 0.35355338
    %v1770 = vmul.f32 %v1765, 0.35355338
    %v1771 = vadd.f32 %v1767, %v233
    %v1772 = vadd.f32 %v1768, %v234
    %v1773 = vadd.f32 %v1769, %v235
    %v1774 = vadd.f32 %v1770, %v236
    %v1775 = vsel %vm278, %v1771, -inf
    %1776 = vmax.xlane.f32.xlu0 %v1775
    %v1777 = vpop.xlane.xlu0 %1776
    %v1778 = vsel %vm278, %v1772, -inf
    %1779 = vmax.xlane.f32.xlu0 %v1778
    %v1780 = vpop.xlane.xlu0 %1779
    %v1781 = vsel %vm278, %v1773, -inf
    %1782 = vmax.xlane.f32.xlu0 %v1781
    %v1783 = vpop.xlane.xlu0 %1782
    %v1784 = vsel %vm278, %v1774, -inf
    %1785 = vmax.xlane.f32.xlu0 %v1784
    %v1786 = vpop.xlane.xlu0 %1785
    %v1787 = vsub.f32 %v1771, %v1777
    %v1788 = vsub.f32 %v1772, %v1780
    %v1789 = vsub.f32 %v1773, %v1783
    %v1790 = vsub.f32 %v1774, %v1786
    %v1791 = vmul.f32 %v1787, 1.442695
    %v1792 = vpow.pop %v1791
    %v1793 = vmul.f32 %v1788, 1.442695
    %v1794 = vpow.pop %v1793
    %v1795 = vmul.f32 %v1789, 1.442695
    %v1796 = vpow.pop %v1795
    %v1797 = vmul.f32 %v1790, 1.442695
    %v1798 = vpow.pop %v1797
    %v1799 = vsel %vm278, %v1792, 0.0
    %1800 = vadd.xlane.f32.xlu0 %v1799
    %v1801 = vpop.xlane.xlu0 %1800
    %v1802 = vsel %vm278, %v1794, 0.0
    %1803 = vadd.xlane.f32.xlu0 %v1802
    %v1804 = vpop.xlane.xlu0 %1803
    %v1805 = vsel %vm278, %v1796, 0.0
    %1806 = vadd.xlane.f32.xlu0 %v1805
    %v1807 = vpop.xlane.xlu0 %1806
    %v1808 = vsel %vm278, %v1798, 0.0
    %1809 = vadd.xlane.f32.xlu0 %v1808
    %v1810 = vpop.xlane.xlu0 %1809
    %v1811 = vrcp.pop %v1801
    %v1812 = vmul.f32 %v1801, %v1811
    %v1813 = vsub.f32 1.0, %v1812
    %v1814 = vmul.f32 %v1811, %v1813
    %v1815 = vadd.f32 %v1811, %v1814
    %vm1816 = vweird.f32 %v1801
    %vm1817 = vweird.f32 %v1811
    %vm1818 = vmor %vm1816, %vm1817
    %v1819 = vsel %vm1818, %v1811, %v1815
    %v1820 = vand.u32 2147483647, %v1801
    %vm1821 = vcmp.eq.f32.partialorder %v1820, 8.507059e+37
    %v1822 = vand.u32 %v1801, 2147483648
    %v1823 = vor.u32 1.1754944e-38, %v1822
    %v1824 = vsel %vm1821, %v1823, %v1819
    %v1825 = vmul.f32 %v1792, %v1824
    %v1826 = vrcp.pop %v1804
    %v1827 = vmul.f32 %v1804, %v1826
    %v1828 = vsub.f32 1.0, %v1827
    %v1829 = vmul.f32 %v1826, %v1828
    %v1830 = vadd.f32 %v1826, %v1829
    %vm1831 = vweird.f32 %v1804
    %vm1832 = vweird.f32 %v1826
    %vm1833 = vmor %vm1831, %vm1832
    %v1834 = vsel %vm1833, %v1826, %v1830
    %v1835 = vand.u32 2147483647, %v1804
    %vm1836 = vcmp.eq.f32.partialorder %v1835, 8.507059e+37
    %v1837 = vand.u32 %v1804, 2147483648
    %v1838 = vor.u32 1.1754944e-38, %v1837
    %v1839 = vsel %vm1836, %v1838, %v1834
    %v1840 = vmul.f32 %v1794, %v1839
    %v1841 = vrcp.pop %v1807
    %v1842 = vmul.f32 %v1807, %v1841
    %v1843 = vsub.f32 1.0, %v1842
    %v1844 = vmul.f32 %v1841, %v1843
    %v1845 = vadd.f32 %v1841, %v1844
    %vm1846 = vweird.f32 %v1807
    %vm1847 = vweird.f32 %v1841
    %vm1848 = vmor %vm1846, %vm1847
    %v1849 = vsel %vm1848, %v1841, %v1845
    %v1850 = vand.u32 2147483647, %v1807
    %vm1851 = vcmp.eq.f32.partialorder %v1850, 8.507059e+37
    %v1852 = vand.u32 %v1807, 2147483648
    %v1853 = vor.u32 1.1754944e-38, %v1852
    %v1854 = vsel %vm1851, %v1853, %v1849
    %v1855 = vmul.f32 %v1796, %v1854
    %v1856 = vrcp.pop %v1810
    %v1857 = vmul.f32 %v1810, %v1856
    %v1858 = vsub.f32 1.0, %v1857
    %v1859 = vmul.f32 %v1856, %v1858
    %v1860 = vadd.f32 %v1856, %v1859
    %vm1861 = vweird.f32 %v1810
    %vm1862 = vweird.f32 %v1856
    %vm1863 = vmor %vm1861, %vm1862
    %v1864 = vsel %vm1863, %v1856, %v1860
    %v1865 = vand.u32 2147483647, %v1810
    %vm1866 = vcmp.eq.f32.partialorder %v1865, 8.507059e+37
    %v1867 = vand.u32 %v1810, 2147483648
    %v1868 = vor.u32 1.1754944e-38, %v1867
    %v1869 = vsel %vm1866, %v1868, %v1864
    %v1870 = vmul.f32 %v1798, %v1869
    %v1871 = vpack.c.bf16 %v1840, %v1825
    %v1872 = vpack.c.bf16 %v1870, %v1855
    %1873 = vrot.lane.b32.xlu0 %v1552, 56
    %v1874 = vpop.permute.xlu0 %1873
    %1875 = vrot.lane.b32.xlu0 %v1553, 56
    %v1876 = vpop.permute.xlu0 %1875
    %v1880 = vsel %vm278, %v1871, 0
    %v1883 = vsel %vm278, %v1872, 0
    %1885 = vmatpush.bf16.msra.mxu0 0
    %1886 = vmatpush.bf16.msra.mxu0 0
    %1887 = vmatpush.bf16.msra.mxu0 0
    %1888 = vmatpush.bf16.msra.mxu0 0
    %1889 = vmatpush.bf16.msra.mxu0 0
    %1890 = vmatpush.bf16.msra.mxu0 0
    %1891 = vmatpush.bf16.msra.mxu0 %v1876
    %1892 = vmatpush.bf16.msra.mxu0 %v1874
    %1893 = vmatmul.bf16.gmra.mxu0 %v1880
    %v1894 = vpop.f32.mrf.mxu0
    %v1895 = vadd.f32 0.0, %v1894
    %v1896 = vpop.f32.mrf.mxu0
    %v1897 = vadd.f32 0.0, %v1896
    %1898 = vmatmul.bf16.gmra.mxu0 %v1883
    %v1899 = vpop.f32.mrf.mxu0
    %v1900 = vadd.f32 0.0, %v1899
    %v1901 = vpop.f32.mrf.mxu0
    %v1902 = vadd.f32 0.0, %v1901
    %1903 = vdwg.mxu0
    %v1904 = vpack.c.bf16 %v1897, %v1895
    %v1905 = vpack.c.bf16 %v1902, %v1900
    %v1907 = vsel %vm322, %v1904, 0
    %v1910 = vsel %vm322, %v1905, 0
    %v1913 = vsel %vm677, %v1471, 0
    %1915 = vmatpush.bf16.msra.mxu0 0
    %1916 = vmatpush.bf16.msra.mxu0 0
    %1917 = vmatpush.bf16.msra.mxu0 0
    %1918 = vmatpush.bf16.msra.mxu0 0
    %1919 = vmatpush.bf16.msra.mxu0 0
    %1920 = vmatpush.bf16.msra.mxu0 0
    %1921 = vmatpush.bf16.msra.mxu0 0
    %1922 = vmatpush.bf16.msra.mxu0 %v1913
    %1923 = vmatmul.bf16.gmra.mxu0 %v1907
    %v1924 = vpop.f32.mrf.mxu0
    %v1925 = vadd.f32 0.0, %v1924
    %v1926 = vpop.f32.mrf.mxu0
    %v1927 = vadd.f32 0.0, %v1926
    %1928 = vmatmul.bf16.gmra.mxu0 %v1910
    %v1929 = vpop.f32.mrf.mxu0
    %v1930 = vadd.f32 0.0, %v1929
    %v1931 = vpop.f32.mrf.mxu0
    %v1932 = vadd.f32 0.0, %v1931
    %1933 = vdwg.mxu0
    %v1935 = vsel %vm322, %v1726, 0
    %v1938 = vsel %vm322, %v1727, 0
    %v1941 = vsel %vm677, %v1470, 0
    %1943 = vmatpush.bf16.msra.mxu0 0
    %1944 = vmatpush.bf16.msra.mxu0 0
    %1945 = vmatpush.bf16.msra.mxu0 0
    %1946 = vmatpush.bf16.msra.mxu0 0
    %1947 = vmatpush.bf16.msra.mxu0 0
    %1948 = vmatpush.bf16.msra.mxu0 0
    %1949 = vmatpush.bf16.msra.mxu0 0
    %1950 = vmatpush.bf16.msra.mxu0 %v1941
    %1951 = vmatmul.bf16.gmra.mxu0 %v1935
    %v1952 = vpop.f32.mrf.mxu0
    %v1953 = vadd.f32 %v1925, %v1952
    %v1954 = vpop.f32.mrf.mxu0
    %v1955 = vadd.f32 %v1927, %v1954
    %1956 = vmatmul.bf16.gmra.mxu0 %v1938
    %v1957 = vpop.f32.mrf.mxu0
    %v1958 = vadd.f32 %v1930, %v1957
    %v1959 = vpop.f32.mrf.mxu0
    %v1960 = vadd.f32 %v1932, %v1959
    %1961 = vdwg.mxu0
    %1962 = vrot.lane.b32.xlu0 %v1552, 112
    %v1963 = vpop.permute.xlu0 %1962
    %1964 = vrot.lane.b32.xlu0 %v1553, 112
    %v1965 = vpop.permute.xlu0 %1964
    %1966 = vrot.lane.b32.xlu0 %v1552, 80
    %v1967 = vpop.permute.xlu0 %1966
    %1968 = vrot.lane.b32.xlu0 %v1553, 80
    %v1969 = vpop.permute.xlu0 %1968
    %v1971 = vsel %vm322, %v1963, 0
    %v1974 = vsel %vm322, %v1965, 0
    %v1977 = vsel %vm322, %v1967, 0
    %v1980 = vsel %vm322, %v1969, 0
    %1982 = vmatpush.bf16.xpose.msra.mxu0 0
    %1983 = vmatpush.bf16.xpose.msra.mxu0 0
    %1984 = vmatpush.bf16.xpose.msra.mxu0 0
    %1985 = vmatpush.bf16.xpose.msra.mxu0 0
    %1986 = vmatpush.bf16.xpose.msra.mxu0 0
    %1987 = vmatpush.bf16.xpose.msra.mxu0 0
    %1988 = vmatpush.bf16.xpose.msra.mxu0 %v1980
    %1989 = vmatpush.bf16.xpose.msra.mxu0 %v1977
    %1990 = vmatmul.bf16.gmra.mxu0 %v1971
    %v1991 = vpop.f32.mrf.mxu0
    %v1992 = vadd.f32 0.0, %v1991
    %v1993 = vpop.f32.mrf.mxu0
    %v1994 = vadd.f32 0.0, %v1993
    %1995 = vmatmul.bf16.gmra.mxu0 %v1974
    %v1996 = vpop.f32.mrf.mxu0
    %v1997 = vadd.f32 0.0, %v1996
    %v1998 = vpop.f32.mrf.mxu0
    %v1999 = vadd.f32 0.0, %v1998
    %2000 = vdwg.mxu0
    %v2001 = vmul.f32 %v1992, 0.35355338
    %v2002 = vmul.f32 %v1994, 0.35355338
    %v2003 = vmul.f32 %v1997, 0.35355338
    %v2004 = vmul.f32 %v1999, 0.35355338
    %v2005 = vadd.f32 %v2001, %v233
    %v2006 = vadd.f32 %v2002, %v234
    %v2007 = vadd.f32 %v2003, %v235
    %v2008 = vadd.f32 %v2004, %v236
    %v2009 = vsel %vm278, %v2005, -inf
    %2010 = vmax.xlane.f32.xlu0 %v2009
    %v2011 = vpop.xlane.xlu0 %2010
    %v2012 = vsel %vm278, %v2006, -inf
    %2013 = vmax.xlane.f32.xlu0 %v2012
    %v2014 = vpop.xlane.xlu0 %2013
    %v2015 = vsel %vm278, %v2007, -inf
    %2016 = vmax.xlane.f32.xlu0 %v2015
    %v2017 = vpop.xlane.xlu0 %2016
    %v2018 = vsel %vm278, %v2008, -inf
    %2019 = vmax.xlane.f32.xlu0 %v2018
    %v2020 = vpop.xlane.xlu0 %2019
    %v2021 = vsub.f32 %v2005, %v2011
    %v2022 = vsub.f32 %v2006, %v2014
    %v2023 = vsub.f32 %v2007, %v2017
    %v2024 = vsub.f32 %v2008, %v2020
    %v2025 = vmul.f32 %v2021, 1.442695
    %v2026 = vpow.pop %v2025
    %v2027 = vmul.f32 %v2022, 1.442695
    %v2028 = vpow.pop %v2027
    %v2029 = vmul.f32 %v2023, 1.442695
    %v2030 = vpow.pop %v2029
    %v2031 = vmul.f32 %v2024, 1.442695
    %v2032 = vpow.pop %v2031
    %v2033 = vsel %vm278, %v2026, 0.0
    %2034 = vadd.xlane.f32.xlu0 %v2033
    %v2035 = vpop.xlane.xlu0 %2034
    %v2036 = vsel %vm278, %v2028, 0.0
    %2037 = vadd.xlane.f32.xlu0 %v2036
    %v2038 = vpop.xlane.xlu0 %2037
    %v2039 = vsel %vm278, %v2030, 0.0
    %2040 = vadd.xlane.f32.xlu0 %v2039
    %v2041 = vpop.xlane.xlu0 %2040
    %v2042 = vsel %vm278, %v2032, 0.0
    %2043 = vadd.xlane.f32.xlu0 %v2042
    %v2044 = vpop.xlane.xlu0 %2043
    %v2045 = vrcp.pop %v2035
    %v2046 = vmul.f32 %v2035, %v2045
    %v2047 = vsub.f32 1.0, %v2046
    %v2048 = vmul.f32 %v2045, %v2047
    %v2049 = vadd.f32 %v2045, %v2048
    %vm2050 = vweird.f32 %v2035
    %vm2051 = vweird.f32 %v2045
    %vm2052 = vmor %vm2050, %vm2051
    %v2053 = vsel %vm2052, %v2045, %v2049
    %v2054 = vand.u32 2147483647, %v2035
    %vm2055 = vcmp.eq.f32.partialorder %v2054, 8.507059e+37
    %v2056 = vand.u32 %v2035, 2147483648
    %v2057 = vor.u32 1.1754944e-38, %v2056
    %v2058 = vsel %vm2055, %v2057, %v2053
    %v2059 = vmul.f32 %v2026, %v2058
    %v2060 = vrcp.pop %v2038
    %v2061 = vmul.f32 %v2038, %v2060
    %v2062 = vsub.f32 1.0, %v2061
    %v2063 = vmul.f32 %v2060, %v2062
    %v2064 = vadd.f32 %v2060, %v2063
    %vm2065 = vweird.f32 %v2038
    %vm2066 = vweird.f32 %v2060
    %vm2067 = vmor %vm2065, %vm2066
    %v2068 = vsel %vm2067, %v2060, %v2064
    %v2069 = vand.u32 2147483647, %v2038
    %vm2070 = vcmp.eq.f32.partialorder %v2069, 8.507059e+37
    %v2071 = vand.u32 %v2038, 2147483648
    %v2072 = vor.u32 1.1754944e-38, %v2071
    %v2073 = vsel %vm2070, %v2072, %v2068
    %v2074 = vmul.f32 %v2028, %v2073
    %v2075 = vrcp.pop %v2041
    %v2076 = vmul.f32 %v2041, %v2075
    %v2077 = vsub.f32 1.0, %v2076
    %v2078 = vmul.f32 %v2075, %v2077
    %v2079 = vadd.f32 %v2075, %v2078
    %vm2080 = vweird.f32 %v2041
    %vm2081 = vweird.f32 %v2075
    %vm2082 = vmor %vm2080, %vm2081
    %v2083 = vsel %vm2082, %v2075, %v2079
    %v2084 = vand.u32 2147483647, %v2041
    %vm2085 = vcmp.eq.f32.partialorder %v2084, 8.507059e+37
    %v2086 = vand.u32 %v2041, 2147483648
    %v2087 = vor.u32 1.1754944e-38, %v2086
    %v2088 = vsel %vm2085, %v2087, %v2083
    %v2089 = vmul.f32 %v2030, %v2088
    %v2090 = vrcp.pop %v2044
    %v2091 = vmul.f32 %v2044, %v2090
    %v2092 = vsub.f32 1.0, %v2091
    %v2093 = vmul.f32 %v2090, %v2092
    %v2094 = vadd.f32 %v2090, %v2093
    %vm2095 = vweird.f32 %v2044
    %vm2096 = vweird.f32 %v2090
    %vm2097 = vmor %vm2095, %vm2096
    %v2098 = vsel %vm2097, %v2090, %v2094
    %v2099 = vand.u32 2147483647, %v2044
    %vm2100 = vcmp.eq.f32.partialorder %v2099, 8.507059e+37
    %v2101 = vand.u32 %v2044, 2147483648
    %v2102 = vor.u32 1.1754944e-38, %v2101
    %v2103 = vsel %vm2100, %v2102, %v2098
    %v2104 = vmul.f32 %v2032, %v2103
    %v2105 = vpack.c.bf16 %v2074, %v2059
    %v2106 = vpack.c.bf16 %v2104, %v2089
    %2107 = vrot.lane.b32.xlu0 %v1552, 48
    %v2108 = vpop.permute.xlu0 %2107
    %2109 = vrot.lane.b32.xlu0 %v1553, 48
    %v2110 = vpop.permute.xlu0 %2109
    %v2114 = vsel %vm278, %v2105, 0
    %v2117 = vsel %vm278, %v2106, 0
    %2119 = vmatpush.bf16.msra.mxu0 0
    %2120 = vmatpush.bf16.msra.mxu0 0
    %2121 = vmatpush.bf16.msra.mxu0 0
    %2122 = vmatpush.bf16.msra.mxu0 0
    %2123 = vmatpush.bf16.msra.mxu0 0
    %2124 = vmatpush.bf16.msra.mxu0 0
    %2125 = vmatpush.bf16.msra.mxu0 %v2110
    %2126 = vmatpush.bf16.msra.mxu0 %v2108
    %2127 = vmatmul.bf16.gmra.mxu0 %v2114
    %v2128 = vpop.f32.mrf.mxu0
    %v2129 = vadd.f32 0.0, %v2128
    %v2130 = vpop.f32.mrf.mxu0
    %v2131 = vadd.f32 0.0, %v2130
    %2132 = vmatmul.bf16.gmra.mxu0 %v2117
    %v2133 = vpop.f32.mrf.mxu0
    %v2134 = vadd.f32 0.0, %v2133
    %v2135 = vpop.f32.mrf.mxu0
    %v2136 = vadd.f32 0.0, %v2135
    %2137 = vdwg.mxu0
    %v2138 = vpack.c.bf16 %v2131, %v2129
    %v2139 = vpack.c.bf16 %v2136, %v2134
    %v2141 = vsel %vm322, %v2138, 0
    %v2144 = vsel %vm322, %v2139, 0
    %v2147 = vsel %vm677, %v1472, 0
    %2149 = vmatpush.bf16.msra.mxu0 0
    %2150 = vmatpush.bf16.msra.mxu0 0
    %2151 = vmatpush.bf16.msra.mxu0 0
    %2152 = vmatpush.bf16.msra.mxu0 0
    %2153 = vmatpush.bf16.msra.mxu0 0
    %2154 = vmatpush.bf16.msra.mxu0 0
    %2155 = vmatpush.bf16.msra.mxu0 0
    %2156 = vmatpush.bf16.msra.mxu0 %v2147
    %2157 = vmatmul.bf16.gmra.mxu0 %v2141
    %v2158 = vpop.f32.mrf.mxu0
    %v2159 = vadd.f32 0.0, %v2158
    %v2160 = vpop.f32.mrf.mxu0
    %v2161 = vadd.f32 0.0, %v2160
    %2162 = vmatmul.bf16.gmra.mxu0 %v2144
    %v2163 = vpop.f32.mrf.mxu0
    %v2164 = vadd.f32 0.0, %v2163
    %v2165 = vpop.f32.mrf.mxu0
    %v2166 = vadd.f32 0.0, %v2165
    %2167 = vdwg.mxu0
    %v2168 = vadd.f32 %v1953, %v2159
    %v2169 = vadd.f32 %v1955, %v2161
    %v2170 = vadd.f32 %v1958, %v2164
    %v2171 = vadd.f32 %v1960, %v2166
    %2172 = vrot.lane.b32.xlu0 %v1552, 104
    %v2173 = vpop.permute.xlu0 %2172
    %2174 = vrot.lane.b32.xlu0 %v1553, 104
    %v2175 = vpop.permute.xlu0 %2174
    %2176 = vrot.lane.b32.xlu0 %v1552, 72
    %v2177 = vpop.permute.xlu0 %2176
    %2178 = vrot.lane.b32.xlu0 %v1553, 72
    %v2179 = vpop.permute.xlu0 %2178
    %v2181 = vsel %vm322, %v2173, 0
    %v2184 = vsel %vm322, %v2175, 0
    %v2187 = vsel %vm322, %v2177, 0
    %v2190 = vsel %vm322, %v2179, 0
    %2192 = vmatpush.bf16.xpose.msra.mxu0 0
    %2193 = vmatpush.bf16.xpose.msra.mxu0 0
    %2194 = vmatpush.bf16.xpose.msra.mxu0 0
    %2195 = vmatpush.bf16.xpose.msra.mxu0 0
    %2196 = vmatpush.bf16.xpose.msra.mxu0 0
    %2197 = vmatpush.bf16.xpose.msra.mxu0 0
    %2198 = vmatpush.bf16.xpose.msra.mxu0 %v2190
    %2199 = vmatpush.bf16.xpose.msra.mxu0 %v2187
    %2200 = vmatmul.bf16.gmra.mxu0 %v2181
    %v2201 = vpop.f32.mrf.mxu0
    %v2202 = vadd.f32 0.0, %v2201
    %v2203 = vpop.f32.mrf.mxu0
    %v2204 = vadd.f32 0.0, %v2203
    %2205 = vmatmul.bf16.gmra.mxu0 %v2184
    %v2206 = vpop.f32.mrf.mxu0
    %v2207 = vadd.f32 0.0, %v2206
    %v2208 = vpop.f32.mrf.mxu0
    %v2209 = vadd.f32 0.0, %v2208
    %2210 = vdwg.mxu0
    %v2211 = vmul.f32 %v2202, 0.35355338
    %v2212 = vmul.f32 %v2204, 0.35355338
    %v2213 = vmul.f32 %v2207, 0.35355338
    %v2214 = vmul.f32 %v2209, 0.35355338
    %v2215 = vadd.f32 %v2211, %v233
    %v2216 = vadd.f32 %v2212, %v234
    %v2217 = vadd.f32 %v2213, %v235
    %v2218 = vadd.f32 %v2214, %v236
    %v2219 = vsel %vm278, %v2215, -inf
    %2220 = vmax.xlane.f32.xlu0 %v2219
    %v2221 = vpop.xlane.xlu0 %2220
    %v2222 = vsel %vm278, %v2216, -inf
    %2223 = vmax.xlane.f32.xlu0 %v2222
    %v2224 = vpop.xlane.xlu0 %2223
    %v2225 = vsel %vm278, %v2217, -inf
    %2226 = vmax.xlane.f32.xlu0 %v2225
    %v2227 = vpop.xlane.xlu0 %2226
    %v2228 = vsel %vm278, %v2218, -inf
    %2229 = vmax.xlane.f32.xlu0 %v2228
    %v2230 = vpop.xlane.xlu0 %2229
    %v2231 = vsub.f32 %v2215, %v2221
    %v2232 = vsub.f32 %v2216, %v2224
    %v2233 = vsub.f32 %v2217, %v2227
    %v2234 = vsub.f32 %v2218, %v2230
    %v2235 = vmul.f32 %v2231, 1.442695
    %v2236 = vpow.pop %v2235
    %v2237 = vmul.f32 %v2232, 1.442695
    %v2238 = vpow.pop %v2237
    %v2239 = vmul.f32 %v2233, 1.442695
    %v2240 = vpow.pop %v2239
    %v2241 = vmul.f32 %v2234, 1.442695
    %v2242 = vpow.pop %v2241
    %v2243 = vsel %vm278, %v2236, 0.0
    %2244 = vadd.xlane.f32.xlu0 %v2243
    %v2245 = vpop.xlane.xlu0 %2244
    %v2246 = vsel %vm278, %v2238, 0.0
    %2247 = vadd.xlane.f32.xlu0 %v2246
    %v2248 = vpop.xlane.xlu0 %2247
    %v2249 = vsel %vm278, %v2240, 0.0
    %2250 = vadd.xlane.f32.xlu0 %v2249
    %v2251 = vpop.xlane.xlu0 %2250
    %v2252 = vsel %vm278, %v2242, 0.0
    %2253 = vadd.xlane.f32.xlu0 %v2252
    %v2254 = vpop.xlane.xlu0 %2253
    %v2255 = vrcp.pop %v2245
    %v2256 = vmul.f32 %v2245, %v2255
    %v2257 = vsub.f32 1.0, %v2256
    %v2258 = vmul.f32 %v2255, %v2257
    %v2259 = vadd.f32 %v2255, %v2258
    %vm2260 = vweird.f32 %v2245
    %vm2261 = vweird.f32 %v2255
    %vm2262 = vmor %vm2260, %vm2261
    %v2263 = vsel %vm2262, %v2255, %v2259
    %v2264 = vand.u32 2147483647, %v2245
    %vm2265 = vcmp.eq.f32.partialorder %v2264, 8.507059e+37
    %v2266 = vand.u32 %v2245, 2147483648
    %v2267 = vor.u32 1.1754944e-38, %v2266
    %v2268 = vsel %vm2265, %v2267, %v2263
    %v2269 = vmul.f32 %v2236, %v2268
    %v2270 = vrcp.pop %v2248
    %v2271 = vmul.f32 %v2248, %v2270
    %v2272 = vsub.f32 1.0, %v2271
    %v2273 = vmul.f32 %v2270, %v2272
    %v2274 = vadd.f32 %v2270, %v2273
    %vm2275 = vweird.f32 %v2248
    %vm2276 = vweird.f32 %v2270
    %vm2277 = vmor %vm2275, %vm2276
    %v2278 = vsel %vm2277, %v2270, %v2274
    %v2279 = vand.u32 2147483647, %v2248
    %vm2280 = vcmp.eq.f32.partialorder %v2279, 8.507059e+37
    %v2281 = vand.u32 %v2248, 2147483648
    %v2282 = vor.u32 1.1754944e-38, %v2281
    %v2283 = vsel %vm2280, %v2282, %v2278
    %v2284 = vmul.f32 %v2238, %v2283
    %v2285 = vrcp.pop %v2251
    %v2286 = vmul.f32 %v2251, %v2285
    %v2287 = vsub.f32 1.0, %v2286
    %v2288 = vmul.f32 %v2285, %v2287
    %v2289 = vadd.f32 %v2285, %v2288
    %vm2290 = vweird.f32 %v2251
    %vm2291 = vweird.f32 %v2285
    %vm2292 = vmor %vm2290, %vm2291
    %v2293 = vsel %vm2292, %v2285, %v2289
    %v2294 = vand.u32 2147483647, %v2251
    %vm2295 = vcmp.eq.f32.partialorder %v2294, 8.507059e+37
    %v2296 = vand.u32 %v2251, 2147483648
    %v2297 = vor.u32 1.1754944e-38, %v2296
    %v2298 = vsel %vm2295, %v2297, %v2293
    %v2299 = vmul.f32 %v2240, %v2298
    %v2300 = vrcp.pop %v2254
    %v2301 = vmul.f32 %v2254, %v2300
    %v2302 = vsub.f32 1.0, %v2301
    %v2303 = vmul.f32 %v2300, %v2302
    %v2304 = vadd.f32 %v2300, %v2303
    %vm2305 = vweird.f32 %v2254
    %vm2306 = vweird.f32 %v2300
    %vm2307 = vmor %vm2305, %vm2306
    %v2308 = vsel %vm2307, %v2300, %v2304
    %v2309 = vand.u32 2147483647, %v2254
    %vm2310 = vcmp.eq.f32.partialorder %v2309, 8.507059e+37
    %v2311 = vand.u32 %v2254, 2147483648
    %v2312 = vor.u32 1.1754944e-38, %v2311
    %v2313 = vsel %vm2310, %v2312, %v2308
    %v2314 = vmul.f32 %v2242, %v2313
    %v2315 = vpack.c.bf16 %v2284, %v2269
    %v2316 = vpack.c.bf16 %v2314, %v2299
    %2317 = vrot.lane.b32.xlu0 %v1552, 40
    %v2318 = vpop.permute.xlu0 %2317
    %2319 = vrot.lane.b32.xlu0 %v1553, 40
    %v2320 = vpop.permute.xlu0 %2319
    %v2324 = vsel %vm278, %v2315, 0
    %v2327 = vsel %vm278, %v2316, 0
    %2329 = vmatpush.bf16.msra.mxu0 0
    %2330 = vmatpush.bf16.msra.mxu0 0
    %2331 = vmatpush.bf16.msra.mxu0 0
    %2332 = vmatpush.bf16.msra.mxu0 0
    %2333 = vmatpush.bf16.msra.mxu0 0
    %2334 = vmatpush.bf16.msra.mxu0 0
    %2335 = vmatpush.bf16.msra.mxu0 %v2320
    %2336 = vmatpush.bf16.msra.mxu0 %v2318
    %2337 = vmatmul.bf16.gmra.mxu0 %v2324
    %v2338 = vpop.f32.mrf.mxu0
    %v2339 = vadd.f32 0.0, %v2338
    %v2340 = vpop.f32.mrf.mxu0
    %v2341 = vadd.f32 0.0, %v2340
    %2342 = vmatmul.bf16.gmra.mxu0 %v2327
    %v2343 = vpop.f32.mrf.mxu0
    %v2344 = vadd.f32 0.0, %v2343
    %v2345 = vpop.f32.mrf.mxu0
    %v2346 = vadd.f32 0.0, %v2345
    %2347 = vdwg.mxu0
    %v2348 = vpack.c.bf16 %v2341, %v2339
    %v2349 = vpack.c.bf16 %v2346, %v2344
    %v2351 = vsel %vm322, %v2348, 0
    %v2354 = vsel %vm322, %v2349, 0
    %v2357 = vsel %vm677, %v1473, 0
    %2359 = vmatpush.bf16.msra.mxu0 0
    %2360 = vmatpush.bf16.msra.mxu0 0
    %2361 = vmatpush.bf16.msra.mxu0 0
    %2362 = vmatpush.bf16.msra.mxu0 0
    %2363 = vmatpush.bf16.msra.mxu0 0
    %2364 = vmatpush.bf16.msra.mxu0 0
    %2365 = vmatpush.bf16.msra.mxu0 0
    %2366 = vmatpush.bf16.msra.mxu0 %v2357
    %2367 = vmatmul.bf16.gmra.mxu0 %v2351
    %v2368 = vpop.f32.mrf.mxu0
    %v2369 = vadd.f32 0.0, %v2368
    %v2370 = vpop.f32.mrf.mxu0
    %v2371 = vadd.f32 0.0, %v2370
    %2372 = vmatmul.bf16.gmra.mxu0 %v2354
    %v2373 = vpop.f32.mrf.mxu0
    %v2374 = vadd.f32 0.0, %v2373
    %v2375 = vpop.f32.mrf.mxu0
    %v2376 = vadd.f32 0.0, %v2375
    %2377 = vdwg.mxu0
    %v2378 = vadd.f32 %v2168, %v2369
    %v2379 = vadd.f32 %v2169, %v2371
    %v2380 = vadd.f32 %v2170, %v2374
    %v2381 = vadd.f32 %v2171, %v2376
    %v2383 = vperm.slane %v1475, 0
    %v2385 = vadd.f32 %v2378, %v2383
    %v2386 = vadd.f32 %v2379, %v2383
    %v2387 = vadd.f32 %v2380, %v2383
    %v2388 = vadd.f32 %v2381, %v2383
    %v2389 = vadd.f32 %v1458, %v2385
    %v2390 = vadd.f32 %v1459, %v2386
    %v2391 = vadd.f32 %v1460, %v2387
    %v2392 = vadd.f32 %v1461, %v2388
    %v2393 = vsel %vm278, %v2389, 0.0
    %2394 = vadd.xlane.f32.xlu0 %v2393
    %v2395 = vpop.xlane.xlu0 %2394
    %v2396 = vsel %vm278, %v2390, 0.0
    %2397 = vadd.xlane.f32.xlu0 %v2396
    %v2398 = vpop.xlane.xlu0 %2397
    %v2399 = vsel %vm278, %v2391, 0.0
    %2400 = vadd.xlane.f32.xlu0 %v2399
    %v2401 = vpop.xlane.xlu0 %2400
    %v2402 = vsel %vm278, %v2392, 0.0
    %2403 = vadd.xlane.f32.xlu0 %v2402
    %v2404 = vpop.xlane.xlu0 %2403
    %v2405 = vmul.f32 %v2395, %v1177
    %v2406 = vmul.f32 %v2398, %v1177
    %v2407 = vmul.f32 %v2401, %v1177
    %v2408 = vmul.f32 %v2404, %v1177
    %v2409 = vsub.f32 %v2389, %v2405
    %v2410 = vsub.f32 %v2390, %v2406
    %v2411 = vsub.f32 %v2391, %v2407
    %v2412 = vsub.f32 %v2392, %v2408
    %v2413 = vmul.f32 %v2409, %v2409
    %v2414 = vmul.f32 %v2410, %v2410
    %v2415 = vmul.f32 %v2411, %v2411
    %v2416 = vmul.f32 %v2412, %v2412
    %v2417 = vsel %vm278, %v2413, 0.0
    %2418 = vadd.xlane.f32.xlu0 %v2417
    %v2419 = vpop.xlane.xlu0 %2418
    %v2420 = vsel %vm278, %v2414, 0.0
    %2421 = vadd.xlane.f32.xlu0 %v2420
    %v2422 = vpop.xlane.xlu0 %2421
    %v2423 = vsel %vm278, %v2415, 0.0
    %2424 = vadd.xlane.f32.xlu0 %v2423
    %v2425 = vpop.xlane.xlu0 %2424
    %v2426 = vsel %vm278, %v2416, 0.0
    %2427 = vadd.xlane.f32.xlu0 %v2426
    %v2428 = vpop.xlane.xlu0 %2427
    %v2429 = vmul.f32 %v2419, %v1177
    %v2430 = vmul.f32 %v2422, %v1177
    %v2431 = vmul.f32 %v2425, %v1177
    %v2432 = vmul.f32 %v2428, %v1177
    %v2433 = vadd.f32 %v2429, 1e-05
    %v2434 = vadd.f32 %v2430, 1e-05
    %v2435 = vadd.f32 %v2431, 1e-05
    %v2436 = vadd.f32 %v2432, 1e-05
    %v2437 = vrsqrt.pop %v2433
    %v2438 = vmul.f32 %v2437, %v2433
    %v2439 = vmul.f32 %v2438, %v2437
    %v2440 = vmul.f32 0.5, %v2439
    %v2441 = vsub.f32 1.5, %v2440
    %v2442 = vmul.f32 %v2437, %v2441
    %vm2443 = vweird.f32 %v2433
    %vm2444 = vweird.f32 %v2437
    %vm2445 = vmor %vm2443, %vm2444
    %v2446 = vsel %vm2445, %v2437, %v2442
    %v2447 = vrsqrt.pop %v2434
    %v2448 = vmul.f32 %v2447, %v2434
    %v2449 = vmul.f32 %v2448, %v2447
    %v2450 = vmul.f32 0.5, %v2449
    %v2451 = vsub.f32 1.5, %v2450
    %v2452 = vmul.f32 %v2447, %v2451
    %vm2453 = vweird.f32 %v2434
    %vm2454 = vweird.f32 %v2447
    %vm2455 = vmor %vm2453, %vm2454
    %v2456 = vsel %vm2455, %v2447, %v2452
    %v2457 = vrsqrt.pop %v2435
    %v2458 = vmul.f32 %v2457, %v2435
    %v2459 = vmul.f32 %v2458, %v2457
    %v2460 = vmul.f32 0.5, %v2459
    %v2461 = vsub.f32 1.5, %v2460
    %v2462 = vmul.f32 %v2457, %v2461
    %vm2463 = vweird.f32 %v2435
    %vm2464 = vweird.f32 %v2457
    %vm2465 = vmor %vm2463, %vm2464
    %v2466 = vsel %vm2465, %v2457, %v2462
    %v2467 = vrsqrt.pop %v2436
    %v2468 = vmul.f32 %v2467, %v2436
    %v2469 = vmul.f32 %v2468, %v2467
    %v2470 = vmul.f32 0.5, %v2469
    %v2471 = vsub.f32 1.5, %v2470
    %v2472 = vmul.f32 %v2467, %v2471
    %vm2473 = vweird.f32 %v2436
    %vm2474 = vweird.f32 %v2467
    %vm2475 = vmor %vm2473, %vm2474
    %v2476 = vsel %vm2475, %v2467, %v2472
    %v2477 = vmul.f32 %v2409, %v2446
    %v2478 = vmul.f32 %v2410, %v2456
    %v2479 = vmul.f32 %v2411, %v2466
    %v2480 = vmul.f32 %v2412, %v2476
    %v2482 = vperm.slane %v1491, 0
    %v2484 = vmul.f32 %v2477, %v2482
    %v2485 = vmul.f32 %v2478, %v2482
    %v2486 = vmul.f32 %v2479, %v2482
    %v2487 = vmul.f32 %v2480, %v2482
    %v2489 = vperm.slane %v1493, 0
    %v2491 = vadd.f32 %v2484, %v2489
    %v2492 = vadd.f32 %v2485, %v2489
    %v2493 = vadd.f32 %v2486, %v2489
    %v2494 = vadd.f32 %v2487, %v2489
    %v2495 = vpack.c.bf16 %v2492, %v2491
    %v2496 = vpack.c.bf16 %v2494, %v2493
    %v2498 = vperm.slane %v1482, 0
    %v2504 = vunpack.c.l.b16 %v1477
    %v2505 = vunpack.c.l.b16 %v1478
    %v2506 = vunpack.c.l.b16 %v1479
    %v2507 = vunpack.c.l.b16 %v1480
    %v2508 = vpack.c.b16 %v2505, %v2504
    %v2509 = vpack.c.b16 %v2507, %v2506
    %v2513 = vsel %vm278, %v2495, 0
    %v2516 = vsel %vm278, %v2496, 0
    %2518 = vmatpush.bf16.msra.mxu0 0
    %2519 = vmatpush.bf16.msra.mxu0 0
    %2520 = vmatpush.bf16.msra.mxu0 0
    %2521 = vmatpush.bf16.msra.mxu0 0
    %2522 = vmatpush.bf16.msra.mxu0 0
    %2523 = vmatpush.bf16.msra.mxu0 0
    %2524 = vmatpush.bf16.msra.mxu0 %v2509
    %2525 = vmatpush.bf16.msra.mxu0 %v2508
    %2526 = vmatmul.bf16.gmra.mxu0 %v2513
    %v2527 = vpop.f32.mrf.mxu0
    %v2528 = vadd.f32 %v2498, %v2527
    %v2529 = vpop.f32.mrf.mxu0
    %v2530 = vadd.f32 %v2498, %v2529
    %2531 = vmatmul.bf16.gmra.mxu0 %v2516
    %v2532 = vpop.f32.mrf.mxu0
    %v2533 = vadd.f32 %v2498, %v2532
    %v2534 = vpop.f32.mrf.mxu0
    %v2535 = vadd.f32 %v2498, %v2534
    %2536 = vdwg.mxu0
    %v2537 = vmax.f32 %v2528, 0.0
    %v2538 = vmax.f32 %v2530, 0.0
    %v2539 = vmax.f32 %v2533, 0.0
    %v2540 = vmax.f32 %v2535, 0.0
    %v2541 = vpack.c.bf16 %v2538, %v2537
    %v2542 = vpack.c.bf16 %v2540, %v2539
    %v2544 = vperm.slane %v1489, 0
    %v2550 = vunpack.c.l.b16 %v1484
    %v2551 = vunpack.c.l.b16 %v1485
    %v2552 = vunpack.c.l.b16 %v1486
    %v2553 = vunpack.c.l.b16 %v1487
    %v2554 = vpack.c.b16 %v2551, %v2550
    %v2555 = vpack.c.b16 %v2553, %v2552
    %v2559 = vsel %vm278, %v2541, 0
    %v2562 = vsel %vm278, %v2542, 0
    %2564 = vmatpush.bf16.msra.mxu0 0
    %2565 = vmatpush.bf16.msra.mxu0 0
    %2566 = vmatpush.bf16.msra.mxu0 0
    %2567 = vmatpush.bf16.msra.mxu0 0
    %2568 = vmatpush.bf16.msra.mxu0 0
    %2569 = vmatpush.bf16.msra.mxu0 0
    %2570 = vmatpush.bf16.msra.mxu0 %v2555
    %2571 = vmatpush.bf16.msra.mxu0 %v2554
    %2572 = vmatmul.bf16.gmra.mxu0 %v2559
    %v2573 = vpop.f32.mrf.mxu0
    %v2574 = vadd.f32 %v2544, %v2573
    %v2575 = vpop.f32.mrf.mxu0
    %v2576 = vadd.f32 %v2544, %v2575
    %2577 = vmatmul.bf16.gmra.mxu0 %v2562
    %v2578 = vpop.f32.mrf.mxu0
    %v2579 = vadd.f32 %v2544, %v2578
    %v2580 = vpop.f32.mrf.mxu0
    %v2581 = vadd.f32 %v2544, %v2580
    %2582 = vdwg.mxu0
    %v2583 = vadd.f32 %v2491, %v2574
    %v2584 = vadd.f32 %v2492, %v2576
    %v2585 = vadd.f32 %v2493, %v2579
    %v2586 = vadd.f32 %v2494, %v2581
    %v2587 = vsel %vm278, %v2583, 0.0
    %2588 = vadd.xlane.f32.xlu0 %v2587
    %v2589 = vpop.xlane.xlu0 %2588
    %v2590 = vsel %vm278, %v2584, 0.0
    %2591 = vadd.xlane.f32.xlu0 %v2590
    %v2592 = vpop.xlane.xlu0 %2591
    %v2593 = vsel %vm278, %v2585, 0.0
    %2594 = vadd.xlane.f32.xlu0 %v2593
    %v2595 = vpop.xlane.xlu0 %2594
    %v2596 = vsel %vm278, %v2586, 0.0
    %2597 = vadd.xlane.f32.xlu0 %v2596
    %v2598 = vpop.xlane.xlu0 %2597
    %v2599 = vmul.f32 %v2589, %v1177
    %v2600 = vmul.f32 %v2592, %v1177
    %v2601 = vmul.f32 %v2595, %v1177
    %v2602 = vmul.f32 %v2598, %v1177
    %v2603 = vsub.f32 %v2583, %v2599
    %v2604 = vsub.f32 %v2584, %v2600
    %v2605 = vsub.f32 %v2585, %v2601
    %v2606 = vsub.f32 %v2586, %v2602
    %v2607 = vmul.f32 %v2603, %v2603
    %v2608 = vmul.f32 %v2604, %v2604
    %v2609 = vmul.f32 %v2605, %v2605
    %v2610 = vmul.f32 %v2606, %v2606
    %v2611 = vsel %vm278, %v2607, 0.0
    %2612 = vadd.xlane.f32.xlu0 %v2611
    %v2613 = vpop.xlane.xlu0 %2612
    %v2614 = vsel %vm278, %v2608, 0.0
    %2615 = vadd.xlane.f32.xlu0 %v2614
    %v2616 = vpop.xlane.xlu0 %2615
    %v2617 = vsel %vm278, %v2609, 0.0
    %2618 = vadd.xlane.f32.xlu0 %v2617
    %v2619 = vpop.xlane.xlu0 %2618
    %v2620 = vsel %vm278, %v2610, 0.0
    %2621 = vadd.xlane.f32.xlu0 %v2620
    %v2622 = vpop.xlane.xlu0 %2621
    %v2623 = vmul.f32 %v2613, %v1177
    %v2624 = vmul.f32 %v2616, %v1177
    %v2625 = vmul.f32 %v2619, %v1177
    %v2626 = vmul.f32 %v2622, %v1177
    %v2627 = vadd.f32 %v2623, 1e-05
    %v2628 = vadd.f32 %v2624, 1e-05
    %v2629 = vadd.f32 %v2625, 1e-05
    %v2630 = vadd.f32 %v2626, 1e-05
    %v2631 = vrsqrt.pop %v2627
    %v2632 = vmul.f32 %v2631, %v2627
    %v2633 = vmul.f32 %v2632, %v2631
    %v2634 = vmul.f32 0.5, %v2633
    %v2635 = vsub.f32 1.5, %v2634
    %v2636 = vmul.f32 %v2631, %v2635
    %vm2637 = vweird.f32 %v2627
    %vm2638 = vweird.f32 %v2631
    %vm2639 = vmor %vm2637, %vm2638
    %v2640 = vsel %vm2639, %v2631, %v2636
    %v2641 = vrsqrt.pop %v2628
    %v2642 = vmul.f32 %v2641, %v2628
    %v2643 = vmul.f32 %v2642, %v2641
    %v2644 = vmul.f32 0.5, %v2643
    %v2645 = vsub.f32 1.5, %v2644
    %v2646 = vmul.f32 %v2641, %v2645
    %vm2647 = vweird.f32 %v2628
    %vm2648 = vweird.f32 %v2641
    %vm2649 = vmor %vm2647, %vm2648
    %v2650 = vsel %vm2649, %v2641, %v2646
    %v2651 = vrsqrt.pop %v2629
    %v2652 = vmul.f32 %v2651, %v2629
    %v2653 = vmul.f32 %v2652, %v2651
    %v2654 = vmul.f32 0.5, %v2653
    %v2655 = vsub.f32 1.5, %v2654
    %v2656 = vmul.f32 %v2651, %v2655
    %vm2657 = vweird.f32 %v2629
    %vm2658 = vweird.f32 %v2651
    %vm2659 = vmor %vm2657, %vm2658
    %v2660 = vsel %vm2659, %v2651, %v2656
    %v2661 = vrsqrt.pop %v2630
    %v2662 = vmul.f32 %v2661, %v2630
    %v2663 = vmul.f32 %v2662, %v2661
    %v2664 = vmul.f32 0.5, %v2663
    %v2665 = vsub.f32 1.5, %v2664
    %v2666 = vmul.f32 %v2661, %v2665
    %vm2667 = vweird.f32 %v2630
    %vm2668 = vweird.f32 %v2661
    %vm2669 = vmor %vm2667, %vm2668
    %v2670 = vsel %vm2669, %v2661, %v2666
    %v2671 = vmul.f32 %v2603, %v2640
    %v2672 = vmul.f32 %v2604, %v2650
    %v2673 = vmul.f32 %v2605, %v2660
    %v2674 = vmul.f32 %v2606, %v2670
    %v2676 = vperm.slane %v1495, 0
    %v2678 = vmul.f32 %v2671, %v2676
    %v2679 = vmul.f32 %v2672, %v2676
    %v2680 = vmul.f32 %v2673, %v2676
    %v2681 = vmul.f32 %v2674, %v2676
    %v2683 = vperm.slane %v1497, 0
    %v2685 = vadd.f32 %v2678, %v2683
    %v2686 = vadd.f32 %v2679, %v2683
    %v2687 = vadd.f32 %v2680, %v2683
    %v2688 = vadd.f32 %v2681, %v2683
    %2689 = vst.msk [vmem:[#allocation2] sm:$0xff] %vm278, %v2685
    %2690 = vst.msk [vmem:[#allocation2 + $0x8] sm:$0xff] %vm278, %v2686
    %2691 = vst.msk [vmem:[#allocation2 + $0x10] sm:$0xff] %vm278, %v2687
    %2692 = vst.msk [vmem:[#allocation2 + $0x18] sm:$0xff] %vm278, %v2688
    // Predicated region
    $region70: #{vit_forward.1} parent=1 // pred_check
      _
    $region71: #{vit_forward.1} parent=1 // pred_check_branch
      %2694 = sbr.rel (0) target = $region73
    $region72: #{vit_forward.1} parent=1 // pred_region
      %2696 = vsyncadd [#allocation3], 0
      %s2697 = sshll.u32 [#allocation2], 4
      %s2698 = int_to_ptr.vmem [resolvable:$true] %s2697
      %s2699 = sshll.u32 %s17, 4
      %s2700 = int_to_ptr.hbm [resolvable:$true] %s2699
      %2705 = dma.vmem_to_hbm [thread:$0]  %s2698, 512, %s2700, [#allocation3], 128, 128, 8
    $region73: #{vit_forward.1} parent=1 // pred_fallthru
      _
    // Predicated region
    $region74: #{vit_forward.1} parent=1 // pred_check
      _
    $region75: #{vit_forward.1} parent=1 // pred_check_branch
      %2707 = sbr.rel (0) target = $region77
    $region76: #{vit_forward.1} parent=1 // pred_region
      %2709 = dma.done [#allocation3], 512
    $region77: #{vit_forward.1} parent=1 // pred_fallthru
      _
    %2710 = vsyncpa [#allocation3], 1

</llo_original>
